<compile_context>
chip_gen: v7x
topology: tpu7x:2x2x1
jax: 0.10.0
libtpu: 0.0.40
codegen_flags: <defaults>
</compile_context>

<pallas_src>
import functools
import math

import jax
import jax.numpy as jnp
from jax.experimental import pallas as pl
from jax.experimental.pallas import tpu as pltpu


# Small tile target so the 16x16 demo exercises the multi-tile halo path.  For
# production SR resolutions use 32-64 rows per tile (on v7x, whose VMEM is only
# 64 MiB, keep weights + double-buffered in/out blocks under ~48 MiB).
_TILE_H_TARGET = 8
_VMEM_LIMIT_BYTES = 48 * 1024 * 1024


# ----------------------------------------------------------------------------
# helpers shared by all kernels
# ----------------------------------------------------------------------------
def _pick_tile(H, halo, target=_TILE_H_TARGET):
    """Largest row tile <= target that divides H and is a multiple of halo."""
    if H % halo:
        # TODO(synk): arbitrary H would need a padded grid; not required here.
        raise ValueError(f"H={H} must be a multiple of the halo {halo}")
    best = H
    for t in range(halo, min(target, H) + 1, halo):
        if H % t == 0:
            best = t
    return best


def _halo_specs(H, W, C, TH, halo):
    """Three auto-pipelined views of the same NHWC array: the TH-row center
    tile plus thin top/bottom halo blocks (`halo` rows each)."""
    rblk = TH // halo            # halo-granularity blocks per tile
    nblk = H // halo
    top = pl.BlockSpec((1, halo, W, C),
                       lambda n, h: (n, jnp.maximum(h * rblk - 1, 0), 0, 0))
    center = pl.BlockSpec((1, TH, W, C), lambda n, h: (n, h, 0, 0))
    bot = pl.BlockSpec((1, halo, W, C),
                       lambda n, h: (n, jnp.minimum((h + 1) * rblk, nblk - 1),
                                     0, 0))
    return top, center, bot


def _compiler_params():
    # batch and row-tile axes are both parallel -> v7x's two TensorCores can
    # split the spatial axis even at batch=1; harmless on v5e/v6e (1 TC).
    return pltpu.CompilerParams(
        dimension_semantics=("parallel", "parallel"),
        vmem_limit_bytes=_VMEM_LIMIT_BYTES)


def _padded_input(xt, xc, xb, h, nh, col_pad):
    """Zero-padded input tile assembled in VMEM (no host jnp.pad / HBM copy).
    Halo rows that fall outside the image (first/last tile) are zeroed and
    `col_pad` zero columns are added on both sides."""
    dt = xc.dtype
    top = xt * (h > 0).astype(jnp.float32).astype(dt)
    bot = xb * (h < nh - 1).astype(jnp.float32).astype(dt)
    rows = jnp.concatenate([top, xc, bot], axis=0)
    if col_pad:
        zc = jnp.zeros((rows.shape[0], col_pad, rows.shape[2]), dt)
        rows = jnp.concatenate([zc, rows, zc], axis=1)
    return rows


def _conv_acc(xpad, w_ref, KH, KW, Ho, Wo, fold_all):
    """Direct convolution as MXU matmuls with the taps folded into the
    contraction dim (K = KW*Cin, or KH*KW*Cin when fold_all).  bf16 inputs,
    f32 accumulation."""
    Cin = xpad.shape[-1]
    if fold_all:                                   # one matmul, K = KH*KW*Cin
        slabs = [xpad[kh:kh + Ho, kw:kw + Wo, :]
                 for kh in range(KH) for kw in range(KW)]
        patch = jnp.concatenate(slabs, axis=-1).reshape(Ho * Wo, KH * KW * Cin)
        return jnp.dot(patch, w_ref[0], preferred_element_type=jnp.float32)
    acc = None                                     # KH matmuls, K = KW*Cin
    for kh in range(KH):
        slabs = [xpad[kh:kh + Ho, kw:kw + Wo, :] for kw in range(KW)]
        patch = jnp.concatenate(slabs, axis=-1).reshape(Ho * Wo, KW * Cin)
        part = jnp.dot(patch, w_ref[kh], preferred_element_type=jnp.float32)
        acc = part if acc is None else acc + part
    return acc


# ----------------------------------------------------------------------------
# kernels
# ----------------------------------------------------------------------------
def _conv_kernel(xt_ref, xc_ref, xb_ref, w_ref, b_ref, a_ref, *rest,
                 KH, KW, prelu, has_residual, fold_all):
    """Single conv with fused bias / optional PReLU / optional residual add."""
    if has_residual:
        r_ref, o_ref = rest
    else:
        (o_ref,) = rest
    h = pl.program_id(1)
    nh = pl.num_programs(1)
    TH, W = xc_ref.shape[1], xc_ref.shape[2]
    Cout = o_ref.shape[3]

    xpad = _padded_input(xt_ref[0], xc_ref[0], xb_ref[0], h, nh, KW // 2)
    acc = _conv_acc(xpad, w_ref, KH, KW, TH, W, fold_all)      # (TH*W, Cout) f32
    acc = acc + b_ref[...]
    if prelu:
        alpha = a_ref[0, 0]
        acc = jnp.where(acc > 0, acc, alpha * acc)
    if has_residual:
        acc = acc + r_ref[0].reshape(TH * W, Cout).astype(jnp.float32)
    # TODO(synk): lane-packing the (TH*W, 64) store to (TH*W/2, 128) would make
    # it fully lane-dense but costs an extra relayout; left as-is.
    o_ref[0] = acc.reshape(TH, W, Cout).astype(o_ref.dtype)


def _resblock_kernel(xt_ref, xc_ref, xb_ref, w1_ref, b1_ref, a_ref,
                     w2_ref, b2_ref, o_ref):
    """Fused ResnetBlock: conv3x3 + bias + PReLU -> conv3x3 + bias -> + x.
    The intermediate activation never leaves VMEM."""
    h = pl.program_id(1)
    nh = pl.num_programs(1)
    _, TH, W, C = xc_ref.shape

    # x tile with a 2-row halo (two chained 3x3 convs) and one zero column.
    xpad = _padded_input(xt_ref[0], xc_ref[0], xb_ref[0], h, nh, 1)  # (TH+4, W+2, C)

    # conv1 + bias + PReLU evaluated on TH+2 rows (output rows + conv2's halo).
    y = _conv_acc(xpad, w1_ref, 3, 3, TH + 2, W, False) + b1_ref[...]
    alpha = a_ref[0, 0]
    y = jnp.where(y > 0, y, alpha * y)
    y = y.reshape(TH + 2, W, C)
    # y rows outside the image are conv2's ZERO padding (not conv1 of zeros).
    row = jax.lax.broadcasted_iota(jnp.int32, (TH + 2, 1, 1), 0)
    lo = (h == 0).astype(jnp.int32)
    hi = (TH + 2) - (h == nh - 1).astype(jnp.int32)
    y = y * ((row >= lo) & (row < hi)).astype(jnp.float32)
    y = y.astype(xc_ref.dtype)
    zc = jnp.zeros((TH + 2, 1, C), y.dtype)
    ypad = jnp.concatenate([zc, y, zc], axis=1)                      # (TH+2, W+2, C)

    # conv2 + bias + block residual.
    acc = _conv_acc(ypad, w2_ref, 3, 3, TH, W, False) + b2_ref[...]
    acc = acc + xc_ref[0].reshape(TH * W, C).astype(jnp.float32)
    o_ref[0] = acc.reshape(TH, W, C).astype(o_ref.dtype)


def _upconv_kernel(xt_ref, xc_ref, xb_ref, w_ref, b_ref, a_ref, o_ref):
    """Fused Upsampler stage: conv3x3 (C->4C) + bias + PReLU + PixelShuffle(2).
    The output channels were pre-permuted to (i, j, c) order, so the four
    sub-pixel images are contiguous channel slabs and the shuffle becomes two
    concat+reshape interleaves on the store path."""
    h = pl.program_id(1)
    nh = pl.num_programs(1)
    _, TH, W, C = xc_ref.shape

    xpad = _padded_input(xt_ref[0], xc_ref[0], xb_ref[0], h, nh, 1)  # (TH+2, W+2, C)
    acc = _conv_acc(xpad, w_ref, 3, 3, TH, W, False) + b_ref[...]    # (TH*W, 4C) f32
    alpha = a_ref[0, 0]
    acc = jnp.where(acc > 0, acc, alpha * acc)
    acc = acc.astype(o_ref.dtype).reshape(TH, W, 4 * C)

    top = acc[:, :, :2 * C].reshape(TH, 2 * W, C)     # even output rows (i=0)
    bot = acc[:, :, 2 * C:].reshape(TH, 2 * W, C)     # odd output rows  (i=1)
    o_ref[0] = jnp.concatenate([top, bot], axis=1).reshape(2 * TH, 2 * W, C)


# ----------------------------------------------------------------------------
# pallas_call wrappers
# ----------------------------------------------------------------------------
def conv_layer(x, w, b, *, prelu_alpha=None, residual=None, fold_all=False,
               out_dtype=None, tile_target=_TILE_H_TARGET):
    """NHWC stride-1 zero-padded conv with fused bias / PReLU / residual."""
    N, H, W, Cin = x.shape
    KH, KW, _, Cout = w.shape
    halo = KH // 2
    TH = _pick_tile(H, halo, tile_target)
    nh = H // TH
    out_dtype = out_dtype or x.dtype

    wk = w.astype(jnp.bfloat16)
    wk = (wk.reshape(1, KH * KW * Cin, Cout) if fold_all
          else wk.reshape(KH, KW * Cin, Cout))
    bk = b.astype(jnp.float32).reshape(1, Cout)
    if prelu_alpha is None:
        alpha = jnp.zeros((1, 1), jnp.float32)
    else:
        alpha = jnp.asarray(prelu_alpha, jnp.float32).reshape(1, 1)

    top, center, bot = _halo_specs(H, W, Cin, TH, halo)
    in_specs = [top, center, bot,
                pl.BlockSpec(wk.shape, lambda n, h: (0, 0, 0)),
                pl.BlockSpec((1, Cout), lambda n, h: (0, 0)),
                pl.BlockSpec(memory_space=pltpu.MemorySpace.SMEM)]
    args = [x, x, x, wk, bk, alpha]
    res_bytes = 0
    if residual is not None:
        in_specs.append(pl.BlockSpec((1, TH, W, Cout),
                                     lambda n, h: (n, h, 0, 0)))
        args.append(residual)
        res_bytes = residual.size * residual.dtype.itemsize

    kernel = functools.partial(_conv_kernel, KH=KH, KW=KW,
                               prelu=prelu_alpha is not None,
                               has_residual=residual is not None,
                               fold_all=fold_all)
    cost = pl.CostEstimate(
        flops=int(2 * N * H * W * KH * KW * Cin * Cout),
        transcendentals=0,
        bytes_accessed=int(x.size * x.dtype.itemsize + wk.size * 2 + res_bytes
                           + N * H * W * Cout * jnp.dtype(out_dtype).itemsize))
    return pl.pallas_call(
        kernel,
        out_shape=jax.ShapeDtypeStruct((N, H, W, Cout), out_dtype),
        grid=(N, nh),
        in_specs=in_specs,
        out_specs=pl.BlockSpec((1, TH, W, Cout), lambda n, h: (n, h, 0, 0)),
        compiler_params=_compiler_params(),
        cost_estimate=cost,
    )(*args)


def resnet_block(x, w1, b1, alpha, w2, b2, *, tile_target=_TILE_H_TARGET):
    """One fused ResnetBlock pallas_call."""
    N, H, W, C = x.shape
    halo = 2                       # two chained 3x3 convs
    TH = _pick_tile(H, halo, tile_target)
    nh = H // TH

    w1k = w1.astype(jnp.bfloat16).reshape(3, 3 * C, C)
    w2k = w2.astype(jnp.bfloat16).reshape(3, 3 * C, C)
    b1k = b1.astype(jnp.float32).reshape(1, C)
    b2k = b2.astype(jnp.float32).reshape(1, C)
    a = jnp.asarray(alpha, jnp.float32).reshape(1, 1)

    top, center, bot = _halo_specs(H, W, C, TH, halo)
    wspec = pl.BlockSpec((3, 3 * C, C), lambda n, h: (0, 0, 0))
    bspec = pl.BlockSpec((1, C), lambda n, h: (0, 0))
    in_specs = [top, center, bot, wspec, bspec,
                pl.BlockSpec(memory_space=pltpu.MemorySpace.SMEM),
                wspec, bspec]
    cost = pl.CostEstimate(
        flops=int(2 * 2 * N * H * W * 9 * C * C),
        transcendentals=0,
        bytes_accessed=int(2 * x.size * x.dtype.itemsize + 2 * 9 * C * C * 2))
    return pl.pallas_call(
        _resblock_kernel,
        out_shape=jax.ShapeDtypeStruct((N, H, W, C), x.dtype),
        grid=(N, nh),
        in_specs=in_specs,
        out_specs=pl.BlockSpec((1, TH, W, C), lambda n, h: (n, h, 0, 0)),
        compiler_params=_compiler_params(),
        cost_estimate=cost,
    )(x, x, x, w1k, b1k, a, w2k, b2k)


def upsample_block(x, w, b, alpha, *, tile_target=_TILE_H_TARGET):
    """Fused [3x3 conv C->4C, PixelShuffle(2), PReLU] pallas_call."""
    N, H, W, C = x.shape
    halo = 1
    TH = _pick_tile(H, halo, tile_target)
    nh = H // TH

    # Permute output channels from (c, i, j) to (i, j, c) so the pixel-shuffle
    # sub-images are contiguous channel slabs inside the kernel.
    wp = w.reshape(3, 3, C, C, 2, 2).transpose(0, 1, 2, 4, 5, 3)
    wp = wp.reshape(3, 3, C, 4 * C)
    bp = b.reshape(C, 2, 2).transpose(1, 2, 0).reshape(4 * C)
    wk = wp.astype(jnp.bfloat16).reshape(3, 3 * C, 4 * C)
    bk = bp.astype(jnp.float32).reshape(1, 4 * C)
    a = jnp.asarray(alpha, jnp.float32).reshape(1, 1)

    top, center, bot = _halo_specs(H, W, C, TH, halo)
    in_specs = [top, center, bot,
                pl.BlockSpec((3, 3 * C, 4 * C), lambda n, h: (0, 0, 0)),
                pl.BlockSpec((1, 4 * C), lambda n, h: (0, 0)),
                pl.BlockSpec(memory_space=pltpu.MemorySpace.SMEM)]
    cost = pl.CostEstimate(
        flops=int(2 * N * H * W * 9 * C * 4 * C),
        transcendentals=0,
        bytes_accessed=int(5 * x.size * x.dtype.itemsize + wk.size * 2))
    return pl.pallas_call(
        _upconv_kernel,
        out_shape=jax.ShapeDtypeStruct((N, 2 * H, 2 * W, C), x.dtype),
        grid=(N, nh),
        in_specs=in_specs,
        out_specs=pl.BlockSpec((1, 2 * TH, 2 * W, C), lambda n, h: (n, h, 0, 0)),
        compiler_params=_compiler_params(),
        cost_estimate=cost,
    )(x, x, x, wk, bk, a)


# ----------------------------------------------------------------------------
# parameters & forward orchestration
# ----------------------------------------------------------------------------
def init_params(key, *, num_channels, base_filter=64, n_resblocks=16,
                scale_factor=2):
    """Xavier-uniform(gain=0.1) conv weights, zero biases, PReLU alpha=0.25
    (nn.PReLU() default), matching the PyTorch module's init."""
    def xavier(k, kh, kw, cin, cout, gain=0.1):
        fan_in, fan_out = cin * kh * kw, cout * kh * kw
        bound = gain * math.sqrt(6.0 / (fan_in + fan_out))
        w = jax.random.uniform(k, (kh, kw, cin, cout), jnp.float32,
                               -bound, bound)
        return w, jnp.zeros((cout,), jnp.float32)

    n_up = int(math.log(scale_factor, 2))
    keys = iter(jax.random.split(key, 3 + 2 * n_resblocks + n_up))
    p = {}
    p['feat0_w'], p['feat0_b'] = xavier(next(keys), 9, 9, num_channels,
                                        base_filter)
    p['feat0_alpha'] = jnp.float32(0.25)

    w1s, b1s, w2s, b2s = [], [], [], []
    for _ in range(n_resblocks):
        w1, b1 = xavier(next(keys), 3, 3, base_filter, base_filter)
        w2, b2 = xavier(next(keys), 3, 3, base_filter, base_filter)
        w1s.append(w1); b1s.append(b1); w2s.append(w2); b2s.append(b2)
    p['body'] = (jnp.stack(w1s), jnp.stack(b1s), jnp.stack(w2s),
                 jnp.stack(b2s), jnp.full((n_resblocks,), 0.25, jnp.float32))

    p['res_b1_w'], p['res_b1_b'] = xavier(next(keys), 3, 3, base_filter,
                                          base_filter)
    p['up'] = [xavier(next(keys), 3, 3, base_filter, 4 * base_filter)
               for _ in range(n_up)]
    p['up_alpha'] = jnp.float32(0.25)
    p['out_w'], p['out_b'] = xavier(next(keys), 9, 9, base_filter,
                                    num_channels)
    return p


def net_forward(params, x):
    """SRResNet forward; x is NHWC float32, output is NHWC float32."""
    num_channels = params['out_w'].shape[-1]
    x = x.astype(jnp.bfloat16)                   # bf16 activations end-to-end

    # feat0: 9x9 conv + PReLU (full im2col, K = 9*9*Cin)
    x = conv_layer(x, params['feat0_w'], params['feat0_b'],
                   prelu_alpha=params['feat0_alpha'], fold_all=True)
    stage = x

    # 16 fused ResnetBlocks, scanned so the kernel is compiled once.
    def res_step(h, wp):
        w1, b1, w2, b2, a = wp
        return resnet_block(h, w1, b1, a, w2, b2), None

    x, _ = jax.lax.scan(res_step, x, params['body'])

    # res_b1 (no activation) with the long skip fused into the kernel.
    x = conv_layer(x, params['res_b1_w'], params['res_b1_b'], residual=stage)

    # Upsampler: fused [3x3 conv 64->256, PixelShuffle(2), PReLU] per stage.
    for w, b in params['up']:
        x = upsample_block(x, w, b, params['up_alpha'])

    # output_conv: 9x9 conv.  Output channels are zero-padded to a
    # lane-friendlier width inside the kernel and stripped here.
    # (MeanShift sub_mean/add_mean are never used in forward() -> omitted.)
    cpad = max(64, num_channels)
    w_out = jnp.pad(params['out_w'],
                    ((0, 0), (0, 0), (0, 0), (0, cpad - num_channels)))
    b_out = jnp.pad(params['out_b'], ((0, cpad - num_channels),))
    x = conv_layer(x, w_out, b_out, out_dtype=jnp.float32)
    return x[..., :num_channels]


def pixel_shuffle_ref(x, r):
    """Reference NHWC equivalent of torch.nn.PixelShuffle(r) (check only)."""
    N, H, W, C = x.shape
    c = C // (r * r)
    x = x.reshape(N, H, W, c, r, r).transpose(0, 1, 4, 2, 5, 3)
    return x.reshape(N, H * r, W * r, c)


if __name__ == "__main__":
    key = jax.random.PRNGKey(0)
    kp, kx = jax.random.split(key)

    batch, num_channels, size, scale = 2, 3, 16, 2
    params = init_params(kp, num_channels=num_channels, scale_factor=scale)

    x_nchw = jax.random.normal(kx, (batch, num_channels, size, size),
                               jnp.float32)
    x = jnp.transpose(x_nchw, (0, 2, 3, 1))                # NCHW -> NHWC
    xb = x.astype(jnp.bfloat16)

    # ---- per-kernel correctness checks against XLA references ----
    def _prelu(v, a):
        return jnp.where(v > 0, v, a * v)

    def _conv_ref(v, w, b, pad):
        w16 = w.astype(jnp.bfloat16).astype(jnp.float32)
        out = jax.lax.conv_general_dilated(
            v.astype(jnp.float32), w16, (1, 1), ((pad, pad), (pad, pad)),
            dimension_numbers=('NHWC', 'HWIO', 'NHWC'),
            precision=jax.lax.Precision.HIGHEST)
        return out + b

    # feat0: 9x9 conv (im2col K=243) + PReLU, multi-tile halo path
    feat = conv_layer(xb, params['feat0_w'], params['feat0_b'],
                      prelu_alpha=params['feat0_alpha'], fold_all=True)
    ref = _prelu(_conv_ref(xb, params['feat0_w'], params['feat0_b'], 4),
                 params['feat0_alpha'])
    err = float(jnp.max(jnp.abs(feat.astype(jnp.float32) - ref)))
    assert err < 5e-3, f"feat0 conv mismatch: {err}"

    # fused ResnetBlock (conv + PReLU + conv + residual in one kernel)
    w1 = params['body'][0][0]; b1 = params['body'][1][0]
    w2 = params['body'][2][0]; b2 = params['body'][3][0]
    al = params['body'][4][0]
    blk = resnet_block(feat, w1, b1, al, w2, b2)
    y_ref = _prelu(_conv_ref(feat, w1, b1, 1), al).astype(jnp.bfloat16)
    blk_ref = _conv_ref(y_ref, w2, b2, 1) + feat.astype(jnp.float32)
    err = float(jnp.max(jnp.abs(blk.astype(jnp.float32) - blk_ref)))
    assert err < 5e-3, f"resblock mismatch: {err}"

    # fused upsampler (conv + PixelShuffle + PReLU)
    uw, ub = params['up'][0]
    up = upsample_block(blk, uw, ub, params['up_alpha'])
    up_ref = _prelu(pixel_shuffle_ref(_conv_ref(blk, uw, ub, 1), 2),
                    params['up_alpha'])
    err = float(jnp.max(jnp.abs(up.astype(jnp.float32) - up_ref)))
    assert err < 5e-3, f"upsampler mismatch: {err}"

    # ---- full forward ----
    out = jax.block_until_ready(jax.jit(net_forward)(params, x))
    out_nchw = jnp.transpose(out, (0, 3, 1, 2))            # back to NCHW
    assert out_nchw.shape == (batch, num_channels, size * scale, size * scale)
    assert out_nchw.dtype == jnp.float32
    assert bool(jnp.all(jnp.isfinite(out_nchw)))
    print("KERNEL_OK")
</pallas_src>

<mosaic_0001>
module attributes {stable_mosaic.version = 11 : i64} {
  func.func @_conv_kernel(%arg0: i32, %arg1: i32, %arg2: memref<1x4x16x3xbf16, #tpu.memory_space<vmem>>, %arg3: memref<1x8x16x3xbf16, #tpu.memory_space<vmem>>, %arg4: memref<1x4x16x3xbf16, #tpu.memory_space<vmem>>, %arg5: memref<1x243x64xbf16, #tpu.memory_space<vmem>>, %arg6: memref<1x64xf32, #tpu.memory_space<vmem>>, %arg7: memref<1x1xf32, #tpu.memory_space<smem>>, %arg8: memref<1x8x16x64xbf16, #tpu.memory_space<vmem>>) attributes {dimension_semantics = [#tpu.dimension_semantics<parallel>, #tpu.dimension_semantics<parallel>], iteration_bounds = array<i64: 2, 2>, scalar_prefetch = 0 : i64, scratch_operands = 0 : i64, tpu.core_type = #tpu.core_type<tc>, window_params = [{transform_indices = @transform_0, window_bounds = array<i64: 1, 4, 16, 3>}, {transform_indices = @transform_1, window_bounds = array<i64: 1, 8, 16, 3>}, {transform_indices = @transform_2, window_bounds = array<i64: 1, 4, 16, 3>}, {pipeline_mode = #tpu.pipeline_mode<synchronous>, transform_indices = @transform_3, window_bounds = array<i64: 1, 243, 64>}, {pipeline_mode = #tpu.pipeline_mode<synchronous>, transform_indices = @transform_4, window_bounds = array<i64: 1, 64>}, {transform_indices = @transform_5, window_bounds = array<i64: 1, 1>}, {transform_indices = @transform_6, window_bounds = array<i64: 1, 8, 16, 64>}]} {
    %c0 = arith.constant 0 : index
    %c0_0 = arith.constant 0 : index
    %c0_1 = arith.constant 0 : index
    %c0_2 = arith.constant 0 : index
    %0 = vector.load %arg2[%c0, %c0_0, %c0_1, %c0_2] : memref<1x4x16x3xbf16, #tpu.memory_space<vmem>>, vector<1x4x16x3xbf16>
    %1 = vector.shape_cast %0 : vector<1x4x16x3xbf16> to vector<4x16x3xbf16>
    %c0_3 = arith.constant 0 : index
    %c0_4 = arith.constant 0 : index
    %c0_5 = arith.constant 0 : index
    %c0_6 = arith.constant 0 : index
    %2 = vector.load %arg3[%c0_3, %c0_4, %c0_5, %c0_6] : memref<1x8x16x3xbf16, #tpu.memory_space<vmem>>, vector<1x8x16x3xbf16>
    %3 = vector.shape_cast %2 : vector<1x8x16x3xbf16> to vector<8x16x3xbf16>
    %c0_7 = arith.constant 0 : index
    %c0_8 = arith.constant 0 : index
    %c0_9 = arith.constant 0 : index
    %c0_10 = arith.constant 0 : index
    %4 = vector.load %arg4[%c0_7, %c0_8, %c0_9, %c0_10] : memref<1x4x16x3xbf16, #tpu.memory_space<vmem>>, vector<1x4x16x3xbf16>
    %5 = vector.shape_cast %4 : vector<1x4x16x3xbf16> to vector<4x16x3xbf16>
    %c0_i32 = arith.constant 0 : i32
    %6 = arith.cmpi sgt, %arg1, %c0_i32 : i32
    %7 = arith.extui %6 : i1 to i32
    %8 = arith.sitofp %7 : i32 to f32
    %9 = arith.truncf %8 : f32 to bf16
    %10 = vector.broadcast %9 : bf16 to vector<4x16x3xbf16>
    %11 = arith.mulf %1, %10 : vector<4x16x3xbf16>
    %c1_i32 = arith.constant 1 : i32
    %12 = arith.cmpi slt, %arg1, %c1_i32 : i32
    %13 = arith.extui %12 : i1 to i32
    %14 = arith.sitofp %13 : i32 to f32
    %15 = arith.truncf %14 : f32 to bf16
    %16 = vector.broadcast %15 : bf16 to vector<4x16x3xbf16>
    %17 = arith.mulf %5, %16 : vector<4x16x3xbf16>
    %18 = tpu.concatenate %11, %3, %17 in 0 : vector<4x16x3xbf16>, vector<8x16x3xbf16>, vector<4x16x3xbf16> -> vector<16x16x3xbf16>
    %cst = arith.constant 0.000000e+00 : bf16
    %19 = vector.broadcast %cst : bf16 to vector<16x4x3xbf16>
    %20 = tpu.concatenate %19, %18, %19 in 1 : vector<16x4x3xbf16>, vector<16x16x3xbf16>, vector<16x4x3xbf16> -> vector<16x24x3xbf16>
    %21 = vector.extract_strided_slice %20 {offsets = [0, 0, 0], sizes = [8, 16, 3], strides = [1, 1, 1]} : vector<16x24x3xbf16> to vector<8x16x3xbf16>
    %22 = vector.extract_strided_slice %20 {offsets = [0, 1, 0], sizes = [8, 16, 3], strides = [1, 1, 1]} : vector<16x24x3xbf16> to vector<8x16x3xbf16>
    %23 = vector.extract_strided_slice %20 {offsets = [0, 2, 0], sizes = [8, 16, 3], strides = [1, 1, 1]} : vector<16x24x3xbf16> to vector<8x16x3xbf16>
    %24 = vector.extract_strided_slice %20 {offsets = [0, 3, 0], sizes = [8, 16, 3], strides = [1, 1, 1]} : vector<16x24x3xbf16> to vector<8x16x3xbf16>
    %25 = vector.extract_strided_slice %20 {offsets = [0, 4, 0], sizes = [8, 16, 3], strides = [1, 1, 1]} : vector<16x24x3xbf16> to vector<8x16x3xbf16>
    %26 = vector.extract_strided_slice %20 {offsets = [0, 5, 0], sizes = [8, 16, 3], strides = [1, 1, 1]} : vector<16x24x3xbf16> to vector<8x16x3xbf16>
    %27 = vector.extract_strided_slice %20 {offsets = [0, 6, 0], sizes = [8, 16, 3], strides = [1, 1, 1]} : vector<16x24x3xbf16> to vector<8x16x3xbf16>
    %28 = vector.extract_strided_slice %20 {offsets = [0, 7, 0], sizes = [8, 16, 3], strides = [1, 1, 1]} : vector<16x24x3xbf16> to vector<8x16x3xbf16>
    %29 = vector.extract_strided_slice %20 {offsets = [0, 8, 0], sizes = [8, 16, 3], strides = [1, 1, 1]} : vector<16x24x3xbf16> to vector<8x16x3xbf16>
    %30 = vector.extract_strided_slice %20 {offsets = [1, 0, 0], sizes = [8, 16, 3], strides = [1, 1, 1]} : vector<16x24x3xbf16> to vector<8x16x3xbf16>
    %31 = vector.extract_strided_slice %20 {offsets = [1, 1, 0], sizes = [8, 16, 3], strides = [1, 1, 1]} : vector<16x24x3xbf16> to vector<8x16x3xbf16>
    %32 = vector.extract_strided_slice %20 {offsets = [1, 2, 0], sizes = [8, 16, 3], strides = [1, 1, 1]} : vector<16x24x3xbf16> to vector<8x16x3xbf16>
    %33 = vector.extract_strided_slice %20 {offsets = [1, 3, 0], sizes = [8, 16, 3], strides = [1, 1, 1]} : vector<16x24x3xbf16> to vector<8x16x3xbf16>
    %34 = vector.extract_strided_slice %20 {offsets = [1, 4, 0], sizes = [8, 16, 3], strides = [1, 1, 1]} : vector<16x24x3xbf16> to vector<8x16x3xbf16>
    %35 = vector.extract_strided_slice %20 {offsets = [1, 5, 0], sizes = [8, 16, 3], strides = [1, 1, 1]} : vector<16x24x3xbf16> to vector<8x16x3xbf16>
    %36 = vector.extract_strided_slice %20 {offsets = [1, 6, 0], sizes = [8, 16, 3], strides = [1, 1, 1]} : vector<16x24x3xbf16> to vector<8x16x3xbf16>
    %37 = vector.extract_strided_slice %20 {offsets = [1, 7, 0], sizes = [8, 16, 3], strides = [1, 1, 1]} : vector<16x24x3xbf16> to vector<8x16x3xbf16>
    %38 = vector.extract_strided_slice %20 {offsets = [1, 8, 0], sizes = [8, 16, 3], strides = [1, 1, 1]} : vector<16x24x3xbf16> to vector<8x16x3xbf16>
    %39 = vector.extract_strided_slice %20 {offsets = [2, 0, 0], sizes = [8, 16, 3], strides = [1, 1, 1]} : vector<16x24x3xbf16> to vector<8x16x3xbf16>
    %40 = vector.extract_strided_slice %20 {offsets = [2, 1, 0], sizes = [8, 16, 3], strides = [1, 1, 1]} : vector<16x24x3xbf16> to vector<8x16x3xbf16>
    %41 = vector.extract_strided_slice %20 {offsets = [2, 2, 0], sizes = [8, 16, 3], strides = [1, 1, 1]} : vector<16x24x3xbf16> to vector<8x16x3xbf16>
    %42 = vector.extract_strided_slice %20 {offsets = [2, 3, 0], sizes = [8, 16, 3], strides = [1, 1, 1]} : vector<16x24x3xbf16> to vector<8x16x3xbf16>
    %43 = vector.extract_strided_slice %20 {offsets = [2, 4, 0], sizes = [8, 16, 3], strides = [1, 1, 1]} : vector<16x24x3xbf16> to vector<8x16x3xbf16>
    %44 = vector.extract_strided_slice %20 {offsets = [2, 5, 0], sizes = [8, 16, 3], strides = [1, 1, 1]} : vector<16x24x3xbf16> to vector<8x16x3xbf16>
    %45 = vector.extract_strided_slice %20 {offsets = [2, 6, 0], sizes = [8, 16, 3], strides = [1, 1, 1]} : vector<16x24x3xbf16> to vector<8x16x3xbf16>
    %46 = vector.extract_strided_slice %20 {offsets = [2, 7, 0], sizes = [8, 16, 3], strides = [1, 1, 1]} : vector<16x24x3xbf16> to vector<8x16x3xbf16>
    %47 = vector.extract_strided_slice %20 {offsets = [2, 8, 0], sizes = [8, 16, 3], strides = [1, 1, 1]} : vector<16x24x3xbf16> to vector<8x16x3xbf16>
    %48 = vector.extract_strided_slice %20 {offsets = [3, 0, 0], sizes = [8, 16, 3], strides = [1, 1, 1]} : vector<16x24x3xbf16> to vector<8x16x3xbf16>
    %49 = vector.extract_strided_slice %20 {offsets = [3, 1, 0], sizes = [8, 16, 3], strides = [1, 1, 1]} : vector<16x24x3xbf16> to vector<8x16x3xbf16>
    %50 = vector.extract_strided_slice %20 {offsets = [3, 2, 0], sizes = [8, 16, 3], strides = [1, 1, 1]} : vector<16x24x3xbf16> to vector<8x16x3xbf16>
    %51 = vector.extract_strided_slice %20 {offsets = [3, 3, 0], sizes = [8, 16, 3], strides = [1, 1, 1]} : vector<16x24x3xbf16> to vector<8x16x3xbf16>
    %52 = vector.extract_strided_slice %20 {offsets = [3, 4, 0], sizes = [8, 16, 3], strides = [1, 1, 1]} : vector<16x24x3xbf16> to vector<8x16x3xbf16>
    %53 = vector.extract_strided_slice %20 {offsets = [3, 5, 0], sizes = [8, 16, 3], strides = [1, 1, 1]} : vector<16x24x3xbf16> to vector<8x16x3xbf16>
    %54 = vector.extract_strided_slice %20 {offsets = [3, 6, 0], sizes = [8, 16, 3], strides = [1, 1, 1]} : vector<16x24x3xbf16> to vector<8x16x3xbf16>
    %55 = vector.extract_strided_slice %20 {offsets = [3, 7, 0], sizes = [8, 16, 3], strides = [1, 1, 1]} : vector<16x24x3xbf16> to vector<8x16x3xbf16>
    %56 = vector.extract_strided_slice %20 {offsets = [3, 8, 0], sizes = [8, 16, 3], strides = [1, 1, 1]} : vector<16x24x3xbf16> to vector<8x16x3xbf16>
    %57 = vector.extract_strided_slice %20 {offsets = [4, 0, 0], sizes = [8, 16, 3], strides = [1, 1, 1]} : vector<16x24x3xbf16> to vector<8x16x3xbf16>
    %58 = vector.extract_strided_slice %20 {offsets = [4, 1, 0], sizes = [8, 16, 3], strides = [1, 1, 1]} : vector<16x24x3xbf16> to vector<8x16x3xbf16>
    %59 = vector.extract_strided_slice %20 {offsets = [4, 2, 0], sizes = [8, 16, 3], strides = [1, 1, 1]} : vector<16x24x3xbf16> to vector<8x16x3xbf16>
    %60 = vector.extract_strided_slice %20 {offsets = [4, 3, 0], sizes = [8, 16, 3], strides = [1, 1, 1]} : vector<16x24x3xbf16> to vector<8x16x3xbf16>
    %61 = vector.extract_strided_slice %20 {offsets = [4, 4, 0], sizes = [8, 16, 3], strides = [1, 1, 1]} : vector<16x24x3xbf16> to vector<8x16x3xbf16>
    %62 = vector.extract_strided_slice %20 {offsets = [4, 5, 0], sizes = [8, 16, 3], strides = [1, 1, 1]} : vector<16x24x3xbf16> to vector<8x16x3xbf16>
    %63 = vector.extract_strided_slice %20 {offsets = [4, 6, 0], sizes = [8, 16, 3], strides = [1, 1, 1]} : vector<16x24x3xbf16> to vector<8x16x3xbf16>
    %64 = vector.extract_strided_slice %20 {offsets = [4, 7, 0], sizes = [8, 16, 3], strides = [1, 1, 1]} : vector<16x24x3xbf16> to vector<8x16x3xbf16>
    %65 = vector.extract_strided_slice %20 {offsets = [4, 8, 0], sizes = [8, 16, 3], strides = [1, 1, 1]} : vector<16x24x3xbf16> to vector<8x16x3xbf16>
    %66 = vector.extract_strided_slice %20 {offsets = [5, 0, 0], sizes = [8, 16, 3], strides = [1, 1, 1]} : vector<16x24x3xbf16> to vector<8x16x3xbf16>
    %67 = vector.extract_strided_slice %20 {offsets = [5, 1, 0], sizes = [8, 16, 3], strides = [1, 1, 1]} : vector<16x24x3xbf16> to vector<8x16x3xbf16>
    %68 = vector.extract_strided_slice %20 {offsets = [5, 2, 0], sizes = [8, 16, 3], strides = [1, 1, 1]} : vector<16x24x3xbf16> to vector<8x16x3xbf16>
    %69 = vector.extract_strided_slice %20 {offsets = [5, 3, 0], sizes = [8, 16, 3], strides = [1, 1, 1]} : vector<16x24x3xbf16> to vector<8x16x3xbf16>
    %70 = vector.extract_strided_slice %20 {offsets = [5, 4, 0], sizes = [8, 16, 3], strides = [1, 1, 1]} : vector<16x24x3xbf16> to vector<8x16x3xbf16>
    %71 = vector.extract_strided_slice %20 {offsets = [5, 5, 0], sizes = [8, 16, 3], strides = [1, 1, 1]} : vector<16x24x3xbf16> to vector<8x16x3xbf16>
    %72 = vector.extract_strided_slice %20 {offsets = [5, 6, 0], sizes = [8, 16, 3], strides = [1, 1, 1]} : vector<16x24x3xbf16> to vector<8x16x3xbf16>
    %73 = vector.extract_strided_slice %20 {offsets = [5, 7, 0], sizes = [8, 16, 3], strides = [1, 1, 1]} : vector<16x24x3xbf16> to vector<8x16x3xbf16>
    %74 = vector.extract_strided_slice %20 {offsets = [5, 8, 0], sizes = [8, 16, 3], strides = [1, 1, 1]} : vector<16x24x3xbf16> to vector<8x16x3xbf16>
    %75 = vector.extract_strided_slice %20 {offsets = [6, 0, 0], sizes = [8, 16, 3], strides = [1, 1, 1]} : vector<16x24x3xbf16> to vector<8x16x3xbf16>
    %76 = vector.extract_strided_slice %20 {offsets = [6, 1, 0], sizes = [8, 16, 3], strides = [1, 1, 1]} : vector<16x24x3xbf16> to vector<8x16x3xbf16>
    %77 = vector.extract_strided_slice %20 {offsets = [6, 2, 0], sizes = [8, 16, 3], strides = [1, 1, 1]} : vector<16x24x3xbf16> to vector<8x16x3xbf16>
    %78 = vector.extract_strided_slice %20 {offsets = [6, 3, 0], sizes = [8, 16, 3], strides = [1, 1, 1]} : vector<16x24x3xbf16> to vector<8x16x3xbf16>
    %79 = vector.extract_strided_slice %20 {offsets = [6, 4, 0], sizes = [8, 16, 3], strides = [1, 1, 1]} : vector<16x24x3xbf16> to vector<8x16x3xbf16>
    %80 = vector.extract_strided_slice %20 {offsets = [6, 5, 0], sizes = [8, 16, 3], strides = [1, 1, 1]} : vector<16x24x3xbf16> to vector<8x16x3xbf16>
    %81 = vector.extract_strided_slice %20 {offsets = [6, 6, 0], sizes = [8, 16, 3], strides = [1, 1, 1]} : vector<16x24x3xbf16> to vector<8x16x3xbf16>
    %82 = vector.extract_strided_slice %20 {offsets = [6, 7, 0], sizes = [8, 16, 3], strides = [1, 1, 1]} : vector<16x24x3xbf16> to vector<8x16x3xbf16>
    %83 = vector.extract_strided_slice %20 {offsets = [6, 8, 0], sizes = [8, 16, 3], strides = [1, 1, 1]} : vector<16x24x3xbf16> to vector<8x16x3xbf16>
    %84 = vector.extract_strided_slice %20 {offsets = [7, 0, 0], sizes = [8, 16, 3], strides = [1, 1, 1]} : vector<16x24x3xbf16> to vector<8x16x3xbf16>
    %85 = vector.extract_strided_slice %20 {offsets = [7, 1, 0], sizes = [8, 16, 3], strides = [1, 1, 1]} : vector<16x24x3xbf16> to vector<8x16x3xbf16>
    %86 = vector.extract_strided_slice %20 {offsets = [7, 2, 0], sizes = [8, 16, 3], strides = [1, 1, 1]} : vector<16x24x3xbf16> to vector<8x16x3xbf16>
    %87 = vector.extract_strided_slice %20 {offsets = [7, 3, 0], sizes = [8, 16, 3], strides = [1, 1, 1]} : vector<16x24x3xbf16> to vector<8x16x3xbf16>
    %88 = vector.extract_strided_slice %20 {offsets = [7, 4, 0], sizes = [8, 16, 3], strides = [1, 1, 1]} : vector<16x24x3xbf16> to vector<8x16x3xbf16>
    %89 = vector.extract_strided_slice %20 {offsets = [7, 5, 0], sizes = [8, 16, 3], strides = [1, 1, 1]} : vector<16x24x3xbf16> to vector<8x16x3xbf16>
    %90 = vector.extract_strided_slice %20 {offsets = [7, 6, 0], sizes = [8, 16, 3], strides = [1, 1, 1]} : vector<16x24x3xbf16> to vector<8x16x3xbf16>
    %91 = vector.extract_strided_slice %20 {offsets = [7, 7, 0], sizes = [8, 16, 3], strides = [1, 1, 1]} : vector<16x24x3xbf16> to vector<8x16x3xbf16>
    %92 = vector.extract_strided_slice %20 {offsets = [7, 8, 0], sizes = [8, 16, 3], strides = [1, 1, 1]} : vector<16x24x3xbf16> to vector<8x16x3xbf16>
    %93 = vector.extract_strided_slice %20 {offsets = [8, 0, 0], sizes = [8, 16, 3], strides = [1, 1, 1]} : vector<16x24x3xbf16> to vector<8x16x3xbf16>
    %94 = vector.extract_strided_slice %20 {offsets = [8, 1, 0], sizes = [8, 16, 3], strides = [1, 1, 1]} : vector<16x24x3xbf16> to vector<8x16x3xbf16>
    %95 = vector.extract_strided_slice %20 {offsets = [8, 2, 0], sizes = [8, 16, 3], strides = [1, 1, 1]} : vector<16x24x3xbf16> to vector<8x16x3xbf16>
    %96 = vector.extract_strided_slice %20 {offsets = [8, 3, 0], sizes = [8, 16, 3], strides = [1, 1, 1]} : vector<16x24x3xbf16> to vector<8x16x3xbf16>
    %97 = vector.extract_strided_slice %20 {offsets = [8, 4, 0], sizes = [8, 16, 3], strides = [1, 1, 1]} : vector<16x24x3xbf16> to vector<8x16x3xbf16>
    %98 = vector.extract_strided_slice %20 {offsets = [8, 5, 0], sizes = [8, 16, 3], strides = [1, 1, 1]} : vector<16x24x3xbf16> to vector<8x16x3xbf16>
    %99 = vector.extract_strided_slice %20 {offsets = [8, 6, 0], sizes = [8, 16, 3], strides = [1, 1, 1]} : vector<16x24x3xbf16> to vector<8x16x3xbf16>
    %100 = vector.extract_strided_slice %20 {offsets = [8, 7, 0], sizes = [8, 16, 3], strides = [1, 1, 1]} : vector<16x24x3xbf16> to vector<8x16x3xbf16>
    %101 = vector.extract_strided_slice %20 {offsets = [8, 8, 0], sizes = [8, 16, 3], strides = [1, 1, 1]} : vector<16x24x3xbf16> to vector<8x16x3xbf16>
    %102 = tpu.concatenate %21, %22, %23, %24, %25, %26, %27, %28, %29, %30, %31, %32, %33, %34, %35, %36 in 2 : vector<8x16x3xbf16>, vector<8x16x3xbf16>, vector<8x16x3xbf16>, vector<8x16x3xbf16>, vector<8x16x3xbf16>, vector<8x16x3xbf16>, vector<8x16x3xbf16>, vector<8x16x3xbf16>, vector<8x16x3xbf16>, vector<8x16x3xbf16>, vector<8x16x3xbf16>, vector<8x16x3xbf16>, vector<8x16x3xbf16>, vector<8x16x3xbf16>, vector<8x16x3xbf16>, vector<8x16x3xbf16> -> vector<8x16x48xbf16>
    %103 = tpu.concatenate %37, %38, %39, %40, %41, %42, %43, %44, %45, %46, %47, %48, %49, %50, %51, %52 in 2 : vector<8x16x3xbf16>, vector<8x16x3xbf16>, vector<8x16x3xbf16>, vector<8x16x3xbf16>, vector<8x16x3xbf16>, vector<8x16x3xbf16>, vector<8x16x3xbf16>, vector<8x16x3xbf16>, vector<8x16x3xbf16>, vector<8x16x3xbf16>, vector<8x16x3xbf16>, vector<8x16x3xbf16>, vector<8x16x3xbf16>, vector<8x16x3xbf16>, vector<8x16x3xbf16>, vector<8x16x3xbf16> -> vector<8x16x48xbf16>
    %104 = tpu.concatenate %53, %54, %55, %56, %57, %58, %59, %60, %61, %62, %63, %64, %65, %66, %67, %68 in 2 : vector<8x16x3xbf16>, vector<8x16x3xbf16>, vector<8x16x3xbf16>, vector<8x16x3xbf16>, vector<8x16x3xbf16>, vector<8x16x3xbf16>, vector<8x16x3xbf16>, vector<8x16x3xbf16>, vector<8x16x3xbf16>, vector<8x16x3xbf16>, vector<8x16x3xbf16>, vector<8x16x3xbf16>, vector<8x16x3xbf16>, vector<8x16x3xbf16>, vector<8x16x3xbf16>, vector<8x16x3xbf16> -> vector<8x16x48xbf16>
    %105 = tpu.concatenate %69, %70, %71, %72, %73, %74, %75, %76, %77, %78, %79, %80, %81, %82, %83, %84 in 2 : vector<8x16x3xbf16>, vector<8x16x3xbf16>, vector<8x16x3xbf16>, vector<8x16x3xbf16>, vector<8x16x3xbf16>, vector<8x16x3xbf16>, vector<8x16x3xbf16>, vector<8x16x3xbf16>, vector<8x16x3xbf16>, vector<8x16x3xbf16>, vector<8x16x3xbf16>, vector<8x16x3xbf16>, vector<8x16x3xbf16>, vector<8x16x3xbf16>, vector<8x16x3xbf16>, vector<8x16x3xbf16> -> vector<8x16x48xbf16>
    %106 = tpu.concatenate %85, %86, %87, %88, %89, %90, %91, %92, %93, %94, %95, %96, %97, %98, %99, %100 in 2 : vector<8x16x3xbf16>, vector<8x16x3xbf16>, vector<8x16x3xbf16>, vector<8x16x3xbf16>, vector<8x16x3xbf16>, vector<8x16x3xbf16>, vector<8x16x3xbf16>, vector<8x16x3xbf16>, vector<8x16x3xbf16>, vector<8x16x3xbf16>, vector<8x16x3xbf16>, vector<8x16x3xbf16>, vector<8x16x3xbf16>, vector<8x16x3xbf16>, vector<8x16x3xbf16>, vector<8x16x3xbf16> -> vector<8x16x48xbf16>
    %107 = tpu.concatenate %102, %103, %104, %105, %106, %101 in 2 : vector<8x16x48xbf16>, vector<8x16x48xbf16>, vector<8x16x48xbf16>, vector<8x16x48xbf16>, vector<8x16x48xbf16>, vector<8x16x3xbf16> -> vector<8x16x243xbf16>
    %108 = vector.shape_cast %107 : vector<8x16x243xbf16> to vector<128x243xbf16>
    %c0_11 = arith.constant 0 : index
    %c0_12 = arith.constant 0 : index
    %c0_13 = arith.constant 0 : index
    %109 = vector.load %arg5[%c0_11, %c0_12, %c0_13] : memref<1x243x64xbf16, #tpu.memory_space<vmem>>, vector<1x243x64xbf16>
    %110 = vector.shape_cast %109 : vector<1x243x64xbf16> to vector<243x64xbf16>
    %cst_14 = arith.constant dense<0.000000e+00> : vector<128x64xf32>
    %111 = tpu.matmul %108, %110, %cst_14 {dimension_numbers = #tpu.dot_dimension_numbers<[1], [0], [0], [1], [0, 0, 1, 1], [], []>} : vector<128x243xbf16>, vector<243x64xbf16>, vector<128x64xf32> -> vector<128x64xf32>
    %c0_15 = arith.constant 0 : index
    %c0_16 = arith.constant 0 : index
    %112 = vector.load %arg6[%c0_15, %c0_16] : memref<1x64xf32, #tpu.memory_space<vmem>>, vector<1x64xf32>
    %113 = vector.broadcast %112 : vector<1x64xf32> to vector<128x64xf32>
    %114 = arith.addf %111, %113 : vector<128x64xf32>
    %c0_17 = arith.constant 0 : index
    %c0_18 = arith.constant 0 : index
    %115 = memref.load %arg7[%c0_17, %c0_18] : memref<1x1xf32, #tpu.memory_space<smem>>
    %cst_19 = arith.constant 0.000000e+00 : f32
    %116 = vector.broadcast %cst_19 : f32 to vector<128x64xf32>
    %117 = arith.cmpf ogt, %114, %116 : vector<128x64xf32>
    %118 = vector.broadcast %115 : f32 to vector<128x64xf32>
    %119 = arith.mulf %118, %114 : vector<128x64xf32>
    %120 = arith.select %117, %114, %119 : vector<128x64xi1>, vector<128x64xf32>
    %121 = vector.shape_cast %120 : vector<128x64xf32> to vector<8x16x64xf32>
    %122 = arith.truncf %121 : vector<8x16x64xf32> to vector<8x16x64xbf16>
    %c0_20 = arith.constant 0 : index
    %c0_21 = arith.constant 0 : index
    %c0_22 = arith.constant 0 : index
    %c0_23 = arith.constant 0 : index
    %123 = vector.load %arg8[%c0_20, %c0_21, %c0_22, %c0_23] : memref<1x8x16x64xbf16, #tpu.memory_space<vmem>>, vector<1x8x16x64xbf16>
    %124 = vector.shape_cast %123 : vector<1x8x16x64xbf16> to vector<8x16x64xbf16>
    %125 = vector.shape_cast %122 : vector<8x16x64xbf16> to vector<1x8x16x64xbf16>
    tpu.vector_store %arg8[%c0_20, %c0_21, %c0_22, %c0_23], %125 {strides = array<i32>} : memref<1x8x16x64xbf16, #tpu.memory_space<vmem>>, vector<1x8x16x64xbf16>,
    return
  }
  func.func @transform_0(%arg0: i32, %arg1: i32) -> (i32, i32, i32, i32) {
    %c2_i32 = arith.constant 2 : i32
    %0 = arith.muli %arg1, %c2_i32 : i32
    %c1_i32 = arith.constant 1 : i32
    %1 = arith.subi %0, %c1_i32 : i32
    %c0_i32 = arith.constant 0 : i32
    %2 = arith.maxsi %1, %c0_i32 : i32
    %c0_i32_0 = arith.constant 0 : i32
    %c0_i32_1 = arith.constant 0 : i32
    %c0_i32_2 = arith.constant 0 : i32
    return %arg0, %2, %c0_i32_0, %c0_i32_1 : i32, i32, i32, i32
  }
  func.func @transform_1(%arg0: i32, %arg1: i32) -> (i32, i32, i32, i32) {
    %c0_i32 = arith.constant 0 : i32
    %c0_i32_0 = arith.constant 0 : i32
    %c0_i32_1 = arith.constant 0 : i32
    return %arg0, %arg1, %c0_i32, %c0_i32_0 : i32, i32, i32, i32
  }
  func.func @transform_2(%arg0: i32, %arg1: i32) -> (i32, i32, i32, i32) {
    %c1_i32 = arith.constant 1 : i32
    %0 = arith.addi %arg1, %c1_i32 : i32
    %c2_i32 = arith.constant 2 : i32
    %1 = arith.muli %0, %c2_i32 : i32
    %c3_i32 = arith.constant 3 : i32
    %2 = arith.minsi %1, %c3_i32 : i32
    %c0_i32 = arith.constant 0 : i32
    %c0_i32_0 = arith.constant 0 : i32
    %c0_i32_1 = arith.constant 0 : i32
    return %arg0, %2, %c0_i32, %c0_i32_0 : i32, i32, i32, i32
  }
  func.func @transform_3(%arg0: i32, %arg1: i32) -> (i32, i32, i32) {
    %c0_i32 = arith.constant 0 : i32
    %c0_i32_0 = arith.constant 0 : i32
    %c0_i32_1 = arith.constant 0 : i32
    %c0_i32_2 = arith.constant 0 : i32
    return %c0_i32, %c0_i32_0, %c0_i32_1 : i32, i32, i32
  }
  func.func @transform_4(%arg0: i32, %arg1: i32) -> (i32, i32) {
    %c0_i32 = arith.constant 0 : i32
    %c0_i32_0 = arith.constant 0 : i32
    %c0_i32_1 = arith.constant 0 : i32
    return %c0_i32, %c0_i32_0 : i32, i32
  }
  func.func @transform_5(%arg0: i32, %arg1: i32) -> (i32, i32) {
    %c0_i32 = arith.constant 0 : i32
    %c0_i32_0 = arith.constant 0 : i32
    %c0_i32_1 = arith.constant 0 : i32
    return %c0_i32, %c0_i32_0 : i32, i32
  }
  func.func @transform_6(%arg0: i32, %arg1: i32) -> (i32, i32, i32, i32) {
    %c0_i32 = arith.constant 0 : i32
    %c0_i32_0 = arith.constant 0 : i32
    %c0_i32_1 = arith.constant 0 : i32
    return %arg0, %arg1, %c0_i32, %c0_i32_0 : i32, i32, i32, i32
  }
}

</mosaic_0001>

<llo_original>
// kernel: tpu_custom_call.1
$region0: #{tpu_custom_call.1}
  #allocation0 [shape = 'u32[]', space=smem, size = 0x4, offset = 0x4, fixed_abs, tag = 'smem constant byte address 0x4 - core index']
  #allocation1 [shape = 'u32[144,128]{1,0:T(1,128)}', space=vmem, size = 0x12000, scoped, tag = 'internal scratch']
  #allocation2 [shape = 'f32[1,1]{1,0:T(1,128)S(6)}', space=smem, size = 0x200, scoped, tag = 'scoped memory for tpu_custom_call.1']
  %s0 = inlined_call_operand.vmem [shape: bf16[2,16,16,3], index: 0, kind: input, shape index: {}]
  %s1 = inlined_call_operand.vmem [shape: bf16[2,16,16,3], index: 1, kind: input, shape index: {}]
  %s2 = inlined_call_operand.vmem [shape: bf16[2,16,16,3], index: 2, kind: input, shape index: {}]
  %s3 = inlined_call_operand.vmem [shape: bf16[1,243,64], index: 3, kind: input, shape index: {}]
  %s4 = inlined_call_operand.vmem [shape: f32[1,64], index: 4, kind: input, shape index: {}]
  %s5 = inlined_call_operand.<no memory space> [shape: f32[1,1], index: 5, kind: input, shape index: {}]
  %s6 = inlined_call_operand.hbm [shape: bf16[2,16,16,64], index: 6, kind: output, shape index: {}]
  %s7 = sld [smem:[#allocation0]]
  $region57: #{tpu_custom_call.1} parent=0
    _
  %s9 = ssub.s32 1, %s7
  %s10 = scalar_select 0, %s9, %s7
  %11 = sst [smem:[#allocation2]] %s5
  $region1: #{tpu_custom_call.1} parent=0
    #allocation3 [shape = 'u8[65536]{0}', space=vmem, size = 0x10000, scoped, tag = 'output window, operand 0']
    #allocation4 [shape = 's32[2]{0}', space=sflag, size = 0x8, scoped, tag = 'scoped memory for tpu_custom_call.1']
    %12 = vsyncpa [#allocation4], 0
    %s13 = scalar_lea.sflag [#allocation4], 1
    %14 = vsyncpa %s13, 0
    loop: start=0, step=1, limit=6
    $region2: #{tpu_custom_call.1} parent=1 // loop_pre_header
      _
    $region3: #{tpu_custom_call.1} parent=1 // loop_header
      %s16 = sphi 0, %s20
      %p17 = scmp.ge.s32.totalorder %s16, 6
      %s23 = sphi 0, %s35
      %s24 = sphi 0, %s31
      %s25 = sphi 0, %s23
      %s26 = sphi 0, %s24
      %s27 = sphi 0, %s25
      %s28 = sphi 0, %s26
      %s48 = sphi 0, %s50
      %s51 = sphi 0, %s48
      %s52 = sphi 0, %s51
      %s68 = sphi 0, %s52
      %s76 = sphi 0, %s78
      %s79 = sphi 0, %s76
      %s80 = sphi 0, %s79
      %s96 = sphi 0, %s80
      %s112 = sphi 0, %s114
      %s115 = sphi 0, %s112
      %s116 = sphi 0, %s115
      %s132 = sphi 0, %s116
      %s136 = sphi 0, %s136
      %s138 = sphi 0, %s136
      %s139 = sphi 0, %s138
      %s153 = sphi 0, %s139
      %s157 = sphi 0, %s157
      %s159 = sphi 0, %s157
      %s160 = sphi 0, %s159
      %s174 = sphi 0, %s160
      %s178 = sphi 0, %s178
      %s180 = sphi 0, %s178
      %s181 = sphi 0, %s180
      %s195 = sphi 0, %s181
      %s203 = sphi 0, %s205
      %s206 = sphi 0, %s203
      %s207 = sphi 0, %s206
      %s223 = sphi 0, %s207
    $region4: #{tpu_custom_call.1} parent=1 // loop_header_branch
      %19 = sbr.rel (%p17) target = $region8
    $region5: #{tpu_custom_call.1} parent=1 // loop_body
      %s21 = ssub.s32 %s16, 1
      %s22 = ssub.s32 %s16, 2
      %s29 = sadd.s32 1, %s24
      %p30 = scmp.ge.s32.totalorder %s29, 2
      %s31 = scalar_select %p30, 0, %s29
      %s32 = sadd.s32 1, %s23
      %s33 = scalar_select %p30, %s32, %s23
      %p34 = scmp.ge.s32.totalorder %s33, 2
      %s35 = scalar_select %p34, 0, %s33
      %s36 = smul.u32 %s24, 2
      %s37 = ssub.s32 %s36, 1
      %p38 = scmp.gt.s32.totalorder %s37, 0
      %s39 = scalar_select %p38, %s37, 0
      %s40 = smul.u32 %s31, 2
      %s41 = ssub.s32 %s40, 1
      %p42 = scmp.gt.s32.totalorder %s41, 0
      %s43 = scalar_select %p42, %s41, 0
      %s44 = ssub.s32 %s23, %s35
      %s45 = ssub.s32 %s39, %s43
      %s46 = sor.u32 %s44, %s45
      %p47 = scmp.eq.s32.totalorder %s46, 0
      %s49 = sadd.s32 %s48, 1
      %s50 = scalar_select %p47, %s48, %s49
      %p53 = pneg %p47
      %p54 = scmp.eq.s32.totalorder %s16, 3
      %p55 = por %p53, %p54
      %p56 = scmp.ne.s32.totalorder %s48, %s51
      %p57 = scmp.eq.s32.totalorder %s16, 0
      %p58 = por %p56, %p57
      %p59 = scmp.ne.s32.totalorder %s48, %s51
      %p60 = scmp.eq.s32.totalorder %s21, 3
      %p61 = por %p59, %p60
      %p62 = scmp.ne.s32.totalorder %s51, %s52
      %p63 = scmp.eq.s32.totalorder %s21, 0
      %p64 = por %p62, %p63
      %p65 = scmp.ne.s32.totalorder %s51, %s52
      %p66 = scmp.eq.s32.totalorder %s22, 3
      %p67 = por %p65, %p66
      %p69 = scmp.ne.s32.totalorder %s52, %s68
      %p70 = scmp.eq.s32.totalorder %s22, 0
      %p71 = por %p69, %p70
      %s72 = ssub.s32 %s23, %s35
      %s73 = ssub.s32 %s24, %s31
      %s74 = sor.u32 %s72, %s73
      %p75 = scmp.eq.s32.totalorder %s74, 0
      %s77 = sadd.s32 %s76, 1
      %s78 = scalar_select %p75, %s76, %s77
      %p81 = pneg %p75
      %p82 = scmp.eq.s32.totalorder %s16, 3
      %p83 = por %p81, %p82
      %p84 = scmp.ne.s32.totalorder %s76, %s79
      %p85 = scmp.eq.s32.totalorder %s16, 0
      %p86 = por %p84, %p85
      %p87 = scmp.ne.s32.totalorder %s76, %s79
      %p88 = scmp.eq.s32.totalorder %s21, 3
      %p89 = por %p87, %p88
      %p90 = scmp.ne.s32.totalorder %s79, %s80
      %p91 = scmp.eq.s32.totalorder %s21, 0
      %p92 = por %p90, %p91
      %p93 = scmp.ne.s32.totalorder %s79, %s80
      %p94 = scmp.eq.s32.totalorder %s22, 3
      %p95 = por %p93, %p94
      %p97 = scmp.ne.s32.totalorder %s80, %s96
      %p98 = scmp.eq.s32.totalorder %s22, 0
      %p99 = por %p97, %p98
      %s100 = sadd.s32 %s24, 1
      %s101 = smul.u32 %s100, 2
      %p102 = scmp.lt.s32.totalorder %s101, 3
      %s103 = scalar_select %p102, %s101, 3
      %s104 = sadd.s32 %s31, 1
      %s105 = smul.u32 %s104, 2
      %p106 = scmp.lt.s32.totalorder %s105, 3
      %s107 = scalar_select %p106, %s105, 3
      %s108 = ssub.s32 %s23, %s35
      %s109 = ssub.s32 %s103, %s107
      %s110 = sor.u32 %s108, %s109
      %p111 = scmp.eq.s32.totalorder %s110, 0
      %s113 = sadd.s32 %s112, 1
      %s114 = scalar_select %p111, %s112, %s113
      %p117 = pneg %p111
      %p118 = scmp.eq.s32.totalorder %s16, 3
      %p119 = por %p117, %p118
      %p120 = scmp.ne.s32.totalorder %s112, %s115
      %p121 = scmp.eq.s32.totalorder %s16, 0
      %p122 = por %p120, %p121
      %p123 = scmp.ne.s32.totalorder %s112, %s115
      %p124 = scmp.eq.s32.totalorder %s21, 3
      %p125 = por %p123, %p124
      %p126 = scmp.ne.s32.totalorder %s115, %s116
      %p127 = scmp.eq.s32.totalorder %s21, 0
      %p128 = por %p126, %p127
      %p129 = scmp.ne.s32.totalorder %s115, %s116
      %p130 = scmp.eq.s32.totalorder %s22, 3
      %p131 = por %p129, %p130
      %p133 = scmp.ne.s32.totalorder %s116, %s132
      %p134 = scmp.eq.s32.totalorder %s22, 0
      %p135 = por %p133, %p134
      %s137 = sadd.s32 %s136, 1
      %p140 = scmp.eq.s32.totalorder %s16, 3
      %p141 = scmp.ne.s32.totalorder %s136, %s138
      %p142 = scmp.eq.s32.totalorder %s16, 0
      %p143 = por %p141, %p142
      %p144 = scmp.ne.s32.totalorder %s136, %s138
      %p145 = scmp.eq.s32.totalorder %s21, 3
      %p146 = por %p144, %p145
      %p147 = scmp.ne.s32.totalorder %s138, %s139
      %p148 = scmp.eq.s32.totalorder %s21, 0
      %p149 = por %p147, %p148
      %p150 = scmp.ne.s32.totalorder %s138, %s139
      %p151 = scmp.eq.s32.totalorder %s22, 3
      %p152 = por %p150, %p151
      %p154 = scmp.ne.s32.totalorder %s139, %s153
      %p155 = scmp.eq.s32.totalorder %s22, 0
      %p156 = por %p154, %p155
      %s158 = sadd.s32 %s157, 1
      %p161 = scmp.eq.s32.totalorder %s16, 3
      %p162 = scmp.ne.s32.totalorder %s157, %s159
      %p163 = scmp.eq.s32.totalorder %s16, 0
      %p164 = por %p162, %p163
      %p165 = scmp.ne.s32.totalorder %s157, %s159
      %p166 = scmp.eq.s32.totalorder %s21, 3
      %p167 = por %p165, %p166
      %p168 = scmp.ne.s32.totalorder %s159, %s160
      %p169 = scmp.eq.s32.totalorder %s21, 0
      %p170 = por %p168, %p169
      %p171 = scmp.ne.s32.totalorder %s159, %s160
      %p172 = scmp.eq.s32.totalorder %s22, 3
      %p173 = por %p171, %p172
      %p175 = scmp.ne.s32.totalorder %s160, %s174
      %p176 = scmp.eq.s32.totalorder %s22, 0
      %p177 = por %p175, %p176
      %s179 = sadd.s32 %s178, 1
      %p182 = scmp.eq.s32.totalorder %s16, 3
      %p183 = scmp.ne.s32.totalorder %s178, %s180
      %p184 = scmp.eq.s32.totalorder %s16, 0
      %p185 = por %p183, %p184
      %p186 = scmp.ne.s32.totalorder %s178, %s180
      %p187 = scmp.eq.s32.totalorder %s21, 3
      %p188 = por %p186, %p187
      %p189 = scmp.ne.s32.totalorder %s180, %s181
      %p190 = scmp.eq.s32.totalorder %s21, 0
      %p191 = por %p189, %p190
      %p192 = scmp.ne.s32.totalorder %s180, %s181
      %p193 = scmp.eq.s32.totalorder %s22, 3
      %p194 = por %p192, %p193
      %p196 = scmp.ne.s32.totalorder %s181, %s195
      %p197 = scmp.eq.s32.totalorder %s22, 0
      %p198 = por %p196, %p197
      %s199 = ssub.s32 %s23, %s35
      %s200 = ssub.s32 %s24, %s31
      %s201 = sor.u32 %s199, %s200
      %p202 = scmp.eq.s32.totalorder %s201, 0
      %s204 = sadd.s32 %s203, 1
      %s205 = scalar_select %p202, %s203, %s204
      %p208 = pneg %p202
      %p209 = scmp.eq.s32.totalorder %s16, 3
      %p210 = por %p208, %p209
      %p211 = scmp.ne.s32.totalorder %s203, %s206
      %p212 = scmp.eq.s32.totalorder %s16, 0
      %p213 = por %p211, %p212
      %p214 = scmp.ne.s32.totalorder %s203, %s206
      %p215 = scmp.eq.s32.totalorder %s21, 3
      %p216 = por %p214, %p215
      %p217 = scmp.ne.s32.totalorder %s206, %s207
      %p218 = scmp.eq.s32.totalorder %s21, 0
      %p219 = por %p217, %p218
      %p220 = scmp.ne.s32.totalorder %s206, %s207
      %p221 = scmp.eq.s32.totalorder %s22, 3
      %p222 = por %p220, %p221
      %p224 = scmp.ne.s32.totalorder %s207, %s223
      %p225 = scmp.eq.s32.totalorder %s22, 0
      %p226 = por %p224, %p225
      %p227 = scmp.le.s32.totalorder 1, %s16
      %p228 = scmp.lt.s32.totalorder %s16, 5
      %p229 = pnand %p227, %p228
      %p230 = pneg %p229
      // Predicated region
      $region9: #{tpu_custom_call.1} parent=5 // pred_check
        _
      $region10: #{tpu_custom_call.1} parent=5 // pred_check_branch
        %232 = sbr.rel (%p229) target = $region12
      $region11: #{tpu_custom_call.1} parent=5 // pred_region
        %s233 = ssub.s32 %s16, 1
        // Predicated region
        $region13: #{tpu_custom_call.1} parent=11 // pred_check
          %p234 = pneg %p149
        $region14: #{tpu_custom_call.1} parent=11 // pred_check_branch
          %236 = sbr.rel (%p234) target = $region16
        $region15: #{tpu_custom_call.1} parent=11 // pred_region
          _
        $region16: #{tpu_custom_call.1} parent=11 // pred_fallthru
          _
        // Predicated region
        $region17: #{tpu_custom_call.1} parent=11 // pred_check
          %p237 = pneg %p170
        $region18: #{tpu_custom_call.1} parent=11 // pred_check_branch
          %239 = sbr.rel (%p237) target = $region20
        $region19: #{tpu_custom_call.1} parent=11 // pred_region
          _
        $region20: #{tpu_custom_call.1} parent=11 // pred_fallthru
          _
        // Predicated region
        $region21: #{tpu_custom_call.1} parent=11 // pred_check
          %p240 = pneg %p191
        $region22: #{tpu_custom_call.1} parent=11 // pred_check_branch
          %242 = sbr.rel (%p240) target = $region24
        $region23: #{tpu_custom_call.1} parent=11 // pred_region
          _
        $region24: #{tpu_custom_call.1} parent=11 // pred_fallthru
          _
      $region12: #{tpu_custom_call.1} parent=5 // pred_fallthru
        _
      %p243 = scmp.lt.s32.totalorder %s16, 4
      // Predicated region
      $region25: #{tpu_custom_call.1} parent=5 // pred_check
        %p244 = pneg %p243
      $region26: #{tpu_custom_call.1} parent=5 // pred_check_branch
        %246 = sbr.rel (%p244) target = $region28
      $region27: #{tpu_custom_call.1} parent=5 // pred_region
        // Predicated region
        $region29: #{tpu_custom_call.1} parent=27 // pred_check
          %p247 = pneg %p58
        $region30: #{tpu_custom_call.1} parent=27 // pred_check_branch
          %249 = sbr.rel (%p247) target = $region32
        $region31: #{tpu_custom_call.1} parent=27 // pred_region
          %s250 = smul.u32 %s24, 2
          %s251 = ssub.s32 %s250, 1
          %p252 = scmp.gt.s32.totalorder %s251, 0
          %s253 = scalar_select %p252, %s251, 0
          %s254 = smul.u32 4, %s253
          %p255 = scmp.lt.s32.totalorder %s23, 1
          %s256 = scalar_select %p255, %s23, 1
          %p257 = scmp.lt.s32.totalorder %s254, 15
          %s258 = scalar_select %p257, %s254, 15
          %s259 = smul.addr %s258, 2
          %s260 = smul.addr %s256, 32
          %s261 = sadd.s32 %s259, %s260
          %s262 = smul.addr %s261, 4
          %s263 = scalar_lea.vmem %s0, %s262
          %s264 = smul.u32 %s24, 2
          %s265 = ssub.s32 %s264, 1
          %p266 = scmp.gt.s32.totalorder %s265, 0
          %s267 = scalar_select %p266, %s265, 0
          %s268 = smul.u32 4, %s267
        $region32: #{tpu_custom_call.1} parent=27 // pred_fallthru
          _
        // Predicated region
        $region33: #{tpu_custom_call.1} parent=27 // pred_check
          %p269 = pneg %p86
        $region34: #{tpu_custom_call.1} parent=27 // pred_check_branch
          %271 = sbr.rel (%p269) target = $region36
        $region35: #{tpu_custom_call.1} parent=27 // pred_region
          %s272 = smul.u32 8, %s24
          %p273 = scmp.lt.s32.totalorder %s23, 1
          %s274 = scalar_select %p273, %s23, 1
          %p275 = scmp.lt.s32.totalorder %s272, 15
          %s276 = scalar_select %p275, %s272, 15
          %s277 = smul.addr %s276, 2
          %s278 = smul.addr %s274, 32
          %s279 = sadd.s32 %s277, %s278
          %s280 = smul.addr %s279, 4
          %s281 = scalar_lea.vmem %s1, %s280
          %s282 = smul.u32 8, %s24
        $region36: #{tpu_custom_call.1} parent=27 // pred_fallthru
          _
        // Predicated region
        $region37: #{tpu_custom_call.1} parent=27 // pred_check
          %p283 = pneg %p122
        $region38: #{tpu_custom_call.1} parent=27 // pred_check_branch
          %285 = sbr.rel (%p283) target = $region40
        $region39: #{tpu_custom_call.1} parent=27 // pred_region
          %s286 = sadd.s32 %s24, 1
          %s287 = smul.u32 %s286, 2
          %p288 = scmp.lt.s32.totalorder %s287, 3
          %s289 = scalar_select %p288, %s287, 3
          %s290 = smul.u32 4, %s289
          %p291 = scmp.lt.s32.totalorder %s23, 1
          %s292 = scalar_select %p291, %s23, 1
          %p293 = scmp.lt.s32.totalorder %s290, 15
          %s294 = scalar_select %p293, %s290, 15
          %s295 = smul.addr %s294, 2
          %s296 = smul.addr %s292, 32
          %s297 = sadd.s32 %s295, %s296
          %s298 = smul.addr %s297, 4
          %s299 = scalar_lea.vmem %s2, %s298
          %s300 = sadd.s32 %s24, 1
          %s301 = smul.u32 %s300, 2
          %p302 = scmp.lt.s32.totalorder %s301, 3
          %s303 = scalar_select %p302, %s301, 3
          %s304 = smul.u32 4, %s303
        $region40: #{tpu_custom_call.1} parent=27 // pred_fallthru
          _
      $region28: #{tpu_custom_call.1} parent=5 // pred_fallthru
        _
      %p305 = scmp.le.s32.totalorder 1, %s16
      %p306 = scmp.lt.s32.totalorder %s16, 5
      %p307 = pnand %p305, %p306
      %p308 = pneg %p307
      // Predicated region
      $region41: #{tpu_custom_call.1} parent=5 // pred_check
        _
      $region42: #{tpu_custom_call.1} parent=5 // pred_check_branch
        %310 = sbr.rel (%p307) target = $region44
      $region43: #{tpu_custom_call.1} parent=5 // pred_region
        %s311 = ssub.s32 %s16, 1
        %s312 = smul.u32 %s26, 2
        %s313 = ssub.s32 %s312, 1
        %p314 = scmp.gt.s32.totalorder %s313, 0
        %s315 = scalar_select %p314, %s313, 0
        %s316 = smul.u32 4, %s315
        %p317 = scmp.lt.s32.totalorder %s25, 1
        %s318 = scalar_select %p317, %s25, 1
        %p319 = scmp.lt.s32.totalorder %s316, 15
        %s320 = scalar_select %p319, %s316, 15
        %s321 = smul.addr %s320, 2
        %s322 = smul.addr %s318, 32
        %s323 = sadd.s32 %s321, %s322
        %s324 = smul.addr %s323, 4
        %s325 = scalar_lea.vmem %s0, %s324
        %p326 = pneg %p64
        %p327 = pneg %p61
        %s328 = smul.u32 8, %s26
        %p329 = scmp.lt.s32.totalorder %s25, 1
        %s330 = scalar_select %p329, %s25, 1
        %p331 = scmp.lt.s32.totalorder %s328, 15
        %s332 = scalar_select %p331, %s328, 15
        %s333 = smul.addr %s332, 2
        %s334 = smul.addr %s330, 32
        %s335 = sadd.s32 %s333, %s334
        %s336 = smul.addr %s335, 4
        %s337 = scalar_lea.vmem %s1, %s336
        %p338 = pneg %p92
        %p339 = pneg %p89
        %s340 = sadd.s32 %s26, 1
        %s341 = smul.u32 %s340, 2
        %p342 = scmp.lt.s32.totalorder %s341, 3
        %s343 = scalar_select %p342, %s341, 3
        %s344 = smul.u32 4, %s343
        %p345 = scmp.lt.s32.totalorder %s25, 1
        %s346 = scalar_select %p345, %s25, 1
        %p347 = scmp.lt.s32.totalorder %s344, 15
        %s348 = scalar_select %p347, %s344, 15
        %s349 = smul.addr %s348, 2
        %s350 = smul.addr %s346, 32
        %s351 = sadd.s32 %s349, %s350
        %s352 = smul.addr %s351, 4
        %s353 = scalar_lea.vmem %s2, %s352
        %p354 = pneg %p128
        %p355 = pneg %p125
        %p356 = pneg %p149
        %p357 = pneg %p146
        %p358 = pneg %p170
        %p359 = pneg %p167
        %p360 = pneg %p191
        %p361 = pneg %p188
        %p362 = pneg %p219
        %p363 = pneg %p216
        %s364 = sand.u32 %s206, 1
        %s365 = scalar_lea.sflag [#allocation4], %s364
        %s366 = sand.u32 %s206, 1
        %s367 = smul.addr %s366, 64
        %s368 = scalar_lea.vmem [#allocation3], %s367
        %s369 = smul.u32 %s26, 2
        %s370 = ssub.s32 %s369, 1
        %p371 = scmp.gt.s32.totalorder %s370, 0
        %s372 = scalar_select %p371, %s370, 0
        %s373 = smul.u32 4, %s372
        %p374 = scmp.lt.s32.totalorder %s25, 1
        %s375 = scalar_select %p374, %s25, 1
        %p376 = scmp.lt.s32.totalorder %s373, 15
        %s377 = scalar_select %p376, %s373, 15
        %s378 = smul.addr %s377, 2
        %s379 = smul.addr %s375, 32
        %s380 = sadd.s32 %s378, %s379
        %s381 = smul.addr %s380, 4
        %s382 = scalar_lea.vmem %s0, %s381
        %s383 = smul.u32 %s26, 2
        %s384 = ssub.s32 %s383, 1
        %p385 = scmp.gt.s32.totalorder %s384, 0
        %s386 = scalar_select %p385, %s384, 0
        %s387 = smul.u32 4, %s386
        %s388 = smul.u32 8, %s26
        %p389 = scmp.lt.s32.totalorder %s25, 1
        %s390 = scalar_select %p389, %s25, 1
        %p391 = scmp.lt.s32.totalorder %s388, 15
        %s392 = scalar_select %p391, %s388, 15
        %s393 = smul.addr %s392, 2
        %s394 = smul.addr %s390, 32
        %s395 = sadd.s32 %s393, %s394
        %s396 = smul.addr %s395, 4
        %s397 = scalar_lea.vmem %s1, %s396
        %s398 = smul.u32 8, %s26
        %s399 = sadd.s32 %s26, 1
        %s400 = smul.u32 %s399, 2
        %p401 = scmp.lt.s32.totalorder %s400, 3
        %s402 = scalar_select %p401, %s400, 3
        %s403 = smul.u32 4, %s402
        %p404 = scmp.lt.s32.totalorder %s25, 1
        %s405 = scalar_select %p404, %s25, 1
        %p406 = scmp.lt.s32.totalorder %s403, 15
        %s407 = scalar_select %p406, %s403, 15
        %s408 = smul.addr %s407, 2
        %s409 = smul.addr %s405, 32
        %s410 = sadd.s32 %s408, %s409
        %s411 = smul.addr %s410, 4
        %s412 = scalar_lea.vmem %s2, %s411
        %s413 = sadd.s32 %s26, 1
        %s414 = smul.u32 %s413, 2
        %p415 = scmp.lt.s32.totalorder %s414, 3
        %s416 = scalar_select %p415, %s414, 3
        %s417 = smul.u32 4, %s416
        %s418 = smul.u32 8, %s26
        %v420 = vld [vmem:[%s382] sm:$0xf]
        %v421 = vld [vmem:[%s382 + $0x4] sm:$0xf]
        %v422 = vld [vmem:[%s382 + $0x8] sm:$0xf]
        %v423 = vld [vmem:[%s382 + $0xc] sm:$0xf]
        %v424 = vld [vmem:[%s382 + $0x10] sm:$0xf]
        %v425 = vld [vmem:[%s382 + $0x14] sm:$0xf]
        %v426 = vld [vmem:[%s382 + $0x18] sm:$0xf]
        %v427 = vld [vmem:[%s382 + $0x1c] sm:$0xf]
        %v428 = vld [vmem:[%s397] sm:$0xf]
        %v429 = vld [vmem:[%s397 + $0x4] sm:$0xf]
        %v430 = vld [vmem:[%s397 + $0x8] sm:$0xf]
        %v431 = vld [vmem:[%s397 + $0xc] sm:$0xf]
        %v432 = vld [vmem:[%s397 + $0x10] sm:$0xf]
        %v433 = vld [vmem:[%s397 + $0x14] sm:$0xf]
        %v434 = vld [vmem:[%s397 + $0x18] sm:$0xf]
        %v435 = vld [vmem:[%s397 + $0x1c] sm:$0xf]
        %v436 = vld [vmem:[%s397 + $0x20] sm:$0xf]
        %v437 = vld [vmem:[%s397 + $0x24] sm:$0xf]
        %v438 = vld [vmem:[%s397 + $0x28] sm:$0xf]
        %v439 = vld [vmem:[%s397 + $0x2c] sm:$0xf]
        %v440 = vld [vmem:[%s397 + $0x30] sm:$0xf]
        %v441 = vld [vmem:[%s397 + $0x34] sm:$0xf]
        %v442 = vld [vmem:[%s397 + $0x38] sm:$0xf]
        %v443 = vld [vmem:[%s397 + $0x3c] sm:$0xf]
        %v444 = vld [vmem:[%s412] sm:$0xf]
        %v445 = vld [vmem:[%s412 + $0x4] sm:$0xf]
        %v446 = vld [vmem:[%s412 + $0x8] sm:$0xf]
        %v447 = vld [vmem:[%s412 + $0xc] sm:$0xf]
        %v448 = vld [vmem:[%s412 + $0x10] sm:$0xf]
        %v449 = vld [vmem:[%s412 + $0x14] sm:$0xf]
        %v450 = vld [vmem:[%s412 + $0x18] sm:$0xf]
        %v451 = vld [vmem:[%s412 + $0x1c] sm:$0xf]
        %p452 = scmp.gt.s32.totalorder %s26, 0
        %s453 = scalar_select %p452, 1, 0
        %s454 = scvt.s32.f32 %s453
        %p456 = scmp.ne.f32.partialorder %s454, %s454
        %s457 = sshrl.u32 %s454, 16
        %s458 = sand.u32 %s457, 1
        %s459 = sadd.s32 32767, %s458
        %s460 = sadd.s32 %s454, %s459
        %s461 = sand.u32 %s460, 4294901760
        %s462 = scalar_select %p456, 2143289344, %s461
        %s464 = sshrl.u32 %s462, 16
        %s465 = sshll.u32 %s464, 16
        %s466 = sor.u32 %s464, %s465
        %v467 = vstv %s466
        %v469 = vmul.bf16 %v420, %v467
        %v470 = vmul.bf16 %v421, %v467
        %v471 = vmul.bf16 %v422, %v467
        %v472 = vmul.bf16 %v423, %v467
        %v473 = vmul.bf16 %v424, %v467
        %v474 = vmul.bf16 %v425, %v467
        %v475 = vmul.bf16 %v426, %v467
        %v476 = vmul.bf16 %v427, %v467
        %p477 = scmp.lt.s32.totalorder %s26, 1
        %s478 = scalar_select %p477, 1, 0
        %s479 = scvt.s32.f32 %s478
        %p481 = scmp.ne.f32.partialorder %s479, %s479
        %s482 = sshrl.u32 %s479, 16
        %s483 = sand.u32 %s482, 1
        %s484 = sadd.s32 32767, %s483
        %s485 = sadd.s32 %s479, %s484
        %s486 = sand.u32 %s485, 4294901760
        %s487 = scalar_select %p481, 2143289344, %s486
        %s489 = sshrl.u32 %s487, 16
        %s490 = sshll.u32 %s489, 16
        %s491 = sor.u32 %s489, %s490
        %v492 = vstv %s491
        %v494 = vmul.bf16 %v444, %v492
        %v495 = vmul.bf16 %v445, %v492
        %v496 = vmul.bf16 %v446, %v492
        %v497 = vmul.bf16 %v447, %v492
        %v498 = vmul.bf16 %v448, %v492
        %v499 = vmul.bf16 %v449, %v492
        %v500 = vmul.bf16 %v450, %v492
        %v501 = vmul.bf16 %v451, %v492
        %v534 = vunpack.c.l.b16 %v469
        %v535 = vunpack.c.l.b16 %v470
        %v536 = vunpack.c.l.b16 %v471
        %v537 = vunpack.c.l.b16 %v472
        %v538 = vunpack.c.l.b16 %v473
        %v539 = vunpack.c.l.b16 %v474
        %v540 = vunpack.c.l.b16 %v475
        %v541 = vunpack.c.l.b16 %v476
        %v542 = vunpack.c.l.b16 %v428
        %v543 = vunpack.c.l.b16 %v429
        %v544 = vunpack.c.l.b16 %v430
        %v545 = vunpack.c.l.b16 %v431
        %v546 = vunpack.c.l.b16 %v432
        %v547 = vunpack.c.l.b16 %v433
        %v548 = vunpack.c.l.b16 %v434
        %v549 = vunpack.c.l.b16 %v435
        %v550 = vunpack.c.l.b16 %v436
        %v551 = vunpack.c.l.b16 %v437
        %v552 = vunpack.c.l.b16 %v438
        %v553 = vunpack.c.l.b16 %v439
        %v554 = vunpack.c.l.b16 %v440
        %v555 = vunpack.c.l.b16 %v441
        %v556 = vunpack.c.l.b16 %v442
        %v557 = vunpack.c.l.b16 %v443
        %v558 = vunpack.c.l.b16 %v494
        %v559 = vunpack.c.l.b16 %v495
        %v560 = vunpack.c.l.b16 %v496
        %v561 = vunpack.c.l.b16 %v497
        %v562 = vunpack.c.l.b16 %v498
        %v563 = vunpack.c.l.b16 %v499
        %v564 = vunpack.c.l.b16 %v500
        %v565 = vunpack.c.l.b16 %v501
        %v566 = vpack.c.b16 %v535, %v534
        %v567 = vpack.c.b16 %v537, %v536
        %v568 = vpack.c.b16 %v539, %v538
        %v569 = vpack.c.b16 %v541, %v540
        %v570 = vpack.c.b16 %v543, %v542
        %v571 = vpack.c.b16 %v545, %v544
        %v572 = vpack.c.b16 %v547, %v546
        %v573 = vpack.c.b16 %v549, %v548
        %v574 = vpack.c.b16 %v551, %v550
        %v575 = vpack.c.b16 %v553, %v552
        %v576 = vpack.c.b16 %v555, %v554
        %v577 = vpack.c.b16 %v557, %v556
        %v578 = vpack.c.b16 %v559, %v558
        %v579 = vpack.c.b16 %v561, %v560
        %v580 = vpack.c.b16 %v563, %v562
        %v581 = vpack.c.b16 %v565, %v564
        %v582 = vrot.slane %v566, 6
        %v583 = vrot.slane %v567, 6
        %v584 = vrot.slane %v568, 6
        %v585 = vrot.slane %v569, 6
        %v586 = vrot.slane %v570, 6
        %v587 = vrot.slane %v571, 6
        %v588 = vrot.slane %v572, 6
        %v589 = vrot.slane %v573, 6
        %v590 = vrot.slane %v574, 6
        %v591 = vrot.slane %v575, 6
        %v592 = vrot.slane %v576, 6
        %v593 = vrot.slane %v577, 6
        %v594 = vrot.slane %v578, 6
        %v595 = vrot.slane %v579, 6
        %v596 = vrot.slane %v580, 6
        %v597 = vrot.slane %v581, 6
        %vm598 = vcmask 1041408
        %v601 = vsel %vm598, 0, %v582
        %v603 = vsel %vm598, 0, %v583
        %v605 = vsel %vm598, 0, %v584
        %v607 = vsel %vm598, 0, %v585
        %v609 = vsel %vm598, 0, %v586
        %v611 = vsel %vm598, 0, %v587
        %v613 = vsel %vm598, 0, %v588
        %v615 = vsel %vm598, 0, %v589
        %v617 = vsel %vm598, 0, %v590
        %v619 = vsel %vm598, 0, %v591
        %v621 = vsel %vm598, 0, %v592
        %v623 = vsel %vm598, 0, %v593
        %v625 = vsel %vm598, 0, %v594
        %v627 = vsel %vm598, 0, %v595
        %v629 = vsel %vm598, 0, %v596
        %v631 = vsel %vm598, 0, %v597
        %v632 = vsel %vm598, %v582, 0
        %v633 = vsel %vm598, %v583, 0
        %v634 = vsel %vm598, %v584, 0
        %v635 = vsel %vm598, %v585, 0
        %v636 = vsel %vm598, %v586, 0
        %v637 = vsel %vm598, %v587, 0
        %v638 = vsel %vm598, %v588, 0
        %v639 = vsel %vm598, %v589, 0
        %v640 = vsel %vm598, %v590, 0
        %v641 = vsel %vm598, %v591, 0
        %v642 = vsel %vm598, %v592, 0
        %v643 = vsel %vm598, %v593, 0
        %v644 = vsel %vm598, %v594, 0
        %v645 = vsel %vm598, %v595, 0
        %v646 = vsel %vm598, %v596, 0
        %v647 = vsel %vm598, %v597, 0
        %vm648 = vsmask.f32 7424
        %v649 = vshrl.u32 %v601, 16
        %v651 = vshll.u32 %v601, 16
        %v653 = vrot.slane %v651, 1
        %v654 = vor.u32 %v649, %v653
        %v655 = vshll.u32 %v632, 16
        %v657 = vrot.slane %v655, 1
        %v658 = vsel %vm648, %v654, %v657
        %v659 = vshrl.u32 %v603, 16
        %v661 = vshll.u32 %v603, 16
        %v663 = vrot.slane %v661, 1
        %v664 = vor.u32 %v659, %v663
        %v665 = vshll.u32 %v633, 16
        %v667 = vrot.slane %v665, 1
        %v668 = vsel %vm648, %v664, %v667
        %v669 = vshrl.u32 %v605, 16
        %v671 = vshll.u32 %v605, 16
        %v673 = vrot.slane %v671, 1
        %v674 = vor.u32 %v669, %v673
        %v675 = vshll.u32 %v634, 16
        %v677 = vrot.slane %v675, 1
        %v678 = vsel %vm648, %v674, %v677
        %v679 = vshrl.u32 %v607, 16
        %v681 = vshll.u32 %v607, 16
        %v683 = vrot.slane %v681, 1
        %v684 = vor.u32 %v679, %v683
        %v685 = vshll.u32 %v635, 16
        %v687 = vrot.slane %v685, 1
        %v688 = vsel %vm648, %v684, %v687
        %v689 = vshrl.u32 %v609, 16
        %v691 = vshll.u32 %v609, 16
        %v693 = vrot.slane %v691, 1
        %v694 = vor.u32 %v689, %v693
        %v695 = vshll.u32 %v636, 16
        %v697 = vrot.slane %v695, 1
        %v698 = vsel %vm648, %v694, %v697
        %v699 = vshrl.u32 %v611, 16
        %v701 = vshll.u32 %v611, 16
        %v703 = vrot.slane %v701, 1
        %v704 = vor.u32 %v699, %v703
        %v705 = vshll.u32 %v637, 16
        %v707 = vrot.slane %v705, 1
        %v708 = vsel %vm648, %v704, %v707
        %v709 = vshrl.u32 %v613, 16
        %v711 = vshll.u32 %v613, 16
        %v713 = vrot.slane %v711, 1
        %v714 = vor.u32 %v709, %v713
        %v715 = vshll.u32 %v638, 16
        %v717 = vrot.slane %v715, 1
        %v718 = vsel %vm648, %v714, %v717
        %v719 = vshrl.u32 %v615, 16
        %v721 = vshll.u32 %v615, 16
        %v723 = vrot.slane %v721, 1
        %v724 = vor.u32 %v719, %v723
        %v725 = vshll.u32 %v639, 16
        %v727 = vrot.slane %v725, 1
        %v728 = vsel %vm648, %v724, %v727
        %729 = vrot.lane.b32.xlu0 %v658, 3
        %v730 = vpop.permute.xlu0 %729
        %731 = vrot.lane.b32.xlu0 %v668, 3
        %v732 = vpop.permute.xlu0 %731
        %733 = vrot.lane.b32.xlu0 %v678, 3
        %v734 = vpop.permute.xlu0 %733
        %735 = vrot.lane.b32.xlu0 %v688, 3
        %v736 = vpop.permute.xlu0 %735
        %737 = vrot.lane.b32.xlu0 %v698, 3
        %v738 = vpop.permute.xlu0 %737
        %739 = vrot.lane.b32.xlu0 %v708, 3
        %v740 = vpop.permute.xlu0 %739
        %741 = vrot.lane.b32.xlu0 %v718, 3
        %v742 = vpop.permute.xlu0 %741
        %743 = vrot.lane.b32.xlu0 %v728, 3
        %v744 = vpop.permute.xlu0 %743
        %vm761 = vcmask 1046528
        %v762 = vrot.slane %v601, 1
        %v763 = vrot.slane %v632, 1
        %v764 = vsel %vm761, %v762, %v763
        %v765 = vrot.slane %v603, 1
        %v766 = vrot.slane %v633, 1
        %v767 = vsel %vm761, %v765, %v766
        %v768 = vrot.slane %v605, 1
        %v769 = vrot.slane %v634, 1
        %v770 = vsel %vm761, %v768, %v769
        %v771 = vrot.slane %v607, 1
        %v772 = vrot.slane %v635, 1
        %v773 = vsel %vm761, %v771, %v772
        %v774 = vrot.slane %v609, 1
        %v775 = vrot.slane %v636, 1
        %v776 = vsel %vm761, %v774, %v775
        %v777 = vrot.slane %v611, 1
        %v778 = vrot.slane %v637, 1
        %v779 = vsel %vm761, %v777, %v778
        %v780 = vrot.slane %v613, 1
        %v781 = vrot.slane %v638, 1
        %v782 = vsel %vm761, %v780, %v781
        %v783 = vrot.slane %v615, 1
        %v784 = vrot.slane %v639, 1
        %v785 = vsel %vm761, %v783, %v784
        %786 = vrot.lane.b32.xlu0 %v764, 6
        %v787 = vpop.permute.xlu0 %786
        %788 = vrot.lane.b32.xlu0 %v767, 6
        %v789 = vpop.permute.xlu0 %788
        %790 = vrot.lane.b32.xlu0 %v770, 6
        %v791 = vpop.permute.xlu0 %790
        %792 = vrot.lane.b32.xlu0 %v773, 6
        %v793 = vpop.permute.xlu0 %792
        %794 = vrot.lane.b32.xlu0 %v776, 6
        %v795 = vpop.permute.xlu0 %794
        %796 = vrot.lane.b32.xlu0 %v779, 6
        %v797 = vpop.permute.xlu0 %796
        %798 = vrot.lane.b32.xlu0 %v782, 6
        %v799 = vpop.permute.xlu0 %798
        %800 = vrot.lane.b32.xlu0 %v785, 6
        %v801 = vpop.permute.xlu0 %800
        %vm802 = vsmask.f32 6400
        %v803 = vrot.slane %v649, 1
        %v804 = vrot.slane %v651, 2
        %v805 = vor.u32 %v803, %v804
        %v806 = vshrl.u32 %v632, 16
        %v808 = vrot.slane %v806, 1
        %v809 = vrot.slane %v655, 2
        %v810 = vor.u32 %v808, %v809
        %v811 = vsel %vm802, %v805, %v810
        %v812 = vrot.slane %v659, 1
        %v813 = vrot.slane %v661, 2
        %v814 = vor.u32 %v812, %v813
        %v815 = vshrl.u32 %v633, 16
        %v817 = vrot.slane %v815, 1
        %v818 = vrot.slane %v665, 2
        %v819 = vor.u32 %v817, %v818
        %v820 = vsel %vm802, %v814, %v819
        %v821 = vrot.slane %v669, 1
        %v822 = vrot.slane %v671, 2
        %v823 = vor.u32 %v821, %v822
        %v824 = vshrl.u32 %v634, 16
        %v826 = vrot.slane %v824, 1
        %v827 = vrot.slane %v675, 2
        %v828 = vor.u32 %v826, %v827
        %v829 = vsel %vm802, %v823, %v828
        %v830 = vrot.slane %v679, 1
        %v831 = vrot.slane %v681, 2
        %v832 = vor.u32 %v830, %v831
        %v833 = vshrl.u32 %v635, 16
        %v835 = vrot.slane %v833, 1
        %v836 = vrot.slane %v685, 2
        %v837 = vor.u32 %v835, %v836
        %v838 = vsel %vm802, %v832, %v837
        %v839 = vrot.slane %v689, 1
        %v840 = vrot.slane %v691, 2
        %v841 = vor.u32 %v839, %v840
        %v842 = vshrl.u32 %v636, 16
        %v844 = vrot.slane %v842, 1
        %v845 = vrot.slane %v695, 2
        %v846 = vor.u32 %v844, %v845
        %v847 = vsel %vm802, %v841, %v846
        %v848 = vrot.slane %v699, 1
        %v849 = vrot.slane %v701, 2
        %v850 = vor.u32 %v848, %v849
        %v851 = vshrl.u32 %v637, 16
        %v853 = vrot.slane %v851, 1
        %v854 = vrot.slane %v705, 2
        %v855 = vor.u32 %v853, %v854
        %v856 = vsel %vm802, %v850, %v855
        %v857 = vrot.slane %v709, 1
        %v858 = vrot.slane %v711, 2
        %v859 = vor.u32 %v857, %v858
        %v860 = vshrl.u32 %v638, 16
        %v862 = vrot.slane %v860, 1
        %v863 = vrot.slane %v715, 2
        %v864 = vor.u32 %v862, %v863
        %v865 = vsel %vm802, %v859, %v864
        %v866 = vrot.slane %v719, 1
        %v867 = vrot.slane %v721, 2
        %v868 = vor.u32 %v866, %v867
        %v869 = vshrl.u32 %v639, 16
        %v871 = vrot.slane %v869, 1
        %v872 = vrot.slane %v725, 2
        %v873 = vor.u32 %v871, %v872
        %v874 = vsel %vm802, %v868, %v873
        %875 = vrot.lane.b32.xlu0 %v811, 9
        %v876 = vpop.permute.xlu0 %875
        %877 = vrot.lane.b32.xlu0 %v820, 9
        %v878 = vpop.permute.xlu0 %877
        %879 = vrot.lane.b32.xlu0 %v829, 9
        %v880 = vpop.permute.xlu0 %879
        %881 = vrot.lane.b32.xlu0 %v838, 9
        %v882 = vpop.permute.xlu0 %881
        %883 = vrot.lane.b32.xlu0 %v847, 9
        %v884 = vpop.permute.xlu0 %883
        %885 = vrot.lane.b32.xlu0 %v856, 9
        %v886 = vpop.permute.xlu0 %885
        %887 = vrot.lane.b32.xlu0 %v865, 9
        %v888 = vpop.permute.xlu0 %887
        %889 = vrot.lane.b32.xlu0 %v874, 9
        %v890 = vpop.permute.xlu0 %889
        %vm891 = vcmask 1045504
        %v892 = vrot.slane %v601, 2
        %v893 = vrot.slane %v632, 2
        %v894 = vsel %vm891, %v892, %v893
        %v895 = vrot.slane %v603, 2
        %v896 = vrot.slane %v633, 2
        %v897 = vsel %vm891, %v895, %v896
        %v898 = vrot.slane %v605, 2
        %v899 = vrot.slane %v634, 2
        %v900 = vsel %vm891, %v898, %v899
        %v901 = vrot.slane %v607, 2
        %v902 = vrot.slane %v635, 2
        %v903 = vsel %vm891, %v901, %v902
        %v904 = vrot.slane %v609, 2
        %v905 = vrot.slane %v636, 2
        %v906 = vsel %vm891, %v904, %v905
        %v907 = vrot.slane %v611, 2
        %v908 = vrot.slane %v637, 2
        %v909 = vsel %vm891, %v907, %v908
        %v910 = vrot.slane %v613, 2
        %v911 = vrot.slane %v638, 2
        %v912 = vsel %vm891, %v910, %v911
        %v913 = vrot.slane %v615, 2
        %v914 = vrot.slane %v639, 2
        %v915 = vsel %vm891, %v913, %v914
        %916 = vrot.lane.b32.xlu0 %v894, 12
        %v917 = vpop.permute.xlu0 %916
        %918 = vrot.lane.b32.xlu0 %v897, 12
        %v919 = vpop.permute.xlu0 %918
        %920 = vrot.lane.b32.xlu0 %v900, 12
        %v921 = vpop.permute.xlu0 %920
        %922 = vrot.lane.b32.xlu0 %v903, 12
        %v923 = vpop.permute.xlu0 %922
        %924 = vrot.lane.b32.xlu0 %v906, 12
        %v925 = vpop.permute.xlu0 %924
        %926 = vrot.lane.b32.xlu0 %v909, 12
        %v927 = vpop.permute.xlu0 %926
        %928 = vrot.lane.b32.xlu0 %v912, 12
        %v929 = vpop.permute.xlu0 %928
        %930 = vrot.lane.b32.xlu0 %v915, 12
        %v931 = vpop.permute.xlu0 %930
        %vm932 = vsmask.f32 5376
        %v933 = vrot.slane %v649, 2
        %v934 = vrot.slane %v651, 3
        %v935 = vor.u32 %v933, %v934
        %v936 = vrot.slane %v806, 2
        %v937 = vrot.slane %v655, 3
        %v938 = vor.u32 %v936, %v937
        %v939 = vsel %vm932, %v935, %v938
        %v940 = vrot.slane %v659, 2
        %v941 = vrot.slane %v661, 3
        %v942 = vor.u32 %v940, %v941
        %v943 = vrot.slane %v815, 2
        %v944 = vrot.slane %v665, 3
        %v945 = vor.u32 %v943, %v944
        %v946 = vsel %vm932, %v942, %v945
        %v947 = vrot.slane %v669, 2
        %v948 = vrot.slane %v671, 3
        %v949 = vor.u32 %v947, %v948
        %v950 = vrot.slane %v824, 2
        %v951 = vrot.slane %v675, 3
        %v952 = vor.u32 %v950, %v951
        %v953 = vsel %vm932, %v949, %v952
        %v954 = vrot.slane %v679, 2
        %v955 = vrot.slane %v681, 3
        %v956 = vor.u32 %v954, %v955
        %v957 = vrot.slane %v833, 2
        %v958 = vrot.slane %v685, 3
        %v959 = vor.u32 %v957, %v958
        %v960 = vsel %vm932, %v956, %v959
        %v961 = vrot.slane %v689, 2
        %v962 = vrot.slane %v691, 3
        %v963 = vor.u32 %v961, %v962
        %v964 = vrot.slane %v842, 2
        %v965 = vrot.slane %v695, 3
        %v966 = vor.u32 %v964, %v965
        %v967 = vsel %vm932, %v963, %v966
        %v968 = vrot.slane %v699, 2
        %v969 = vrot.slane %v701, 3
        %v970 = vor.u32 %v968, %v969
        %v971 = vrot.slane %v851, 2
        %v972 = vrot.slane %v705, 3
        %v973 = vor.u32 %v971, %v972
        %v974 = vsel %vm932, %v970, %v973
        %v975 = vrot.slane %v709, 2
        %v976 = vrot.slane %v711, 3
        %v977 = vor.u32 %v975, %v976
        %v978 = vrot.slane %v860, 2
        %v979 = vrot.slane %v715, 3
        %v980 = vor.u32 %v978, %v979
        %v981 = vsel %vm932, %v977, %v980
        %v982 = vrot.slane %v719, 2
        %v983 = vrot.slane %v721, 3
        %v984 = vor.u32 %v982, %v983
        %v985 = vrot.slane %v869, 2
        %v986 = vrot.slane %v725, 3
        %v987 = vor.u32 %v985, %v986
        %v988 = vsel %vm932, %v984, %v987
        %989 = vrot.lane.b32.xlu0 %v939, 15
        %v990 = vpop.permute.xlu0 %989
        %991 = vrot.lane.b32.xlu0 %v946, 15
        %v992 = vpop.permute.xlu0 %991
        %993 = vrot.lane.b32.xlu0 %v953, 15
        %v994 = vpop.permute.xlu0 %993
        %995 = vrot.lane.b32.xlu0 %v960, 15
        %v996 = vpop.permute.xlu0 %995
        %997 = vrot.lane.b32.xlu0 %v967, 15
        %v998 = vpop.permute.xlu0 %997
        %999 = vrot.lane.b32.xlu0 %v974, 15
        %v1000 = vpop.permute.xlu0 %999
        %1001 = vrot.lane.b32.xlu0 %v981, 15
        %v1002 = vpop.permute.xlu0 %1001
        %1003 = vrot.lane.b32.xlu0 %v988, 15
        %v1004 = vpop.permute.xlu0 %1003
        %vm1005 = vcmask 1044480
        %v1006 = vrot.slane %v601, 3
        %v1007 = vrot.slane %v632, 3
        %v1008 = vsel %vm1005, %v1006, %v1007
        %v1009 = vrot.slane %v603, 3
        %v1010 = vrot.slane %v633, 3
        %v1011 = vsel %vm1005, %v1009, %v1010
        %v1012 = vrot.slane %v605, 3
        %v1013 = vrot.slane %v634, 3
        %v1014 = vsel %vm1005, %v1012, %v1013
        %v1015 = vrot.slane %v607, 3
        %v1016 = vrot.slane %v635, 3
        %v1017 = vsel %vm1005, %v1015, %v1016
        %v1018 = vrot.slane %v609, 3
        %v1019 = vrot.slane %v636, 3
        %v1020 = vsel %vm1005, %v1018, %v1019
        %v1021 = vrot.slane %v611, 3
        %v1022 = vrot.slane %v637, 3
        %v1023 = vsel %vm1005, %v1021, %v1022
        %v1024 = vrot.slane %v613, 3
        %v1025 = vrot.slane %v638, 3
        %v1026 = vsel %vm1005, %v1024, %v1025
        %v1027 = vrot.slane %v615, 3
        %v1028 = vrot.slane %v639, 3
        %v1029 = vsel %vm1005, %v1027, %v1028
        %1030 = vrot.lane.b32.xlu0 %v1008, 18
        %v1031 = vpop.permute.xlu0 %1030
        %1032 = vrot.lane.b32.xlu0 %v1011, 18
        %v1033 = vpop.permute.xlu0 %1032
        %1034 = vrot.lane.b32.xlu0 %v1014, 18
        %v1035 = vpop.permute.xlu0 %1034
        %1036 = vrot.lane.b32.xlu0 %v1017, 18
        %v1037 = vpop.permute.xlu0 %1036
        %1038 = vrot.lane.b32.xlu0 %v1020, 18
        %v1039 = vpop.permute.xlu0 %1038
        %1040 = vrot.lane.b32.xlu0 %v1023, 18
        %v1041 = vpop.permute.xlu0 %1040
        %1042 = vrot.lane.b32.xlu0 %v1026, 18
        %v1043 = vpop.permute.xlu0 %1042
        %1044 = vrot.lane.b32.xlu0 %v1029, 18
        %v1045 = vpop.permute.xlu0 %1044
        %vm1046 = vsmask.f32 4352
        %v1047 = vrot.slane %v649, 3
        %v1048 = vrot.slane %v651, 4
        %v1049 = vor.u32 %v1047, %v1048
        %v1050 = vrot.slane %v806, 3
        %v1051 = vrot.slane %v655, 4
        %v1052 = vor.u32 %v1050, %v1051
        %v1053 = vsel %vm1046, %v1049, %v1052
        %v1054 = vrot.slane %v659, 3
        %v1055 = vrot.slane %v661, 4
        %v1056 = vor.u32 %v1054, %v1055
        %v1057 = vrot.slane %v815, 3
        %v1058 = vrot.slane %v665, 4
        %v1059 = vor.u32 %v1057, %v1058
        %v1060 = vsel %vm1046, %v1056, %v1059
        %v1061 = vrot.slane %v669, 3
        %v1062 = vrot.slane %v671, 4
        %v1063 = vor.u32 %v1061, %v1062
        %v1064 = vrot.slane %v824, 3
        %v1065 = vrot.slane %v675, 4
        %v1066 = vor.u32 %v1064, %v1065
        %v1067 = vsel %vm1046, %v1063, %v1066
        %v1068 = vrot.slane %v679, 3
        %v1069 = vrot.slane %v681, 4
        %v1070 = vor.u32 %v1068, %v1069
        %v1071 = vrot.slane %v833, 3
        %v1072 = vrot.slane %v685, 4
        %v1073 = vor.u32 %v1071, %v1072
        %v1074 = vsel %vm1046, %v1070, %v1073
        %v1075 = vrot.slane %v689, 3
        %v1076 = vrot.slane %v691, 4
        %v1077 = vor.u32 %v1075, %v1076
        %v1078 = vrot.slane %v842, 3
        %v1079 = vrot.slane %v695, 4
        %v1080 = vor.u32 %v1078, %v1079
        %v1081 = vsel %vm1046, %v1077, %v1080
        %v1082 = vrot.slane %v699, 3
        %v1083 = vrot.slane %v701, 4
        %v1084 = vor.u32 %v1082, %v1083
        %v1085 = vrot.slane %v851, 3
        %v1086 = vrot.slane %v705, 4
        %v1087 = vor.u32 %v1085, %v1086
        %v1088 = vsel %vm1046, %v1084, %v1087
        %v1089 = vrot.slane %v709, 3
        %v1090 = vrot.slane %v711, 4
        %v1091 = vor.u32 %v1089, %v1090
        %v1092 = vrot.slane %v860, 3
        %v1093 = vrot.slane %v715, 4
        %v1094 = vor.u32 %v1092, %v1093
        %v1095 = vsel %vm1046, %v1091, %v1094
        %v1096 = vrot.slane %v719, 3
        %v1097 = vrot.slane %v721, 4
        %v1098 = vor.u32 %v1096, %v1097
        %v1099 = vrot.slane %v869, 3
        %v1100 = vrot.slane %v725, 4
        %v1101 = vor.u32 %v1099, %v1100
        %v1102 = vsel %vm1046, %v1098, %v1101
        %1103 = vrot.lane.b32.xlu0 %v1053, 21
        %v1104 = vpop.permute.xlu0 %1103
        %1105 = vrot.lane.b32.xlu0 %v1060, 21
        %v1106 = vpop.permute.xlu0 %1105
        %1107 = vrot.lane.b32.xlu0 %v1067, 21
        %v1108 = vpop.permute.xlu0 %1107
        %1109 = vrot.lane.b32.xlu0 %v1074, 21
        %v1110 = vpop.permute.xlu0 %1109
        %1111 = vrot.lane.b32.xlu0 %v1081, 21
        %v1112 = vpop.permute.xlu0 %1111
        %1113 = vrot.lane.b32.xlu0 %v1088, 21
        %v1114 = vpop.permute.xlu0 %1113
        %1115 = vrot.lane.b32.xlu0 %v1095, 21
        %v1116 = vpop.permute.xlu0 %1115
        %1117 = vrot.lane.b32.xlu0 %v1102, 21
        %v1118 = vpop.permute.xlu0 %1117
        %vm1119 = vcmask 1043456
        %v1120 = vrot.slane %v601, 4
        %v1121 = vrot.slane %v632, 4
        %v1122 = vsel %vm1119, %v1120, %v1121
        %v1123 = vrot.slane %v603, 4
        %v1124 = vrot.slane %v633, 4
        %v1125 = vsel %vm1119, %v1123, %v1124
        %v1126 = vrot.slane %v605, 4
        %v1127 = vrot.slane %v634, 4
        %v1128 = vsel %vm1119, %v1126, %v1127
        %v1129 = vrot.slane %v607, 4
        %v1130 = vrot.slane %v635, 4
        %v1131 = vsel %vm1119, %v1129, %v1130
        %v1132 = vrot.slane %v609, 4
        %v1133 = vrot.slane %v636, 4
        %v1134 = vsel %vm1119, %v1132, %v1133
        %v1135 = vrot.slane %v611, 4
        %v1136 = vrot.slane %v637, 4
        %v1137 = vsel %vm1119, %v1135, %v1136
        %v1138 = vrot.slane %v613, 4
        %v1139 = vrot.slane %v638, 4
        %v1140 = vsel %vm1119, %v1138, %v1139
        %v1141 = vrot.slane %v615, 4
        %v1142 = vrot.slane %v639, 4
        %v1143 = vsel %vm1119, %v1141, %v1142
        %1144 = vrot.lane.b32.xlu0 %v1122, 24
        %v1145 = vpop.permute.xlu0 %1144
        %1146 = vrot.lane.b32.xlu0 %v1125, 24
        %v1147 = vpop.permute.xlu0 %1146
        %1148 = vrot.lane.b32.xlu0 %v1128, 24
        %v1149 = vpop.permute.xlu0 %1148
        %1150 = vrot.lane.b32.xlu0 %v1131, 24
        %v1151 = vpop.permute.xlu0 %1150
        %1152 = vrot.lane.b32.xlu0 %v1134, 24
        %v1153 = vpop.permute.xlu0 %1152
        %1154 = vrot.lane.b32.xlu0 %v1137, 24
        %v1155 = vpop.permute.xlu0 %1154
        %1156 = vrot.lane.b32.xlu0 %v1140, 24
        %v1157 = vpop.permute.xlu0 %1156
        %1158 = vrot.lane.b32.xlu0 %v1143, 24
        %v1159 = vpop.permute.xlu0 %1158
        %1161 = vrot.lane.b32.xlu0 %v603, 27
        %v1162 = vpop.permute.xlu0 %1161
        %1163 = vrot.lane.b32.xlu0 %v605, 27
        %v1164 = vpop.permute.xlu0 %1163
        %1165 = vrot.lane.b32.xlu0 %v607, 27
        %v1166 = vpop.permute.xlu0 %1165
        %1167 = vrot.lane.b32.xlu0 %v609, 27
        %v1168 = vpop.permute.xlu0 %1167
        %1169 = vrot.lane.b32.xlu0 %v611, 27
        %v1170 = vpop.permute.xlu0 %1169
        %1171 = vrot.lane.b32.xlu0 %v613, 27
        %v1172 = vpop.permute.xlu0 %1171
        %1173 = vrot.lane.b32.xlu0 %v615, 27
        %v1174 = vpop.permute.xlu0 %1173
        %1175 = vrot.lane.b32.xlu0 %v617, 27
        %v1176 = vpop.permute.xlu0 %1175
        %v1177 = vshrl.u32 %v617, 16
        %v1179 = vshll.u32 %v617, 16
        %v1181 = vrot.slane %v1179, 1
        %v1182 = vor.u32 %v1177, %v1181
        %v1183 = vshll.u32 %v640, 16
        %v1185 = vrot.slane %v1183, 1
        %v1186 = vsel %vm648, %v1182, %v1185
        %1187 = vrot.lane.b32.xlu0 %v668, 30
        %v1188 = vpop.permute.xlu0 %1187
        %1189 = vrot.lane.b32.xlu0 %v678, 30
        %v1190 = vpop.permute.xlu0 %1189
        %1191 = vrot.lane.b32.xlu0 %v688, 30
        %v1192 = vpop.permute.xlu0 %1191
        %1193 = vrot.lane.b32.xlu0 %v698, 30
        %v1194 = vpop.permute.xlu0 %1193
        %1195 = vrot.lane.b32.xlu0 %v708, 30
        %v1196 = vpop.permute.xlu0 %1195
        %1197 = vrot.lane.b32.xlu0 %v718, 30
        %v1198 = vpop.permute.xlu0 %1197
        %1199 = vrot.lane.b32.xlu0 %v728, 30
        %v1200 = vpop.permute.xlu0 %1199
        %1201 = vrot.lane.b32.xlu0 %v1186, 30
        %v1202 = vpop.permute.xlu0 %1201
        %v1204 = vrot.slane %v617, 1
        %v1205 = vrot.slane %v640, 1
        %v1206 = vsel %vm761, %v1204, %v1205
        %1207 = vrot.lane.b32.xlu0 %v767, 33
        %v1208 = vpop.permute.xlu0 %1207
        %1209 = vrot.lane.b32.xlu0 %v770, 33
        %v1210 = vpop.permute.xlu0 %1209
        %1211 = vrot.lane.b32.xlu0 %v773, 33
        %v1212 = vpop.permute.xlu0 %1211
        %1213 = vrot.lane.b32.xlu0 %v776, 33
        %v1214 = vpop.permute.xlu0 %1213
        %1215 = vrot.lane.b32.xlu0 %v779, 33
        %v1216 = vpop.permute.xlu0 %1215
        %1217 = vrot.lane.b32.xlu0 %v782, 33
        %v1218 = vpop.permute.xlu0 %1217
        %1219 = vrot.lane.b32.xlu0 %v785, 33
        %v1220 = vpop.permute.xlu0 %1219
        %1221 = vrot.lane.b32.xlu0 %v1206, 33
        %v1222 = vpop.permute.xlu0 %1221
        %v1223 = vrot.slane %v1177, 1
        %v1224 = vrot.slane %v1179, 2
        %v1225 = vor.u32 %v1223, %v1224
        %v1226 = vshrl.u32 %v640, 16
        %v1228 = vrot.slane %v1226, 1
        %v1229 = vrot.slane %v1183, 2
        %v1230 = vor.u32 %v1228, %v1229
        %v1231 = vsel %vm802, %v1225, %v1230
        %1232 = vrot.lane.b32.xlu0 %v820, 36
        %v1233 = vpop.permute.xlu0 %1232
        %1234 = vrot.lane.b32.xlu0 %v829, 36
        %v1235 = vpop.permute.xlu0 %1234
        %1236 = vrot.lane.b32.xlu0 %v838, 36
        %v1237 = vpop.permute.xlu0 %1236
        %1238 = vrot.lane.b32.xlu0 %v847, 36
        %v1239 = vpop.permute.xlu0 %1238
        %1240 = vrot.lane.b32.xlu0 %v856, 36
        %v1241 = vpop.permute.xlu0 %1240
        %1242 = vrot.lane.b32.xlu0 %v865, 36
        %v1243 = vpop.permute.xlu0 %1242
        %1244 = vrot.lane.b32.xlu0 %v874, 36
        %v1245 = vpop.permute.xlu0 %1244
        %1246 = vrot.lane.b32.xlu0 %v1231, 36
        %v1247 = vpop.permute.xlu0 %1246
        %v1248 = vrot.slane %v617, 2
        %v1249 = vrot.slane %v640, 2
        %v1250 = vsel %vm891, %v1248, %v1249
        %1251 = vrot.lane.b32.xlu0 %v897, 39
        %v1252 = vpop.permute.xlu0 %1251
        %1253 = vrot.lane.b32.xlu0 %v900, 39
        %v1254 = vpop.permute.xlu0 %1253
        %1255 = vrot.lane.b32.xlu0 %v903, 39
        %v1256 = vpop.permute.xlu0 %1255
        %1257 = vrot.lane.b32.xlu0 %v906, 39
        %v1258 = vpop.permute.xlu0 %1257
        %1259 = vrot.lane.b32.xlu0 %v909, 39
        %v1260 = vpop.permute.xlu0 %1259
        %1261 = vrot.lane.b32.xlu0 %v912, 39
        %v1262 = vpop.permute.xlu0 %1261
        %1263 = vrot.lane.b32.xlu0 %v915, 39
        %v1264 = vpop.permute.xlu0 %1263
        %1265 = vrot.lane.b32.xlu0 %v1250, 39
        %v1266 = vpop.permute.xlu0 %1265
        %v1267 = vrot.slane %v1177, 2
        %v1268 = vrot.slane %v1179, 3
        %v1269 = vor.u32 %v1267, %v1268
        %v1270 = vrot.slane %v1226, 2
        %v1271 = vrot.slane %v1183, 3
        %v1272 = vor.u32 %v1270, %v1271
        %v1273 = vsel %vm932, %v1269, %v1272
        %1274 = vrot.lane.b32.xlu0 %v946, 42
        %v1275 = vpop.permute.xlu0 %1274
        %1276 = vrot.lane.b32.xlu0 %v953, 42
        %v1277 = vpop.permute.xlu0 %1276
        %1278 = vrot.lane.b32.xlu0 %v960, 42
        %v1279 = vpop.permute.xlu0 %1278
        %1280 = vrot.lane.b32.xlu0 %v967, 42
        %v1281 = vpop.permute.xlu0 %1280
        %1282 = vrot.lane.b32.xlu0 %v974, 42
        %v1283 = vpop.permute.xlu0 %1282
        %1284 = vrot.lane.b32.xlu0 %v981, 42
        %v1285 = vpop.permute.xlu0 %1284
        %1286 = vrot.lane.b32.xlu0 %v988, 42
        %v1287 = vpop.permute.xlu0 %1286
        %1288 = vrot.lane.b32.xlu0 %v1273, 42
        %v1289 = vpop.permute.xlu0 %1288
        %v1290 = vrot.slane %v617, 3
        %v1291 = vrot.slane %v640, 3
        %v1292 = vsel %vm1005, %v1290, %v1291
        %1293 = vrot.lane.b32.xlu0 %v1011, 45
        %v1294 = vpop.permute.xlu0 %1293
        %1295 = vrot.lane.b32.xlu0 %v1014, 45
        %v1296 = vpop.permute.xlu0 %1295
        %1297 = vrot.lane.b32.xlu0 %v1017, 45
        %v1298 = vpop.permute.xlu0 %1297
        %1299 = vrot.lane.b32.xlu0 %v1020, 45
        %v1300 = vpop.permute.xlu0 %1299
        %1301 = vrot.lane.b32.xlu0 %v1023, 45
        %v1302 = vpop.permute.xlu0 %1301
        %1303 = vrot.lane.b32.xlu0 %v1026, 45
        %v1304 = vpop.permute.xlu0 %1303
        %1305 = vrot.lane.b32.xlu0 %v1029, 45
        %v1306 = vpop.permute.xlu0 %1305
        %1307 = vrot.lane.b32.xlu0 %v1292, 45
        %v1308 = vpop.permute.xlu0 %1307
        %vm1309 = vcmask 23552
        %v1311 = vsel %vm1309, %v601, %v730
        %v1313 = vsel %vm1309, %v603, %v732
        %v1315 = vsel %vm1309, %v605, %v734
        %v1317 = vsel %vm1309, %v607, %v736
        %v1319 = vsel %vm1309, %v609, %v738
        %v1321 = vsel %vm1309, %v611, %v740
        %v1323 = vsel %vm1309, %v613, %v742
        %v1325 = vsel %vm1309, %v615, %v744
        %vm1326 = vcmask 48128
        %v1328 = vsel %vm1326, %v1311, %v787
        %v1330 = vsel %vm1326, %v1313, %v789
        %v1332 = vsel %vm1326, %v1315, %v791
        %v1334 = vsel %vm1326, %v1317, %v793
        %v1336 = vsel %vm1326, %v1319, %v795
        %v1338 = vsel %vm1326, %v1321, %v797
        %v1340 = vsel %vm1326, %v1323, %v799
        %v1342 = vsel %vm1326, %v1325, %v801
        %vm1343 = vcmask 72704
        %v1345 = vsel %vm1343, %v1328, %v876
        %v1347 = vsel %vm1343, %v1330, %v878
        %v1349 = vsel %vm1343, %v1332, %v880
        %v1351 = vsel %vm1343, %v1334, %v882
        %v1353 = vsel %vm1343, %v1336, %v884
        %v1355 = vsel %vm1343, %v1338, %v886
        %v1357 = vsel %vm1343, %v1340, %v888
        %v1359 = vsel %vm1343, %v1342, %v890
        %vm1360 = vcmask 97280
        %v1362 = vsel %vm1360, %v1345, %v917
        %v1364 = vsel %vm1360, %v1347, %v919
        %v1366 = vsel %vm1360, %v1349, %v921
        %v1368 = vsel %vm1360, %v1351, %v923
        %v1370 = vsel %vm1360, %v1353, %v925
        %v1372 = vsel %vm1360, %v1355, %v927
        %v1374 = vsel %vm1360, %v1357, %v929
        %v1376 = vsel %vm1360, %v1359, %v931
        %vm1377 = vcmask 121856
        %v1379 = vsel %vm1377, %v1362, %v990
        %v1381 = vsel %vm1377, %v1364, %v992
        %v1383 = vsel %vm1377, %v1366, %v994
        %v1385 = vsel %vm1377, %v1368, %v996
        %v1387 = vsel %vm1377, %v1370, %v998
        %v1389 = vsel %vm1377, %v1372, %v1000
        %v1391 = vsel %vm1377, %v1374, %v1002
        %v1393 = vsel %vm1377, %v1376, %v1004
        %vm1394 = vcmask 146432
        %v1396 = vsel %vm1394, %v1379, %v1031
        %v1398 = vsel %vm1394, %v1381, %v1033
        %v1400 = vsel %vm1394, %v1383, %v1035
        %v1402 = vsel %vm1394, %v1385, %v1037
        %v1404 = vsel %vm1394, %v1387, %v1039
        %v1406 = vsel %vm1394, %v1389, %v1041
        %v1408 = vsel %vm1394, %v1391, %v1043
        %v1410 = vsel %vm1394, %v1393, %v1045
        %vm1411 = vcmask 171008
        %v1413 = vsel %vm1411, %v1396, %v1104
        %v1415 = vsel %vm1411, %v1398, %v1106
        %v1417 = vsel %vm1411, %v1400, %v1108
        %v1419 = vsel %vm1411, %v1402, %v1110
        %v1421 = vsel %vm1411, %v1404, %v1112
        %v1423 = vsel %vm1411, %v1406, %v1114
        %v1425 = vsel %vm1411, %v1408, %v1116
        %v1427 = vsel %vm1411, %v1410, %v1118
        %vm1428 = vcmask 195584
        %v1430 = vsel %vm1428, %v1413, %v1145
        %v1432 = vsel %vm1428, %v1415, %v1147
        %v1434 = vsel %vm1428, %v1417, %v1149
        %v1436 = vsel %vm1428, %v1419, %v1151
        %v1438 = vsel %vm1428, %v1421, %v1153
        %v1440 = vsel %vm1428, %v1423, %v1155
        %v1442 = vsel %vm1428, %v1425, %v1157
        %v1444 = vsel %vm1428, %v1427, %v1159
        %vm1445 = vcmask 220160
        %v1447 = vsel %vm1445, %v1430, %v1162
        %v1449 = vsel %vm1445, %v1432, %v1164
        %v1451 = vsel %vm1445, %v1434, %v1166
        %v1453 = vsel %vm1445, %v1436, %v1168
        %v1455 = vsel %vm1445, %v1438, %v1170
        %v1457 = vsel %vm1445, %v1440, %v1172
        %v1459 = vsel %vm1445, %v1442, %v1174
        %v1461 = vsel %vm1445, %v1444, %v1176
        %vm1462 = vcmask 244736
        %v1464 = vsel %vm1462, %v1447, %v1188
        %v1466 = vsel %vm1462, %v1449, %v1190
        %v1468 = vsel %vm1462, %v1451, %v1192
        %v1470 = vsel %vm1462, %v1453, %v1194
        %v1472 = vsel %vm1462, %v1455, %v1196
        %v1474 = vsel %vm1462, %v1457, %v1198
        %v1476 = vsel %vm1462, %v1459, %v1200
        %v1478 = vsel %vm1462, %v1461, %v1202
        %vm1479 = vcmask 269312
        %v1481 = vsel %vm1479, %v1464, %v1208
        %v1483 = vsel %vm1479, %v1466, %v1210
        %v1485 = vsel %vm1479, %v1468, %v1212
        %v1487 = vsel %vm1479, %v1470, %v1214
        %v1489 = vsel %vm1479, %v1472, %v1216
        %v1491 = vsel %vm1479, %v1474, %v1218
        %v1493 = vsel %vm1479, %v1476, %v1220
        %v1495 = vsel %vm1479, %v1478, %v1222
        %vm1496 = vcmask 293888
        %v1498 = vsel %vm1496, %v1481, %v1233
        %v1500 = vsel %vm1496, %v1483, %v1235
        %v1502 = vsel %vm1496, %v1485, %v1237
        %v1504 = vsel %vm1496, %v1487, %v1239
        %v1506 = vsel %vm1496, %v1489, %v1241
        %v1508 = vsel %vm1496, %v1491, %v1243
        %v1510 = vsel %vm1496, %v1493, %v1245
        %v1512 = vsel %vm1496, %v1495, %v1247
        %vm1513 = vcmask 318464
        %v1515 = vsel %vm1513, %v1498, %v1252
        %v1517 = vsel %vm1513, %v1500, %v1254
        %v1519 = vsel %vm1513, %v1502, %v1256
        %v1521 = vsel %vm1513, %v1504, %v1258
        %v1523 = vsel %vm1513, %v1506, %v1260
        %v1525 = vsel %vm1513, %v1508, %v1262
        %v1527 = vsel %vm1513, %v1510, %v1264
        %v1529 = vsel %vm1513, %v1512, %v1266
        %vm1530 = vcmask 343040
        %v1532 = vsel %vm1530, %v1515, %v1275
        %v1534 = vsel %vm1530, %v1517, %v1277
        %v1536 = vsel %vm1530, %v1519, %v1279
        %v1538 = vsel %vm1530, %v1521, %v1281
        %v1540 = vsel %vm1530, %v1523, %v1283
        %v1542 = vsel %vm1530, %v1525, %v1285
        %v1544 = vsel %vm1530, %v1527, %v1287
        %v1546 = vsel %vm1530, %v1529, %v1289
        %vm1547 = vcmask 367616
        %v1549 = vsel %vm1547, %v1532, %v1294
        %v1551 = vsel %vm1547, %v1534, %v1296
        %v1553 = vsel %vm1547, %v1536, %v1298
        %v1555 = vsel %vm1547, %v1538, %v1300
        %v1557 = vsel %vm1547, %v1540, %v1302
        %v1559 = vsel %vm1547, %v1542, %v1304
        %v1561 = vsel %vm1547, %v1544, %v1306
        %v1563 = vsel %vm1547, %v1546, %v1308
        %v1564 = vor.u32 %v815, %v667
        %v1565 = vor.u32 %v824, %v677
        %v1566 = vor.u32 %v833, %v687
        %v1567 = vor.u32 %v842, %v697
        %v1568 = vor.u32 %v851, %v707
        %v1569 = vor.u32 %v860, %v717
        %v1570 = vor.u32 %v869, %v727
        %v1571 = vor.u32 %v1226, %v1185
        %1572 = vrot.lane.b32.xlu0 %v1564, 3
        %v1573 = vpop.permute.xlu0 %1572
        %1574 = vrot.lane.b32.xlu0 %v1565, 3
        %v1575 = vpop.permute.xlu0 %1574
        %1576 = vrot.lane.b32.xlu0 %v1566, 3
        %v1577 = vpop.permute.xlu0 %1576
        %1578 = vrot.lane.b32.xlu0 %v1567, 3
        %v1579 = vpop.permute.xlu0 %1578
        %1580 = vrot.lane.b32.xlu0 %v1568, 3
        %v1581 = vpop.permute.xlu0 %1580
        %1582 = vrot.lane.b32.xlu0 %v1569, 3
        %v1583 = vpop.permute.xlu0 %1582
        %1584 = vrot.lane.b32.xlu0 %v1570, 3
        %v1585 = vpop.permute.xlu0 %1584
        %1586 = vrot.lane.b32.xlu0 %v1186, 3
        %v1587 = vpop.permute.xlu0 %1586
        %1588 = vrot.lane.b32.xlu0 %v1571, 3
        %v1589 = vpop.permute.xlu0 %1588
        %v1590 = vrot.slane %v669, 4
        %v1591 = vrot.slane %v671, 5
        %v1592 = vor.u32 %v1590, %v1591
        %v1593 = vrot.slane %v679, 4
        %v1594 = vrot.slane %v681, 5
        %v1595 = vor.u32 %v1593, %v1594
        %v1596 = vrot.slane %v689, 4
        %v1597 = vrot.slane %v691, 5
        %v1598 = vor.u32 %v1596, %v1597
        %v1599 = vrot.slane %v699, 4
        %v1600 = vrot.slane %v701, 5
        %v1601 = vor.u32 %v1599, %v1600
        %v1602 = vrot.slane %v709, 4
        %v1603 = vrot.slane %v711, 5
        %v1604 = vor.u32 %v1602, %v1603
        %v1605 = vrot.slane %v719, 4
        %v1606 = vrot.slane %v721, 5
        %v1607 = vor.u32 %v1605, %v1606
        %v1608 = vrot.slane %v1177, 4
        %v1609 = vrot.slane %v1179, 5
        %v1610 = vor.u32 %v1608, %v1609
        %v1611 = vshrl.u32 %v619, 16
        %v1613 = vrot.slane %v1611, 4
        %v1614 = vshll.u32 %v619, 16
        %v1616 = vrot.slane %v1614, 5
        %v1617 = vor.u32 %v1613, %v1616
        %1618 = vrot.lane.b32.xlu0 %v1592, 6
        %v1619 = vpop.permute.xlu0 %1618
        %1620 = vrot.lane.b32.xlu0 %v1595, 6
        %v1621 = vpop.permute.xlu0 %1620
        %1622 = vrot.lane.b32.xlu0 %v1598, 6
        %v1623 = vpop.permute.xlu0 %1622
        %1624 = vrot.lane.b32.xlu0 %v1601, 6
        %v1625 = vpop.permute.xlu0 %1624
        %1626 = vrot.lane.b32.xlu0 %v1604, 6
        %v1627 = vpop.permute.xlu0 %1626
        %1628 = vrot.lane.b32.xlu0 %v1607, 6
        %v1629 = vpop.permute.xlu0 %1628
        %1630 = vrot.lane.b32.xlu0 %v1610, 6
        %v1631 = vpop.permute.xlu0 %1630
        %1632 = vrot.lane.b32.xlu0 %v1617, 6
        %v1633 = vpop.permute.xlu0 %1632
        %vm1636 = vcmask 1042432
        %v1637 = vrot.slane %v605, 5
        %v1638 = vrot.slane %v634, 5
        %v1639 = vsel %vm1636, %v1637, %v1638
        %v1640 = vrot.slane %v607, 5
        %v1641 = vrot.slane %v635, 5
        %v1642 = vsel %vm1636, %v1640, %v1641
        %v1643 = vrot.slane %v609, 5
        %v1644 = vrot.slane %v636, 5
        %v1645 = vsel %vm1636, %v1643, %v1644
        %v1646 = vrot.slane %v611, 5
        %v1647 = vrot.slane %v637, 5
        %v1648 = vsel %vm1636, %v1646, %v1647
        %v1649 = vrot.slane %v613, 5
        %v1650 = vrot.slane %v638, 5
        %v1651 = vsel %vm1636, %v1649, %v1650
        %v1652 = vrot.slane %v615, 5
        %v1653 = vrot.slane %v639, 5
        %v1654 = vsel %vm1636, %v1652, %v1653
        %v1655 = vrot.slane %v617, 5
        %v1656 = vrot.slane %v640, 5
        %v1657 = vsel %vm1636, %v1655, %v1656
        %v1658 = vrot.slane %v619, 5
        %v1659 = vrot.slane %v641, 5
        %v1660 = vsel %vm1636, %v1658, %v1659
        %1661 = vrot.lane.b32.xlu0 %v1637, 9
        %v1662 = vpop.permute.xlu0 %1661
        %1663 = vrot.lane.b32.xlu0 %v1639, 9
        %v1664 = vpop.permute.xlu0 %1663
        %1665 = vrot.lane.b32.xlu0 %v1640, 9
        %v1666 = vpop.permute.xlu0 %1665
        %1667 = vrot.lane.b32.xlu0 %v1642, 9
        %v1668 = vpop.permute.xlu0 %1667
        %1669 = vrot.lane.b32.xlu0 %v1643, 9
        %v1670 = vpop.permute.xlu0 %1669
        %1671 = vrot.lane.b32.xlu0 %v1645, 9
        %v1672 = vpop.permute.xlu0 %1671
        %1673 = vrot.lane.b32.xlu0 %v1646, 9
        %v1674 = vpop.permute.xlu0 %1673
        %1675 = vrot.lane.b32.xlu0 %v1648, 9
        %v1676 = vpop.permute.xlu0 %1675
        %1677 = vrot.lane.b32.xlu0 %v1649, 9
        %v1678 = vpop.permute.xlu0 %1677
        %1679 = vrot.lane.b32.xlu0 %v1651, 9
        %v1680 = vpop.permute.xlu0 %1679
        %1681 = vrot.lane.b32.xlu0 %v1652, 9
        %v1682 = vpop.permute.xlu0 %1681
        %1683 = vrot.lane.b32.xlu0 %v1654, 9
        %v1684 = vpop.permute.xlu0 %1683
        %1685 = vrot.lane.b32.xlu0 %v1655, 9
        %v1686 = vpop.permute.xlu0 %1685
        %1687 = vrot.lane.b32.xlu0 %v1657, 9
        %v1688 = vpop.permute.xlu0 %1687
        %1689 = vrot.lane.b32.xlu0 %v1658, 9
        %v1690 = vpop.permute.xlu0 %1689
        %1691 = vrot.lane.b32.xlu0 %v1660, 9
        %v1692 = vpop.permute.xlu0 %1691
        %vm1693 = vsmask.f32 2304
        %v1694 = vrot.slane %v669, 5
        %v1695 = vrot.slane %v671, 6
        %v1696 = vor.u32 %v1694, %v1695
        %v1697 = vrot.slane %v824, 5
        %v1698 = vrot.slane %v675, 6
        %v1699 = vor.u32 %v1697, %v1698
        %v1700 = vsel %vm1693, %v1696, %v1699
        %v1701 = vrot.slane %v679, 5
        %v1702 = vrot.slane %v681, 6
        %v1703 = vor.u32 %v1701, %v1702
        %v1704 = vrot.slane %v833, 5
        %v1705 = vrot.slane %v685, 6
        %v1706 = vor.u32 %v1704, %v1705
        %v1707 = vsel %vm1693, %v1703, %v1706
        %v1708 = vrot.slane %v689, 5
        %v1709 = vrot.slane %v691, 6
        %v1710 = vor.u32 %v1708, %v1709
        %v1711 = vrot.slane %v842, 5
        %v1712 = vrot.slane %v695, 6
        %v1713 = vor.u32 %v1711, %v1712
        %v1714 = vsel %vm1693, %v1710, %v1713
        %v1715 = vrot.slane %v699, 5
        %v1716 = vrot.slane %v701, 6
        %v1717 = vor.u32 %v1715, %v1716
        %v1718 = vrot.slane %v851, 5
        %v1719 = vrot.slane %v705, 6
        %v1720 = vor.u32 %v1718, %v1719
        %v1721 = vsel %vm1693, %v1717, %v1720
        %v1722 = vrot.slane %v709, 5
        %v1723 = vrot.slane %v711, 6
        %v1724 = vor.u32 %v1722, %v1723
        %v1725 = vrot.slane %v860, 5
        %v1726 = vrot.slane %v715, 6
        %v1727 = vor.u32 %v1725, %v1726
        %v1728 = vsel %vm1693, %v1724, %v1727
        %v1729 = vrot.slane %v719, 5
        %v1730 = vrot.slane %v721, 6
        %v1731 = vor.u32 %v1729, %v1730
        %v1732 = vrot.slane %v869, 5
        %v1733 = vrot.slane %v725, 6
        %v1734 = vor.u32 %v1732, %v1733
        %v1735 = vsel %vm1693, %v1731, %v1734
        %v1736 = vrot.slane %v1177, 5
        %v1737 = vrot.slane %v1179, 6
        %v1738 = vor.u32 %v1736, %v1737
        %v1739 = vrot.slane %v1226, 5
        %v1740 = vrot.slane %v1183, 6
        %v1741 = vor.u32 %v1739, %v1740
        %v1742 = vsel %vm1693, %v1738, %v1741
        %v1743 = vrot.slane %v1611, 5
        %v1744 = vrot.slane %v1614, 6
        %v1745 = vor.u32 %v1743, %v1744
        %v1746 = vshrl.u32 %v641, 16
        %v1748 = vrot.slane %v1746, 5
        %v1749 = vshll.u32 %v641, 16
        %v1751 = vrot.slane %v1749, 6
        %v1752 = vor.u32 %v1748, %v1751
        %v1753 = vsel %vm1693, %v1745, %v1752
        %1754 = vrot.lane.b32.xlu0 %v1696, 12
        %v1755 = vpop.permute.xlu0 %1754
        %1756 = vrot.lane.b32.xlu0 %v1700, 12
        %v1757 = vpop.permute.xlu0 %1756
        %1758 = vrot.lane.b32.xlu0 %v1703, 12
        %v1759 = vpop.permute.xlu0 %1758
        %1760 = vrot.lane.b32.xlu0 %v1707, 12
        %v1761 = vpop.permute.xlu0 %1760
        %1762 = vrot.lane.b32.xlu0 %v1710, 12
        %v1763 = vpop.permute.xlu0 %1762
        %1764 = vrot.lane.b32.xlu0 %v1714, 12
        %v1765 = vpop.permute.xlu0 %1764
        %1766 = vrot.lane.b32.xlu0 %v1717, 12
        %v1767 = vpop.permute.xlu0 %1766
        %1768 = vrot.lane.b32.xlu0 %v1721, 12
        %v1769 = vpop.permute.xlu0 %1768
        %1770 = vrot.lane.b32.xlu0 %v1724, 12
        %v1771 = vpop.permute.xlu0 %1770
        %1772 = vrot.lane.b32.xlu0 %v1728, 12
        %v1773 = vpop.permute.xlu0 %1772
        %1774 = vrot.lane.b32.xlu0 %v1731, 12
        %v1775 = vpop.permute.xlu0 %1774
        %1776 = vrot.lane.b32.xlu0 %v1735, 12
        %v1777 = vpop.permute.xlu0 %1776
        %1778 = vrot.lane.b32.xlu0 %v1738, 12
        %v1779 = vpop.permute.xlu0 %1778
        %1780 = vrot.lane.b32.xlu0 %v1742, 12
        %v1781 = vpop.permute.xlu0 %1780
        %1782 = vrot.lane.b32.xlu0 %v1745, 12
        %v1783 = vpop.permute.xlu0 %1782
        %1784 = vrot.lane.b32.xlu0 %v1753, 12
        %v1785 = vpop.permute.xlu0 %1784
        %vm1786 = vcmask 1041408
        %v1787 = vrot.slane %v605, 6
        %v1788 = vrot.slane %v634, 6
        %v1789 = vsel %vm1786, %v1787, %v1788
        %v1790 = vrot.slane %v607, 6
        %v1791 = vrot.slane %v635, 6
        %v1792 = vsel %vm1786, %v1790, %v1791
        %v1793 = vrot.slane %v609, 6
        %v1794 = vrot.slane %v636, 6
        %v1795 = vsel %vm1786, %v1793, %v1794
        %v1796 = vrot.slane %v611, 6
        %v1797 = vrot.slane %v637, 6
        %v1798 = vsel %vm1786, %v1796, %v1797
        %v1799 = vrot.slane %v613, 6
        %v1800 = vrot.slane %v638, 6
        %v1801 = vsel %vm1786, %v1799, %v1800
        %v1802 = vrot.slane %v615, 6
        %v1803 = vrot.slane %v639, 6
        %v1804 = vsel %vm1786, %v1802, %v1803
        %v1805 = vrot.slane %v617, 6
        %v1806 = vrot.slane %v640, 6
        %v1807 = vsel %vm1786, %v1805, %v1806
        %v1808 = vrot.slane %v619, 6
        %v1809 = vrot.slane %v641, 6
        %v1810 = vsel %vm1786, %v1808, %v1809
        %1811 = vrot.lane.b32.xlu0 %v1787, 15
        %v1812 = vpop.permute.xlu0 %1811
        %1813 = vrot.lane.b32.xlu0 %v1789, 15
        %v1814 = vpop.permute.xlu0 %1813
        %1815 = vrot.lane.b32.xlu0 %v1790, 15
        %v1816 = vpop.permute.xlu0 %1815
        %1817 = vrot.lane.b32.xlu0 %v1792, 15
        %v1818 = vpop.permute.xlu0 %1817
        %1819 = vrot.lane.b32.xlu0 %v1793, 15
        %v1820 = vpop.permute.xlu0 %1819
        %1821 = vrot.lane.b32.xlu0 %v1795, 15
        %v1822 = vpop.permute.xlu0 %1821
        %1823 = vrot.lane.b32.xlu0 %v1796, 15
        %v1824 = vpop.permute.xlu0 %1823
        %1825 = vrot.lane.b32.xlu0 %v1798, 15
        %v1826 = vpop.permute.xlu0 %1825
        %1827 = vrot.lane.b32.xlu0 %v1799, 15
        %v1828 = vpop.permute.xlu0 %1827
        %1829 = vrot.lane.b32.xlu0 %v1801, 15
        %v1830 = vpop.permute.xlu0 %1829
        %1831 = vrot.lane.b32.xlu0 %v1802, 15
        %v1832 = vpop.permute.xlu0 %1831
        %1833 = vrot.lane.b32.xlu0 %v1804, 15
        %v1834 = vpop.permute.xlu0 %1833
        %1835 = vrot.lane.b32.xlu0 %v1805, 15
        %v1836 = vpop.permute.xlu0 %1835
        %1837 = vrot.lane.b32.xlu0 %v1807, 15
        %v1838 = vpop.permute.xlu0 %1837
        %1839 = vrot.lane.b32.xlu0 %v1808, 15
        %v1840 = vpop.permute.xlu0 %1839
        %1841 = vrot.lane.b32.xlu0 %v1810, 15
        %v1842 = vpop.permute.xlu0 %1841
        %vm1843 = vsmask.f32 1280
        %v1844 = vrot.slane %v669, 6
        %v1845 = vrot.slane %v671, 7
        %v1846 = vor.u32 %v1844, %v1845
        %v1847 = vrot.slane %v824, 6
        %v1848 = vrot.slane %v675, 7
        %v1849 = vor.u32 %v1847, %v1848
        %v1850 = vsel %vm1843, %v1846, %v1849
        %v1851 = vrot.slane %v679, 6
        %v1852 = vrot.slane %v681, 7
        %v1853 = vor.u32 %v1851, %v1852
        %v1854 = vrot.slane %v833, 6
        %v1855 = vrot.slane %v685, 7
        %v1856 = vor.u32 %v1854, %v1855
        %v1857 = vsel %vm1843, %v1853, %v1856
        %v1858 = vrot.slane %v689, 6
        %v1859 = vrot.slane %v691, 7
        %v1860 = vor.u32 %v1858, %v1859
        %v1861 = vrot.slane %v842, 6
        %v1862 = vrot.slane %v695, 7
        %v1863 = vor.u32 %v1861, %v1862
        %v1864 = vsel %vm1843, %v1860, %v1863
        %v1865 = vrot.slane %v699, 6
        %v1866 = vrot.slane %v701, 7
        %v1867 = vor.u32 %v1865, %v1866
        %v1868 = vrot.slane %v851, 6
        %v1869 = vrot.slane %v705, 7
        %v1870 = vor.u32 %v1868, %v1869
        %v1871 = vsel %vm1843, %v1867, %v1870
        %v1872 = vrot.slane %v709, 6
        %v1873 = vrot.slane %v711, 7
        %v1874 = vor.u32 %v1872, %v1873
        %v1875 = vrot.slane %v860, 6
        %v1876 = vrot.slane %v715, 7
        %v1877 = vor.u32 %v1875, %v1876
        %v1878 = vsel %vm1843, %v1874, %v1877
        %v1879 = vrot.slane %v719, 6
        %v1880 = vrot.slane %v721, 7
        %v1881 = vor.u32 %v1879, %v1880
        %v1882 = vrot.slane %v869, 6
        %v1883 = vrot.slane %v725, 7
        %v1884 = vor.u32 %v1882, %v1883
        %v1885 = vsel %vm1843, %v1881, %v1884
        %v1886 = vrot.slane %v1177, 6
        %v1887 = vrot.slane %v1179, 7
        %v1888 = vor.u32 %v1886, %v1887
        %v1889 = vrot.slane %v1226, 6
        %v1890 = vrot.slane %v1183, 7
        %v1891 = vor.u32 %v1889, %v1890
        %v1892 = vsel %vm1843, %v1888, %v1891
        %v1893 = vrot.slane %v1611, 6
        %v1894 = vrot.slane %v1614, 7
        %v1895 = vor.u32 %v1893, %v1894
        %v1896 = vrot.slane %v1746, 6
        %v1897 = vrot.slane %v1749, 7
        %v1898 = vor.u32 %v1896, %v1897
        %v1899 = vsel %vm1843, %v1895, %v1898
        %1900 = vrot.lane.b32.xlu0 %v1846, 18
        %v1901 = vpop.permute.xlu0 %1900
        %1902 = vrot.lane.b32.xlu0 %v1850, 18
        %v1903 = vpop.permute.xlu0 %1902
        %1904 = vrot.lane.b32.xlu0 %v1853, 18
        %v1905 = vpop.permute.xlu0 %1904
        %1906 = vrot.lane.b32.xlu0 %v1857, 18
        %v1907 = vpop.permute.xlu0 %1906
        %1908 = vrot.lane.b32.xlu0 %v1860, 18
        %v1909 = vpop.permute.xlu0 %1908
        %1910 = vrot.lane.b32.xlu0 %v1864, 18
        %v1911 = vpop.permute.xlu0 %1910
        %1912 = vrot.lane.b32.xlu0 %v1867, 18
        %v1913 = vpop.permute.xlu0 %1912
        %1914 = vrot.lane.b32.xlu0 %v1871, 18
        %v1915 = vpop.permute.xlu0 %1914
        %1916 = vrot.lane.b32.xlu0 %v1874, 18
        %v1917 = vpop.permute.xlu0 %1916
        %1918 = vrot.lane.b32.xlu0 %v1878, 18
        %v1919 = vpop.permute.xlu0 %1918
        %1920 = vrot.lane.b32.xlu0 %v1881, 18
        %v1921 = vpop.permute.xlu0 %1920
        %1922 = vrot.lane.b32.xlu0 %v1885, 18
        %v1923 = vpop.permute.xlu0 %1922
        %1924 = vrot.lane.b32.xlu0 %v1888, 18
        %v1925 = vpop.permute.xlu0 %1924
        %1926 = vrot.lane.b32.xlu0 %v1892, 18
        %v1927 = vpop.permute.xlu0 %1926
        %1928 = vrot.lane.b32.xlu0 %v1895, 18
        %v1929 = vpop.permute.xlu0 %1928
        %1930 = vrot.lane.b32.xlu0 %v1899, 18
        %v1931 = vpop.permute.xlu0 %1930
        %vm1932 = vcmask 1040384
        %v1933 = vrot.slane %v605, 7
        %v1934 = vrot.slane %v634, 7
        %v1935 = vsel %vm1932, %v1933, %v1934
        %v1936 = vrot.slane %v607, 7
        %v1937 = vrot.slane %v635, 7
        %v1938 = vsel %vm1932, %v1936, %v1937
        %v1939 = vrot.slane %v609, 7
        %v1940 = vrot.slane %v636, 7
        %v1941 = vsel %vm1932, %v1939, %v1940
        %v1942 = vrot.slane %v611, 7
        %v1943 = vrot.slane %v637, 7
        %v1944 = vsel %vm1932, %v1942, %v1943
        %v1945 = vrot.slane %v613, 7
        %v1946 = vrot.slane %v638, 7
        %v1947 = vsel %vm1932, %v1945, %v1946
        %v1948 = vrot.slane %v615, 7
        %v1949 = vrot.slane %v639, 7
        %v1950 = vsel %vm1932, %v1948, %v1949
        %v1951 = vrot.slane %v617, 7
        %v1952 = vrot.slane %v640, 7
        %v1953 = vsel %vm1932, %v1951, %v1952
        %v1954 = vrot.slane %v619, 7
        %v1955 = vrot.slane %v641, 7
        %v1956 = vsel %vm1932, %v1954, %v1955
        %1957 = vrot.lane.b32.xlu0 %v1933, 21
        %v1958 = vpop.permute.xlu0 %1957
        %1959 = vrot.lane.b32.xlu0 %v1935, 21
        %v1960 = vpop.permute.xlu0 %1959
        %1961 = vrot.lane.b32.xlu0 %v1936, 21
        %v1962 = vpop.permute.xlu0 %1961
        %1963 = vrot.lane.b32.xlu0 %v1938, 21
        %v1964 = vpop.permute.xlu0 %1963
        %1965 = vrot.lane.b32.xlu0 %v1939, 21
        %v1966 = vpop.permute.xlu0 %1965
        %1967 = vrot.lane.b32.xlu0 %v1941, 21
        %v1968 = vpop.permute.xlu0 %1967
        %1969 = vrot.lane.b32.xlu0 %v1942, 21
        %v1970 = vpop.permute.xlu0 %1969
        %1971 = vrot.lane.b32.xlu0 %v1944, 21
        %v1972 = vpop.permute.xlu0 %1971
        %1973 = vrot.lane.b32.xlu0 %v1945, 21
        %v1974 = vpop.permute.xlu0 %1973
        %1975 = vrot.lane.b32.xlu0 %v1947, 21
        %v1976 = vpop.permute.xlu0 %1975
        %1977 = vrot.lane.b32.xlu0 %v1948, 21
        %v1978 = vpop.permute.xlu0 %1977
        %1979 = vrot.lane.b32.xlu0 %v1950, 21
        %v1980 = vpop.permute.xlu0 %1979
        %1981 = vrot.lane.b32.xlu0 %v1951, 21
        %v1982 = vpop.permute.xlu0 %1981
        %1983 = vrot.lane.b32.xlu0 %v1953, 21
        %v1984 = vpop.permute.xlu0 %1983
        %1985 = vrot.lane.b32.xlu0 %v1954, 21
        %v1986 = vpop.permute.xlu0 %1985
        %1987 = vrot.lane.b32.xlu0 %v1956, 21
        %v1988 = vpop.permute.xlu0 %1987
        %vm1989 = vsmask.f32 256
        %v1990 = vrot.slane %v669, 7
        %v1991 = vor.u32 %v1990, %v671
        %v1992 = vrot.slane %v824, 7
        %v1993 = vor.u32 %v1992, %v675
        %v1994 = vsel %vm1989, %v1990, %v1993
        %v1995 = vrot.slane %v679, 7
        %v1996 = vor.u32 %v1995, %v681
        %v1997 = vrot.slane %v833, 7
        %v1998 = vor.u32 %v1997, %v685
        %v1999 = vsel %vm1989, %v1995, %v1998
        %v2000 = vrot.slane %v689, 7
        %v2001 = vor.u32 %v2000, %v691
        %v2002 = vrot.slane %v842, 7
        %v2003 = vor.u32 %v2002, %v695
        %v2004 = vsel %vm1989, %v2000, %v2003
        %v2005 = vrot.slane %v699, 7
        %v2006 = vor.u32 %v2005, %v701
        %v2007 = vrot.slane %v851, 7
        %v2008 = vor.u32 %v2007, %v705
        %v2009 = vsel %vm1989, %v2005, %v2008
        %v2010 = vrot.slane %v709, 7
        %v2011 = vor.u32 %v2010, %v711
        %v2012 = vrot.slane %v860, 7
        %v2013 = vor.u32 %v2012, %v715
        %v2014 = vsel %vm1989, %v2010, %v2013
        %v2015 = vrot.slane %v719, 7
        %v2016 = vor.u32 %v2015, %v721
        %v2017 = vrot.slane %v869, 7
        %v2018 = vor.u32 %v2017, %v725
        %v2019 = vsel %vm1989, %v2015, %v2018
        %v2020 = vrot.slane %v1177, 7
        %v2021 = vor.u32 %v2020, %v1179
        %v2022 = vrot.slane %v1226, 7
        %v2023 = vor.u32 %v2022, %v1183
        %v2024 = vsel %vm1989, %v2020, %v2023
        %v2025 = vrot.slane %v1611, 7
        %v2026 = vor.u32 %v2025, %v1614
        %v2027 = vrot.slane %v1746, 7
        %v2028 = vor.u32 %v2027, %v1749
        %v2029 = vsel %vm1989, %v2025, %v2028
        %2030 = vrot.lane.b32.xlu0 %v1991, 24
        %v2031 = vpop.permute.xlu0 %2030
        %2032 = vrot.lane.b32.xlu0 %v1994, 24
        %v2033 = vpop.permute.xlu0 %2032
        %2034 = vrot.lane.b32.xlu0 %v1996, 24
        %v2035 = vpop.permute.xlu0 %2034
        %2036 = vrot.lane.b32.xlu0 %v1999, 24
        %v2037 = vpop.permute.xlu0 %2036
        %2038 = vrot.lane.b32.xlu0 %v2001, 24
        %v2039 = vpop.permute.xlu0 %2038
        %2040 = vrot.lane.b32.xlu0 %v2004, 24
        %v2041 = vpop.permute.xlu0 %2040
        %2042 = vrot.lane.b32.xlu0 %v2006, 24
        %v2043 = vpop.permute.xlu0 %2042
        %2044 = vrot.lane.b32.xlu0 %v2009, 24
        %v2045 = vpop.permute.xlu0 %2044
        %2046 = vrot.lane.b32.xlu0 %v2011, 24
        %v2047 = vpop.permute.xlu0 %2046
        %2048 = vrot.lane.b32.xlu0 %v2014, 24
        %v2049 = vpop.permute.xlu0 %2048
        %2050 = vrot.lane.b32.xlu0 %v2016, 24
        %v2051 = vpop.permute.xlu0 %2050
        %2052 = vrot.lane.b32.xlu0 %v2019, 24
        %v2053 = vpop.permute.xlu0 %2052
        %2054 = vrot.lane.b32.xlu0 %v2021, 24
        %v2055 = vpop.permute.xlu0 %2054
        %2056 = vrot.lane.b32.xlu0 %v2024, 24
        %v2057 = vpop.permute.xlu0 %2056
        %2058 = vrot.lane.b32.xlu0 %v2026, 24
        %v2059 = vpop.permute.xlu0 %2058
        %2060 = vrot.lane.b32.xlu0 %v2029, 24
        %v2061 = vpop.permute.xlu0 %2060
        %2062 = vrot.lane.b32.xlu0 %v634, 27
        %v2063 = vpop.permute.xlu0 %2062
        %2064 = vrot.lane.b32.xlu0 %v635, 27
        %v2065 = vpop.permute.xlu0 %2064
        %2066 = vrot.lane.b32.xlu0 %v636, 27
        %v2067 = vpop.permute.xlu0 %2066
        %2068 = vrot.lane.b32.xlu0 %v637, 27
        %v2069 = vpop.permute.xlu0 %2068
        %2070 = vrot.lane.b32.xlu0 %v638, 27
        %v2071 = vpop.permute.xlu0 %2070
        %2072 = vrot.lane.b32.xlu0 %v639, 27
        %v2073 = vpop.permute.xlu0 %2072
        %2074 = vrot.lane.b32.xlu0 %v640, 27
        %v2075 = vpop.permute.xlu0 %2074
        %2076 = vrot.lane.b32.xlu0 %v619, 27
        %v2077 = vpop.permute.xlu0 %2076
        %2078 = vrot.lane.b32.xlu0 %v641, 27
        %v2079 = vpop.permute.xlu0 %2078
        %v2080 = vrot.slane %v1614, 1
        %v2081 = vor.u32 %v1611, %v2080
        %v2082 = vrot.slane %v1749, 1
        %v2083 = vsel %vm648, %v2081, %v2082
        %v2084 = vor.u32 %v1746, %v2082
        %2085 = vrot.lane.b32.xlu0 %v1565, 30
        %v2086 = vpop.permute.xlu0 %2085
        %2087 = vrot.lane.b32.xlu0 %v1566, 30
        %v2088 = vpop.permute.xlu0 %2087
        %2089 = vrot.lane.b32.xlu0 %v1567, 30
        %v2090 = vpop.permute.xlu0 %2089
        %2091 = vrot.lane.b32.xlu0 %v1568, 30
        %v2092 = vpop.permute.xlu0 %2091
        %2093 = vrot.lane.b32.xlu0 %v1569, 30
        %v2094 = vpop.permute.xlu0 %2093
        %2095 = vrot.lane.b32.xlu0 %v1570, 30
        %v2096 = vpop.permute.xlu0 %2095
        %2097 = vrot.lane.b32.xlu0 %v1571, 30
        %v2098 = vpop.permute.xlu0 %2097
        %2099 = vrot.lane.b32.xlu0 %v2083, 30
        %v2100 = vpop.permute.xlu0 %2099
        %2101 = vrot.lane.b32.xlu0 %v2084, 30
        %v2102 = vpop.permute.xlu0 %2101
        %v2103 = vshrl.u32 %v621, 16
        %v2105 = vrot.slane %v2103, 4
        %v2106 = vshll.u32 %v621, 16
        %v2108 = vrot.slane %v2106, 5
        %v2109 = vor.u32 %v2105, %v2108
        %2110 = vrot.lane.b32.xlu0 %v1595, 33
        %v2111 = vpop.permute.xlu0 %2110
        %2112 = vrot.lane.b32.xlu0 %v1598, 33
        %v2113 = vpop.permute.xlu0 %2112
        %2114 = vrot.lane.b32.xlu0 %v1601, 33
        %v2115 = vpop.permute.xlu0 %2114
        %2116 = vrot.lane.b32.xlu0 %v1604, 33
        %v2117 = vpop.permute.xlu0 %2116
        %2118 = vrot.lane.b32.xlu0 %v1607, 33
        %v2119 = vpop.permute.xlu0 %2118
        %2120 = vrot.lane.b32.xlu0 %v1610, 33
        %v2121 = vpop.permute.xlu0 %2120
        %2122 = vrot.lane.b32.xlu0 %v1617, 33
        %v2123 = vpop.permute.xlu0 %2122
        %2124 = vrot.lane.b32.xlu0 %v2109, 33
        %v2125 = vpop.permute.xlu0 %2124
        %v2128 = vrot.slane %v621, 5
        %v2129 = vrot.slane %v642, 5
        %v2130 = vsel %vm1636, %v2128, %v2129
        %2131 = vrot.lane.b32.xlu0 %v1640, 36
        %v2132 = vpop.permute.xlu0 %2131
        %2133 = vrot.lane.b32.xlu0 %v1642, 36
        %v2134 = vpop.permute.xlu0 %2133
        %2135 = vrot.lane.b32.xlu0 %v1643, 36
        %v2136 = vpop.permute.xlu0 %2135
        %2137 = vrot.lane.b32.xlu0 %v1645, 36
        %v2138 = vpop.permute.xlu0 %2137
        %2139 = vrot.lane.b32.xlu0 %v1646, 36
        %v2140 = vpop.permute.xlu0 %2139
        %2141 = vrot.lane.b32.xlu0 %v1648, 36
        %v2142 = vpop.permute.xlu0 %2141
        %2143 = vrot.lane.b32.xlu0 %v1649, 36
        %v2144 = vpop.permute.xlu0 %2143
        %2145 = vrot.lane.b32.xlu0 %v1651, 36
        %v2146 = vpop.permute.xlu0 %2145
        %2147 = vrot.lane.b32.xlu0 %v1652, 36
        %v2148 = vpop.permute.xlu0 %2147
        %2149 = vrot.lane.b32.xlu0 %v1654, 36
        %v2150 = vpop.permute.xlu0 %2149
        %2151 = vrot.lane.b32.xlu0 %v1655, 36
        %v2152 = vpop.permute.xlu0 %2151
        %2153 = vrot.lane.b32.xlu0 %v1657, 36
        %v2154 = vpop.permute.xlu0 %2153
        %2155 = vrot.lane.b32.xlu0 %v1658, 36
        %v2156 = vpop.permute.xlu0 %2155
        %2157 = vrot.lane.b32.xlu0 %v1660, 36
        %v2158 = vpop.permute.xlu0 %2157
        %2159 = vrot.lane.b32.xlu0 %v2128, 36
        %v2160 = vpop.permute.xlu0 %2159
        %2161 = vrot.lane.b32.xlu0 %v2130, 36
        %v2162 = vpop.permute.xlu0 %2161
        %v2163 = vrot.slane %v2103, 5
        %v2164 = vrot.slane %v2106, 6
        %v2165 = vor.u32 %v2163, %v2164
        %v2166 = vshrl.u32 %v642, 16
        %v2168 = vrot.slane %v2166, 5
        %v2169 = vshll.u32 %v642, 16
        %v2171 = vrot.slane %v2169, 6
        %v2172 = vor.u32 %v2168, %v2171
        %v2173 = vsel %vm1693, %v2165, %v2172
        %2174 = vrot.lane.b32.xlu0 %v1703, 39
        %v2175 = vpop.permute.xlu0 %2174
        %2176 = vrot.lane.b32.xlu0 %v1707, 39
        %v2177 = vpop.permute.xlu0 %2176
        %2178 = vrot.lane.b32.xlu0 %v1710, 39
        %v2179 = vpop.permute.xlu0 %2178
        %2180 = vrot.lane.b32.xlu0 %v1714, 39
        %v2181 = vpop.permute.xlu0 %2180
        %2182 = vrot.lane.b32.xlu0 %v1717, 39
        %v2183 = vpop.permute.xlu0 %2182
        %2184 = vrot.lane.b32.xlu0 %v1721, 39
        %v2185 = vpop.permute.xlu0 %2184
        %2186 = vrot.lane.b32.xlu0 %v1724, 39
        %v2187 = vpop.permute.xlu0 %2186
        %2188 = vrot.lane.b32.xlu0 %v1728, 39
        %v2189 = vpop.permute.xlu0 %2188
        %2190 = vrot.lane.b32.xlu0 %v1731, 39
        %v2191 = vpop.permute.xlu0 %2190
        %2192 = vrot.lane.b32.xlu0 %v1735, 39
        %v2193 = vpop.permute.xlu0 %2192
        %2194 = vrot.lane.b32.xlu0 %v1738, 39
        %v2195 = vpop.permute.xlu0 %2194
        %2196 = vrot.lane.b32.xlu0 %v1742, 39
        %v2197 = vpop.permute.xlu0 %2196
        %2198 = vrot.lane.b32.xlu0 %v1745, 39
        %v2199 = vpop.permute.xlu0 %2198
        %2200 = vrot.lane.b32.xlu0 %v1753, 39
        %v2201 = vpop.permute.xlu0 %2200
        %2202 = vrot.lane.b32.xlu0 %v2165, 39
        %v2203 = vpop.permute.xlu0 %2202
        %2204 = vrot.lane.b32.xlu0 %v2173, 39
        %v2205 = vpop.permute.xlu0 %2204
        %v2206 = vrot.slane %v621, 6
        %v2207 = vrot.slane %v642, 6
        %v2208 = vsel %vm1786, %v2206, %v2207
        %2209 = vrot.lane.b32.xlu0 %v1790, 42
        %v2210 = vpop.permute.xlu0 %2209
        %2211 = vrot.lane.b32.xlu0 %v1792, 42
        %v2212 = vpop.permute.xlu0 %2211
        %2213 = vrot.lane.b32.xlu0 %v1793, 42
        %v2214 = vpop.permute.xlu0 %2213
        %2215 = vrot.lane.b32.xlu0 %v1795, 42
        %v2216 = vpop.permute.xlu0 %2215
        %2217 = vrot.lane.b32.xlu0 %v1796, 42
        %v2218 = vpop.permute.xlu0 %2217
        %2219 = vrot.lane.b32.xlu0 %v1798, 42
        %v2220 = vpop.permute.xlu0 %2219
        %2221 = vrot.lane.b32.xlu0 %v1799, 42
        %v2222 = vpop.permute.xlu0 %2221
        %2223 = vrot.lane.b32.xlu0 %v1801, 42
        %v2224 = vpop.permute.xlu0 %2223
        %2225 = vrot.lane.b32.xlu0 %v1802, 42
        %v2226 = vpop.permute.xlu0 %2225
        %2227 = vrot.lane.b32.xlu0 %v1804, 42
        %v2228 = vpop.permute.xlu0 %2227
        %2229 = vrot.lane.b32.xlu0 %v1805, 42
        %v2230 = vpop.permute.xlu0 %2229
        %2231 = vrot.lane.b32.xlu0 %v1807, 42
        %v2232 = vpop.permute.xlu0 %2231
        %2233 = vrot.lane.b32.xlu0 %v1808, 42
        %v2234 = vpop.permute.xlu0 %2233
        %2235 = vrot.lane.b32.xlu0 %v1810, 42
        %v2236 = vpop.permute.xlu0 %2235
        %2237 = vrot.lane.b32.xlu0 %v2206, 42
        %v2238 = vpop.permute.xlu0 %2237
        %2239 = vrot.lane.b32.xlu0 %v2208, 42
        %v2240 = vpop.permute.xlu0 %2239
        %v2241 = vrot.slane %v2103, 6
        %v2242 = vrot.slane %v2106, 7
        %v2243 = vor.u32 %v2241, %v2242
        %v2244 = vrot.slane %v2166, 6
        %v2245 = vrot.slane %v2169, 7
        %v2246 = vor.u32 %v2244, %v2245
        %v2247 = vsel %vm1843, %v2243, %v2246
        %2248 = vrot.lane.b32.xlu0 %v1853, 45
        %v2249 = vpop.permute.xlu0 %2248
        %2250 = vrot.lane.b32.xlu0 %v1857, 45
        %v2251 = vpop.permute.xlu0 %2250
        %2252 = vrot.lane.b32.xlu0 %v1860, 45
        %v2253 = vpop.permute.xlu0 %2252
        %2254 = vrot.lane.b32.xlu0 %v1864, 45
        %v2255 = vpop.permute.xlu0 %2254
        %2256 = vrot.lane.b32.xlu0 %v1867, 45
        %v2257 = vpop.permute.xlu0 %2256
        %2258 = vrot.lane.b32.xlu0 %v1871, 45
        %v2259 = vpop.permute.xlu0 %2258
        %2260 = vrot.lane.b32.xlu0 %v1874, 45
        %v2261 = vpop.permute.xlu0 %2260
        %2262 = vrot.lane.b32.xlu0 %v1878, 45
        %v2263 = vpop.permute.xlu0 %2262
        %2264 = vrot.lane.b32.xlu0 %v1881, 45
        %v2265 = vpop.permute.xlu0 %2264
        %2266 = vrot.lane.b32.xlu0 %v1885, 45
        %v2267 = vpop.permute.xlu0 %2266
        %2268 = vrot.lane.b32.xlu0 %v1888, 45
        %v2269 = vpop.permute.xlu0 %2268
        %2270 = vrot.lane.b32.xlu0 %v1892, 45
        %v2271 = vpop.permute.xlu0 %2270
        %2272 = vrot.lane.b32.xlu0 %v1895, 45
        %v2273 = vpop.permute.xlu0 %2272
        %2274 = vrot.lane.b32.xlu0 %v1899, 45
        %v2275 = vpop.permute.xlu0 %2274
        %2276 = vrot.lane.b32.xlu0 %v2243, 45
        %v2277 = vpop.permute.xlu0 %2276
        %2278 = vrot.lane.b32.xlu0 %v2247, 45
        %v2279 = vpop.permute.xlu0 %2278
        %v2281 = vsel %vm1309, %v633, %v1573
        %v2283 = vsel %vm1309, %v634, %v1575
        %v2285 = vsel %vm1309, %v635, %v1577
        %v2287 = vsel %vm1309, %v636, %v1579
        %v2289 = vsel %vm1309, %v637, %v1581
        %v2291 = vsel %vm1309, %v638, %v1583
        %v2293 = vsel %vm1309, %v639, %v1585
        %v2295 = vsel %vm1309, %v617, %v1587
        %v2297 = vsel %vm1309, %v640, %v1589
        %v2299 = vsel %vm1326, %v1313, %v1619
        %v2300 = vsel %vm1326, %v2281, %v1619
        %v2302 = vsel %vm1326, %v1315, %v1621
        %v2303 = vsel %vm1326, %v2283, %v1621
        %v2305 = vsel %vm1326, %v1317, %v1623
        %v2306 = vsel %vm1326, %v2285, %v1623
        %v2308 = vsel %vm1326, %v1319, %v1625
        %v2309 = vsel %vm1326, %v2287, %v1625
        %v2311 = vsel %vm1326, %v1321, %v1627
        %v2312 = vsel %vm1326, %v2289, %v1627
        %v2314 = vsel %vm1326, %v1323, %v1629
        %v2315 = vsel %vm1326, %v2291, %v1629
        %v2317 = vsel %vm1326, %v1325, %v1631
        %v2318 = vsel %vm1326, %v2293, %v1631
        %v2320 = vsel %vm1326, %v2295, %v1633
        %v2321 = vsel %vm1326, %v2297, %v1633
        %v2323 = vsel %vm1343, %v2299, %v1662
        %v2325 = vsel %vm1343, %v2300, %v1664
        %v2327 = vsel %vm1343, %v2302, %v1666
        %v2329 = vsel %vm1343, %v2303, %v1668
        %v2331 = vsel %vm1343, %v2305, %v1670
        %v2333 = vsel %vm1343, %v2306, %v1672
        %v2335 = vsel %vm1343, %v2308, %v1674
        %v2337 = vsel %vm1343, %v2309, %v1676
        %v2339 = vsel %vm1343, %v2311, %v1678
        %v2341 = vsel %vm1343, %v2312, %v1680
        %v2343 = vsel %vm1343, %v2314, %v1682
        %v2345 = vsel %vm1343, %v2315, %v1684
        %v2347 = vsel %vm1343, %v2317, %v1686
        %v2349 = vsel %vm1343, %v2318, %v1688
        %v2351 = vsel %vm1343, %v2320, %v1690
        %v2353 = vsel %vm1343, %v2321, %v1692
        %v2355 = vsel %vm1360, %v2323, %v1755
        %v2357 = vsel %vm1360, %v2325, %v1757
        %v2359 = vsel %vm1360, %v2327, %v1759
        %v2361 = vsel %vm1360, %v2329, %v1761
        %v2363 = vsel %vm1360, %v2331, %v1763
        %v2365 = vsel %vm1360, %v2333, %v1765
        %v2367 = vsel %vm1360, %v2335, %v1767
        %v2369 = vsel %vm1360, %v2337, %v1769
        %v2371 = vsel %vm1360, %v2339, %v1771
        %v2373 = vsel %vm1360, %v2341, %v1773
        %v2375 = vsel %vm1360, %v2343, %v1775
        %v2377 = vsel %vm1360, %v2345, %v1777
        %v2379 = vsel %vm1360, %v2347, %v1779
        %v2381 = vsel %vm1360, %v2349, %v1781
        %v2383 = vsel %vm1360, %v2351, %v1783
        %v2385 = vsel %vm1360, %v2353, %v1785
        %v2387 = vsel %vm1377, %v2355, %v1812
        %v2389 = vsel %vm1377, %v2357, %v1814
        %v2391 = vsel %vm1377, %v2359, %v1816
        %v2393 = vsel %vm1377, %v2361, %v1818
        %v2395 = vsel %vm1377, %v2363, %v1820
        %v2397 = vsel %vm1377, %v2365, %v1822
        %v2399 = vsel %vm1377, %v2367, %v1824
        %v2401 = vsel %vm1377, %v2369, %v1826
        %v2403 = vsel %vm1377, %v2371, %v1828
        %v2405 = vsel %vm1377, %v2373, %v1830
        %v2407 = vsel %vm1377, %v2375, %v1832
        %v2409 = vsel %vm1377, %v2377, %v1834
        %v2411 = vsel %vm1377, %v2379, %v1836
        %v2413 = vsel %vm1377, %v2381, %v1838
        %v2415 = vsel %vm1377, %v2383, %v1840
        %v2417 = vsel %vm1377, %v2385, %v1842
        %v2419 = vsel %vm1394, %v2387, %v1901
        %v2421 = vsel %vm1394, %v2389, %v1903
        %v2423 = vsel %vm1394, %v2391, %v1905
        %v2425 = vsel %vm1394, %v2393, %v1907
        %v2427 = vsel %vm1394, %v2395, %v1909
        %v2429 = vsel %vm1394, %v2397, %v1911
        %v2431 = vsel %vm1394, %v2399, %v1913
        %v2433 = vsel %vm1394, %v2401, %v1915
        %v2435 = vsel %vm1394, %v2403, %v1917
        %v2437 = vsel %vm1394, %v2405, %v1919
        %v2439 = vsel %vm1394, %v2407, %v1921
        %v2441 = vsel %vm1394, %v2409, %v1923
        %v2443 = vsel %vm1394, %v2411, %v1925
        %v2445 = vsel %vm1394, %v2413, %v1927
        %v2447 = vsel %vm1394, %v2415, %v1929
        %v2449 = vsel %vm1394, %v2417, %v1931
        %v2451 = vsel %vm1411, %v2419, %v1958
        %v2453 = vsel %vm1411, %v2421, %v1960
        %v2455 = vsel %vm1411, %v2423, %v1962
        %v2457 = vsel %vm1411, %v2425, %v1964
        %v2459 = vsel %vm1411, %v2427, %v1966
        %v2461 = vsel %vm1411, %v2429, %v1968
        %v2463 = vsel %vm1411, %v2431, %v1970
        %v2465 = vsel %vm1411, %v2433, %v1972
        %v2467 = vsel %vm1411, %v2435, %v1974
        %v2469 = vsel %vm1411, %v2437, %v1976
        %v2471 = vsel %vm1411, %v2439, %v1978
        %v2473 = vsel %vm1411, %v2441, %v1980
        %v2475 = vsel %vm1411, %v2443, %v1982
        %v2477 = vsel %vm1411, %v2445, %v1984
        %v2479 = vsel %vm1411, %v2447, %v1986
        %v2481 = vsel %vm1411, %v2449, %v1988
        %v2483 = vsel %vm1428, %v2451, %v2031
        %v2485 = vsel %vm1428, %v2453, %v2033
        %v2487 = vsel %vm1428, %v2455, %v2035
        %v2489 = vsel %vm1428, %v2457, %v2037
        %v2491 = vsel %vm1428, %v2459, %v2039
        %v2493 = vsel %vm1428, %v2461, %v2041
        %v2495 = vsel %vm1428, %v2463, %v2043
        %v2497 = vsel %vm1428, %v2465, %v2045
        %v2499 = vsel %vm1428, %v2467, %v2047
        %v2501 = vsel %vm1428, %v2469, %v2049
        %v2503 = vsel %vm1428, %v2471, %v2051
        %v2505 = vsel %vm1428, %v2473, %v2053
        %v2507 = vsel %vm1428, %v2475, %v2055
        %v2509 = vsel %vm1428, %v2477, %v2057
        %v2511 = vsel %vm1428, %v2479, %v2059
        %v2513 = vsel %vm1428, %v2481, %v2061
        %v2514 = vsel %vm1445, %v2483, %v1164
        %v2516 = vsel %vm1445, %v2485, %v2063
        %v2517 = vsel %vm1445, %v2487, %v1166
        %v2519 = vsel %vm1445, %v2489, %v2065
        %v2520 = vsel %vm1445, %v2491, %v1168
        %v2522 = vsel %vm1445, %v2493, %v2067
        %v2523 = vsel %vm1445, %v2495, %v1170
        %v2525 = vsel %vm1445, %v2497, %v2069
        %v2526 = vsel %vm1445, %v2499, %v1172
        %v2528 = vsel %vm1445, %v2501, %v2071
        %v2529 = vsel %vm1445, %v2503, %v1174
        %v2531 = vsel %vm1445, %v2505, %v2073
        %v2532 = vsel %vm1445, %v2507, %v1176
        %v2534 = vsel %vm1445, %v2509, %v2075
        %v2536 = vsel %vm1445, %v2511, %v2077
        %v2538 = vsel %vm1445, %v2513, %v2079
        %v2539 = vsel %vm1462, %v2514, %v1190
        %v2541 = vsel %vm1462, %v2516, %v2086
        %v2542 = vsel %vm1462, %v2517, %v1192
        %v2544 = vsel %vm1462, %v2519, %v2088
        %v2545 = vsel %vm1462, %v2520, %v1194
        %v2547 = vsel %vm1462, %v2522, %v2090
        %v2548 = vsel %vm1462, %v2523, %v1196
        %v2550 = vsel %vm1462, %v2525, %v2092
        %v2551 = vsel %vm1462, %v2526, %v1198
        %v2553 = vsel %vm1462, %v2528, %v2094
        %v2554 = vsel %vm1462, %v2529, %v1200
        %v2556 = vsel %vm1462, %v2531, %v2096
        %v2557 = vsel %vm1462, %v2532, %v1202
        %v2559 = vsel %vm1462, %v2534, %v2098
        %v2561 = vsel %vm1462, %v2536, %v2100
        %v2563 = vsel %vm1462, %v2538, %v2102
        %v2565 = vsel %vm1479, %v2539, %v2111
        %v2566 = vsel %vm1479, %v2541, %v2111
        %v2568 = vsel %vm1479, %v2542, %v2113
        %v2569 = vsel %vm1479, %v2544, %v2113
        %v2571 = vsel %vm1479, %v2545, %v2115
        %v2572 = vsel %vm1479, %v2547, %v2115
        %v2574 = vsel %vm1479, %v2548, %v2117
        %v2575 = vsel %vm1479, %v2550, %v2117
        %v2577 = vsel %vm1479, %v2551, %v2119
        %v2578 = vsel %vm1479, %v2553, %v2119
        %v2580 = vsel %vm1479, %v2554, %v2121
        %v2581 = vsel %vm1479, %v2556, %v2121
        %v2583 = vsel %vm1479, %v2557, %v2123
        %v2584 = vsel %vm1479, %v2559, %v2123
        %v2586 = vsel %vm1479, %v2561, %v2125
        %v2587 = vsel %vm1479, %v2563, %v2125
        %v2589 = vsel %vm1496, %v2565, %v2132
        %v2591 = vsel %vm1496, %v2566, %v2134
        %v2593 = vsel %vm1496, %v2568, %v2136
        %v2595 = vsel %vm1496, %v2569, %v2138
        %v2597 = vsel %vm1496, %v2571, %v2140
        %v2599 = vsel %vm1496, %v2572, %v2142
        %v2601 = vsel %vm1496, %v2574, %v2144
        %v2603 = vsel %vm1496, %v2575, %v2146
        %v2605 = vsel %vm1496, %v2577, %v2148
        %v2607 = vsel %vm1496, %v2578, %v2150
        %v2609 = vsel %vm1496, %v2580, %v2152
        %v2611 = vsel %vm1496, %v2581, %v2154
        %v2613 = vsel %vm1496, %v2583, %v2156
        %v2615 = vsel %vm1496, %v2584, %v2158
        %v2617 = vsel %vm1496, %v2586, %v2160
        %v2619 = vsel %vm1496, %v2587, %v2162
        %v2621 = vsel %vm1513, %v2589, %v2175
        %v2623 = vsel %vm1513, %v2591, %v2177
        %v2625 = vsel %vm1513, %v2593, %v2179
        %v2627 = vsel %vm1513, %v2595, %v2181
        %v2629 = vsel %vm1513, %v2597, %v2183
        %v2631 = vsel %vm1513, %v2599, %v2185
        %v2633 = vsel %vm1513, %v2601, %v2187
        %v2635 = vsel %vm1513, %v2603, %v2189
        %v2637 = vsel %vm1513, %v2605, %v2191
        %v2639 = vsel %vm1513, %v2607, %v2193
        %v2641 = vsel %vm1513, %v2609, %v2195
        %v2643 = vsel %vm1513, %v2611, %v2197
        %v2645 = vsel %vm1513, %v2613, %v2199
        %v2647 = vsel %vm1513, %v2615, %v2201
        %v2649 = vsel %vm1513, %v2617, %v2203
        %v2651 = vsel %vm1513, %v2619, %v2205
        %v2653 = vsel %vm1530, %v2621, %v2210
        %v2655 = vsel %vm1530, %v2623, %v2212
        %v2657 = vsel %vm1530, %v2625, %v2214
        %v2659 = vsel %vm1530, %v2627, %v2216
        %v2661 = vsel %vm1530, %v2629, %v2218
        %v2663 = vsel %vm1530, %v2631, %v2220
        %v2665 = vsel %vm1530, %v2633, %v2222
        %v2667 = vsel %vm1530, %v2635, %v2224
        %v2669 = vsel %vm1530, %v2637, %v2226
        %v2671 = vsel %vm1530, %v2639, %v2228
        %v2673 = vsel %vm1530, %v2641, %v2230
        %v2675 = vsel %vm1530, %v2643, %v2232
        %v2677 = vsel %vm1530, %v2645, %v2234
        %v2679 = vsel %vm1530, %v2647, %v2236
        %v2681 = vsel %vm1530, %v2649, %v2238
        %v2683 = vsel %vm1530, %v2651, %v2240
        %v2685 = vsel %vm1547, %v2653, %v2249
        %v2687 = vsel %vm1547, %v2655, %v2251
        %v2689 = vsel %vm1547, %v2657, %v2253
        %v2691 = vsel %vm1547, %v2659, %v2255
        %v2693 = vsel %vm1547, %v2661, %v2257
        %v2695 = vsel %vm1547, %v2663, %v2259
        %v2697 = vsel %vm1547, %v2665, %v2261
        %v2699 = vsel %vm1547, %v2667, %v2263
        %v2701 = vsel %vm1547, %v2669, %v2265
        %v2703 = vsel %vm1547, %v2671, %v2267
        %v2705 = vsel %vm1547, %v2673, %v2269
        %v2707 = vsel %vm1547, %v2675, %v2271
        %v2709 = vsel %vm1547, %v2677, %v2273
        %v2711 = vsel %vm1547, %v2679, %v2275
        %v2713 = vsel %vm1547, %v2681, %v2277
        %v2715 = vsel %vm1547, %v2683, %v2279
        %v2716 = vrot.slane %v2106, 1
        %v2717 = vor.u32 %v2103, %v2716
        %v2718 = vrot.slane %v2169, 1
        %v2719 = vsel %vm648, %v2717, %v2718
        %v2720 = vor.u32 %v2166, %v2718
        %2721 = vrot.lane.b32.xlu0 %v2083, 3
        %v2722 = vpop.permute.xlu0 %2721
        %2723 = vrot.lane.b32.xlu0 %v2084, 3
        %v2724 = vpop.permute.xlu0 %2723
        %2725 = vrot.lane.b32.xlu0 %v2719, 3
        %v2726 = vpop.permute.xlu0 %2725
        %2727 = vrot.lane.b32.xlu0 %v2720, 3
        %v2728 = vpop.permute.xlu0 %2727
        %v2729 = vrot.slane %v619, 1
        %v2730 = vrot.slane %v641, 1
        %v2731 = vsel %vm761, %v2729, %v2730
        %v2732 = vrot.slane %v621, 1
        %v2733 = vrot.slane %v642, 1
        %v2734 = vsel %vm761, %v2732, %v2733
        %2735 = vrot.lane.b32.xlu0 %v772, 6
        %v2736 = vpop.permute.xlu0 %2735
        %2737 = vrot.lane.b32.xlu0 %v775, 6
        %v2738 = vpop.permute.xlu0 %2737
        %2739 = vrot.lane.b32.xlu0 %v778, 6
        %v2740 = vpop.permute.xlu0 %2739
        %2741 = vrot.lane.b32.xlu0 %v781, 6
        %v2742 = vpop.permute.xlu0 %2741
        %2743 = vrot.lane.b32.xlu0 %v784, 6
        %v2744 = vpop.permute.xlu0 %2743
        %2745 = vrot.lane.b32.xlu0 %v1206, 6
        %v2746 = vpop.permute.xlu0 %2745
        %2747 = vrot.lane.b32.xlu0 %v1205, 6
        %v2748 = vpop.permute.xlu0 %2747
        %2749 = vrot.lane.b32.xlu0 %v2731, 6
        %v2750 = vpop.permute.xlu0 %2749
        %2751 = vrot.lane.b32.xlu0 %v2730, 6
        %v2752 = vpop.permute.xlu0 %2751
        %2753 = vrot.lane.b32.xlu0 %v2734, 6
        %v2754 = vpop.permute.xlu0 %2753
        %2755 = vrot.lane.b32.xlu0 %v2733, 6
        %v2756 = vpop.permute.xlu0 %2755
        %v2757 = vrot.slane %v1611, 1
        %v2758 = vrot.slane %v1614, 2
        %v2759 = vor.u32 %v2757, %v2758
        %v2760 = vrot.slane %v1746, 1
        %v2761 = vrot.slane %v1749, 2
        %v2762 = vor.u32 %v2760, %v2761
        %v2763 = vsel %vm802, %v2759, %v2762
        %v2764 = vrot.slane %v2103, 1
        %v2765 = vrot.slane %v2106, 2
        %v2766 = vor.u32 %v2764, %v2765
        %v2767 = vrot.slane %v2166, 1
        %v2768 = vrot.slane %v2169, 2
        %v2769 = vor.u32 %v2767, %v2768
        %v2770 = vsel %vm802, %v2766, %v2769
        %2771 = vrot.lane.b32.xlu0 %v837, 9
        %v2772 = vpop.permute.xlu0 %2771
        %2773 = vrot.lane.b32.xlu0 %v846, 9
        %v2774 = vpop.permute.xlu0 %2773
        %2775 = vrot.lane.b32.xlu0 %v855, 9
        %v2776 = vpop.permute.xlu0 %2775
        %2777 = vrot.lane.b32.xlu0 %v864, 9
        %v2778 = vpop.permute.xlu0 %2777
        %2779 = vrot.lane.b32.xlu0 %v873, 9
        %v2780 = vpop.permute.xlu0 %2779
        %2781 = vrot.lane.b32.xlu0 %v1231, 9
        %v2782 = vpop.permute.xlu0 %2781
        %2783 = vrot.lane.b32.xlu0 %v1230, 9
        %v2784 = vpop.permute.xlu0 %2783
        %2785 = vrot.lane.b32.xlu0 %v2763, 9
        %v2786 = vpop.permute.xlu0 %2785
        %2787 = vrot.lane.b32.xlu0 %v2762, 9
        %v2788 = vpop.permute.xlu0 %2787
        %2789 = vrot.lane.b32.xlu0 %v2770, 9
        %v2790 = vpop.permute.xlu0 %2789
        %2791 = vrot.lane.b32.xlu0 %v2769, 9
        %v2792 = vpop.permute.xlu0 %2791
        %v2793 = vshrl.u32 %v623, 16
        %v2795 = vrot.slane %v2793, 5
        %v2796 = vshll.u32 %v623, 16
        %v2798 = vrot.slane %v2796, 6
        %v2799 = vor.u32 %v2795, %v2798
        %2800 = vrot.lane.b32.xlu0 %v2165, 12
        %v2801 = vpop.permute.xlu0 %2800
        %2802 = vrot.lane.b32.xlu0 %v2799, 12
        %v2803 = vpop.permute.xlu0 %2802
        %v2806 = vrot.slane %v623, 6
        %v2807 = vrot.slane %v643, 6
        %v2808 = vsel %vm1786, %v2806, %v2807
        %2809 = vrot.lane.b32.xlu0 %v2206, 15
        %v2810 = vpop.permute.xlu0 %2809
        %2811 = vrot.lane.b32.xlu0 %v2208, 15
        %v2812 = vpop.permute.xlu0 %2811
        %2813 = vrot.lane.b32.xlu0 %v2806, 15
        %v2814 = vpop.permute.xlu0 %2813
        %2815 = vrot.lane.b32.xlu0 %v2808, 15
        %v2816 = vpop.permute.xlu0 %2815
        %v2817 = vrot.slane %v2793, 6
        %v2818 = vrot.slane %v2796, 7
        %v2819 = vor.u32 %v2817, %v2818
        %v2820 = vshrl.u32 %v643, 16
        %v2822 = vrot.slane %v2820, 6
        %v2823 = vshll.u32 %v643, 16
        %v2825 = vrot.slane %v2823, 7
        %v2826 = vor.u32 %v2822, %v2825
        %v2827 = vsel %vm1843, %v2819, %v2826
        %2828 = vrot.lane.b32.xlu0 %v2243, 18
        %v2829 = vpop.permute.xlu0 %2828
        %2830 = vrot.lane.b32.xlu0 %v2247, 18
        %v2831 = vpop.permute.xlu0 %2830
        %2832 = vrot.lane.b32.xlu0 %v2819, 18
        %v2833 = vpop.permute.xlu0 %2832
        %2834 = vrot.lane.b32.xlu0 %v2827, 18
        %v2835 = vpop.permute.xlu0 %2834
        %v2836 = vrot.slane %v621, 7
        %v2837 = vrot.slane %v642, 7
        %v2838 = vsel %vm1932, %v2836, %v2837
        %v2839 = vrot.slane %v623, 7
        %v2840 = vrot.slane %v643, 7
        %v2841 = vsel %vm1932, %v2839, %v2840
        %2842 = vrot.lane.b32.xlu0 %v2836, 21
        %v2843 = vpop.permute.xlu0 %2842
        %2844 = vrot.lane.b32.xlu0 %v2838, 21
        %v2845 = vpop.permute.xlu0 %2844
        %2846 = vrot.lane.b32.xlu0 %v2839, 21
        %v2847 = vpop.permute.xlu0 %2846
        %2848 = vrot.lane.b32.xlu0 %v2841, 21
        %v2849 = vpop.permute.xlu0 %2848
        %v2850 = vrot.slane %v2103, 7
        %v2851 = vor.u32 %v2850, %v2106
        %v2852 = vrot.slane %v2166, 7
        %v2853 = vor.u32 %v2852, %v2169
        %v2854 = vsel %vm1989, %v2850, %v2853
        %v2855 = vrot.slane %v2793, 7
        %v2856 = vor.u32 %v2855, %v2796
        %v2857 = vrot.slane %v2820, 7
        %v2858 = vor.u32 %v2857, %v2823
        %v2859 = vsel %vm1989, %v2855, %v2858
        %2860 = vrot.lane.b32.xlu0 %v2851, 24
        %v2861 = vpop.permute.xlu0 %2860
        %2862 = vrot.lane.b32.xlu0 %v2854, 24
        %v2863 = vpop.permute.xlu0 %2862
        %2864 = vrot.lane.b32.xlu0 %v2856, 24
        %v2865 = vpop.permute.xlu0 %2864
        %2866 = vrot.lane.b32.xlu0 %v2859, 24
        %v2867 = vpop.permute.xlu0 %2866
        %2868 = vrot.lane.b32.xlu0 %v621, 27
        %v2869 = vpop.permute.xlu0 %2868
        %2870 = vrot.lane.b32.xlu0 %v642, 27
        %v2871 = vpop.permute.xlu0 %2870
        %2872 = vrot.lane.b32.xlu0 %v623, 27
        %v2873 = vpop.permute.xlu0 %2872
        %2874 = vrot.lane.b32.xlu0 %v643, 27
        %v2875 = vpop.permute.xlu0 %2874
        %v2876 = vrot.slane %v2796, 1
        %v2877 = vor.u32 %v2793, %v2876
        %v2878 = vrot.slane %v2823, 1
        %v2879 = vsel %vm648, %v2877, %v2878
        %v2880 = vor.u32 %v2820, %v2878
        %2881 = vrot.lane.b32.xlu0 %v2719, 30
        %v2882 = vpop.permute.xlu0 %2881
        %2883 = vrot.lane.b32.xlu0 %v2720, 30
        %v2884 = vpop.permute.xlu0 %2883
        %2885 = vrot.lane.b32.xlu0 %v2879, 30
        %v2886 = vpop.permute.xlu0 %2885
        %2887 = vrot.lane.b32.xlu0 %v2880, 30
        %v2888 = vpop.permute.xlu0 %2887
        %v2889 = vrot.slane %v623, 1
        %v2890 = vrot.slane %v643, 1
        %v2891 = vsel %vm761, %v2889, %v2890
        %2892 = vrot.lane.b32.xlu0 %v775, 33
        %v2893 = vpop.permute.xlu0 %2892
        %2894 = vrot.lane.b32.xlu0 %v778, 33
        %v2895 = vpop.permute.xlu0 %2894
        %2896 = vrot.lane.b32.xlu0 %v781, 33
        %v2897 = vpop.permute.xlu0 %2896
        %2898 = vrot.lane.b32.xlu0 %v784, 33
        %v2899 = vpop.permute.xlu0 %2898
        %2900 = vrot.lane.b32.xlu0 %v1205, 33
        %v2901 = vpop.permute.xlu0 %2900
        %2902 = vrot.lane.b32.xlu0 %v2731, 33
        %v2903 = vpop.permute.xlu0 %2902
        %2904 = vrot.lane.b32.xlu0 %v2730, 33
        %v2905 = vpop.permute.xlu0 %2904
        %2906 = vrot.lane.b32.xlu0 %v2734, 33
        %v2907 = vpop.permute.xlu0 %2906
        %2908 = vrot.lane.b32.xlu0 %v2733, 33
        %v2909 = vpop.permute.xlu0 %2908
        %2910 = vrot.lane.b32.xlu0 %v2891, 33
        %v2911 = vpop.permute.xlu0 %2910
        %2912 = vrot.lane.b32.xlu0 %v2890, 33
        %v2913 = vpop.permute.xlu0 %2912
        %v2914 = vrot.slane %v2793, 1
        %v2915 = vrot.slane %v2796, 2
        %v2916 = vor.u32 %v2914, %v2915
        %v2917 = vrot.slane %v2820, 1
        %v2918 = vrot.slane %v2823, 2
        %v2919 = vor.u32 %v2917, %v2918
        %v2920 = vsel %vm802, %v2916, %v2919
        %2921 = vrot.lane.b32.xlu0 %v846, 36
        %v2922 = vpop.permute.xlu0 %2921
        %2923 = vrot.lane.b32.xlu0 %v855, 36
        %v2924 = vpop.permute.xlu0 %2923
        %2925 = vrot.lane.b32.xlu0 %v864, 36
        %v2926 = vpop.permute.xlu0 %2925
        %2927 = vrot.lane.b32.xlu0 %v873, 36
        %v2928 = vpop.permute.xlu0 %2927
        %2929 = vrot.lane.b32.xlu0 %v1230, 36
        %v2930 = vpop.permute.xlu0 %2929
        %2931 = vrot.lane.b32.xlu0 %v2763, 36
        %v2932 = vpop.permute.xlu0 %2931
        %2933 = vrot.lane.b32.xlu0 %v2762, 36
        %v2934 = vpop.permute.xlu0 %2933
        %2935 = vrot.lane.b32.xlu0 %v2770, 36
        %v2936 = vpop.permute.xlu0 %2935
        %2937 = vrot.lane.b32.xlu0 %v2769, 36
        %v2938 = vpop.permute.xlu0 %2937
        %2939 = vrot.lane.b32.xlu0 %v2920, 36
        %v2940 = vpop.permute.xlu0 %2939
        %2941 = vrot.lane.b32.xlu0 %v2919, 36
        %v2942 = vpop.permute.xlu0 %2941
        %v2943 = vshrl.u32 %v625, 16
        %v2945 = vrot.slane %v2943, 5
        %v2946 = vshll.u32 %v625, 16
        %v2948 = vrot.slane %v2946, 6
        %v2949 = vor.u32 %v2945, %v2948
        %2950 = vrot.lane.b32.xlu0 %v2799, 39
        %v2951 = vpop.permute.xlu0 %2950
        %2952 = vrot.lane.b32.xlu0 %v2949, 39
        %v2953 = vpop.permute.xlu0 %2952
        %v2956 = vrot.slane %v625, 6
        %v2957 = vrot.slane %v644, 6
        %v2958 = vsel %vm1786, %v2956, %v2957
        %2959 = vrot.lane.b32.xlu0 %v2806, 42
        %v2960 = vpop.permute.xlu0 %2959
        %2961 = vrot.lane.b32.xlu0 %v2808, 42
        %v2962 = vpop.permute.xlu0 %2961
        %2963 = vrot.lane.b32.xlu0 %v2956, 42
        %v2964 = vpop.permute.xlu0 %2963
        %2965 = vrot.lane.b32.xlu0 %v2958, 42
        %v2966 = vpop.permute.xlu0 %2965
        %v2967 = vrot.slane %v2943, 6
        %v2968 = vrot.slane %v2946, 7
        %v2969 = vor.u32 %v2967, %v2968
        %v2970 = vshrl.u32 %v644, 16
        %v2972 = vrot.slane %v2970, 6
        %v2973 = vshll.u32 %v644, 16
        %v2975 = vrot.slane %v2973, 7
        %v2976 = vor.u32 %v2972, %v2975
        %v2977 = vsel %vm1843, %v2969, %v2976
        %2978 = vrot.lane.b32.xlu0 %v2819, 45
        %v2979 = vpop.permute.xlu0 %2978
        %2980 = vrot.lane.b32.xlu0 %v2827, 45
        %v2981 = vpop.permute.xlu0 %2980
        %2982 = vrot.lane.b32.xlu0 %v2969, 45
        %v2983 = vpop.permute.xlu0 %2982
        %2984 = vrot.lane.b32.xlu0 %v2977, 45
        %v2985 = vpop.permute.xlu0 %2984
        %v2987 = vsel %vm1309, %v619, %v2722
        %v2989 = vsel %vm1309, %v641, %v2724
        %v2991 = vsel %vm1309, %v621, %v2726
        %v2993 = vsel %vm1309, %v642, %v2728
        %v2995 = vsel %vm1326, %v2285, %v2736
        %v2997 = vsel %vm1326, %v2287, %v2738
        %v2999 = vsel %vm1326, %v2289, %v2740
        %v3001 = vsel %vm1326, %v2291, %v2742
        %v3003 = vsel %vm1326, %v2293, %v2744
        %v3005 = vsel %vm1326, %v2295, %v2746
        %v3007 = vsel %vm1326, %v2297, %v2748
        %v3009 = vsel %vm1326, %v2987, %v2750
        %v3011 = vsel %vm1326, %v2989, %v2752
        %v3013 = vsel %vm1326, %v2991, %v2754
        %v3015 = vsel %vm1326, %v2993, %v2756
        %v3017 = vsel %vm1343, %v2995, %v2772
        %v3019 = vsel %vm1343, %v2997, %v2774
        %v3021 = vsel %vm1343, %v2999, %v2776
        %v3023 = vsel %vm1343, %v3001, %v2778
        %v3025 = vsel %vm1343, %v3003, %v2780
        %v3027 = vsel %vm1343, %v3005, %v2782
        %v3029 = vsel %vm1343, %v3007, %v2784
        %v3031 = vsel %vm1343, %v3009, %v2786
        %v3033 = vsel %vm1343, %v3011, %v2788
        %v3035 = vsel %vm1343, %v3013, %v2790
        %v3037 = vsel %vm1343, %v3015, %v2792
        %v3038 = vsel %vm1360, %v1351, %v1763
        %v3039 = vsel %vm1360, %v3017, %v1763
        %v3040 = vsel %vm1360, %v1353, %v1767
        %v3041 = vsel %vm1360, %v3019, %v1767
        %v3042 = vsel %vm1360, %v1355, %v1771
        %v3043 = vsel %vm1360, %v3021, %v1771
        %v3044 = vsel %vm1360, %v1357, %v1775
        %v3045 = vsel %vm1360, %v3023, %v1775
        %v3046 = vsel %vm1360, %v1359, %v1779
        %v3047 = vsel %vm1360, %v3025, %v1779
        %v3048 = vsel %vm1360, %v3027, %v1783
        %v3049 = vsel %vm1360, %v3029, %v1783
        %v3051 = vsel %vm1360, %v3031, %v2801
        %v3052 = vsel %vm1360, %v3033, %v2801
        %v3054 = vsel %vm1360, %v3035, %v2803
        %v3055 = vsel %vm1360, %v3037, %v2803
        %v3056 = vsel %vm1377, %v3038, %v1820
        %v3057 = vsel %vm1377, %v3039, %v1822
        %v3058 = vsel %vm1377, %v3040, %v1824
        %v3059 = vsel %vm1377, %v3041, %v1826
        %v3060 = vsel %vm1377, %v3042, %v1828
        %v3061 = vsel %vm1377, %v3043, %v1830
        %v3062 = vsel %vm1377, %v3044, %v1832
        %v3063 = vsel %vm1377, %v3045, %v1834
        %v3064 = vsel %vm1377, %v3046, %v1836
        %v3065 = vsel %vm1377, %v3047, %v1838
        %v3066 = vsel %vm1377, %v3048, %v1840
        %v3067 = vsel %vm1377, %v3049, %v1842
        %v3069 = vsel %vm1377, %v3051, %v2810
        %v3071 = vsel %vm1377, %v3052, %v2812
        %v3073 = vsel %vm1377, %v3054, %v2814
        %v3075 = vsel %vm1377, %v3055, %v2816
        %v3076 = vsel %vm1394, %v3056, %v1909
        %v3077 = vsel %vm1394, %v3057, %v1911
        %v3078 = vsel %vm1394, %v3058, %v1913
        %v3079 = vsel %vm1394, %v3059, %v1915
        %v3080 = vsel %vm1394, %v3060, %v1917
        %v3081 = vsel %vm1394, %v3061, %v1919
        %v3082 = vsel %vm1394, %v3062, %v1921
        %v3083 = vsel %vm1394, %v3063, %v1923
        %v3084 = vsel %vm1394, %v3064, %v1925
        %v3085 = vsel %vm1394, %v3065, %v1927
        %v3086 = vsel %vm1394, %v3066, %v1929
        %v3087 = vsel %vm1394, %v3067, %v1931
        %v3089 = vsel %vm1394, %v3069, %v2829
        %v3091 = vsel %vm1394, %v3071, %v2831
        %v3093 = vsel %vm1394, %v3073, %v2833
        %v3095 = vsel %vm1394, %v3075, %v2835
        %v3096 = vsel %vm1411, %v3076, %v1966
        %v3097 = vsel %vm1411, %v3077, %v1968
        %v3098 = vsel %vm1411, %v3078, %v1970
        %v3099 = vsel %vm1411, %v3079, %v1972
        %v3100 = vsel %vm1411, %v3080, %v1974
        %v3101 = vsel %vm1411, %v3081, %v1976
        %v3102 = vsel %vm1411, %v3082, %v1978
        %v3103 = vsel %vm1411, %v3083, %v1980
        %v3104 = vsel %vm1411, %v3084, %v1982
        %v3105 = vsel %vm1411, %v3085, %v1984
        %v3106 = vsel %vm1411, %v3086, %v1986
        %v3107 = vsel %vm1411, %v3087, %v1988
        %v3109 = vsel %vm1411, %v3089, %v2843
        %v3111 = vsel %vm1411, %v3091, %v2845
        %v3113 = vsel %vm1411, %v3093, %v2847
        %v3115 = vsel %vm1411, %v3095, %v2849
        %v3116 = vsel %vm1428, %v3096, %v2039
        %v3117 = vsel %vm1428, %v3097, %v2041
        %v3118 = vsel %vm1428, %v3098, %v2043
        %v3119 = vsel %vm1428, %v3099, %v2045
        %v3120 = vsel %vm1428, %v3100, %v2047
        %v3121 = vsel %vm1428, %v3101, %v2049
        %v3122 = vsel %vm1428, %v3102, %v2051
        %v3123 = vsel %vm1428, %v3103, %v2053
        %v3124 = vsel %vm1428, %v3104, %v2055
        %v3125 = vsel %vm1428, %v3105, %v2057
        %v3126 = vsel %vm1428, %v3106, %v2059
        %v3127 = vsel %vm1428, %v3107, %v2061
        %v3129 = vsel %vm1428, %v3109, %v2861
        %v3131 = vsel %vm1428, %v3111, %v2863
        %v3133 = vsel %vm1428, %v3113, %v2865
        %v3135 = vsel %vm1428, %v3115, %v2867
        %v3136 = vsel %vm1445, %v3116, %v1168
        %v3137 = vsel %vm1445, %v3117, %v2067
        %v3138 = vsel %vm1445, %v3118, %v1170
        %v3139 = vsel %vm1445, %v3119, %v2069
        %v3140 = vsel %vm1445, %v3120, %v1172
        %v3141 = vsel %vm1445, %v3121, %v2071
        %v3142 = vsel %vm1445, %v3122, %v1174
        %v3143 = vsel %vm1445, %v3123, %v2073
        %v3144 = vsel %vm1445, %v3124, %v1176
        %v3145 = vsel %vm1445, %v3125, %v2075
        %v3146 = vsel %vm1445, %v3126, %v2077
        %v3147 = vsel %vm1445, %v3127, %v2079
        %v3149 = vsel %vm1445, %v3129, %v2869
        %v3151 = vsel %vm1445, %v3131, %v2871
        %v3153 = vsel %vm1445, %v3133, %v2873
        %v3155 = vsel %vm1445, %v3135, %v2875
        %v3156 = vsel %vm1462, %v3136, %v1194
        %v3157 = vsel %vm1462, %v3137, %v2090
        %v3158 = vsel %vm1462, %v3138, %v1196
        %v3159 = vsel %vm1462, %v3139, %v2092
        %v3160 = vsel %vm1462, %v3140, %v1198
        %v3161 = vsel %vm1462, %v3141, %v2094
        %v3162 = vsel %vm1462, %v3142, %v1200
        %v3163 = vsel %vm1462, %v3143, %v2096
        %v3164 = vsel %vm1462, %v3144, %v1202
        %v3165 = vsel %vm1462, %v3145, %v2098
        %v3166 = vsel %vm1462, %v3146, %v2100
        %v3167 = vsel %vm1462, %v3147, %v2102
        %v3169 = vsel %vm1462, %v3149, %v2882
        %v3171 = vsel %vm1462, %v3151, %v2884
        %v3173 = vsel %vm1462, %v3153, %v2886
        %v3175 = vsel %vm1462, %v3155, %v2888
        %v3176 = vsel %vm1479, %v3156, %v1214
        %v3178 = vsel %vm1479, %v3157, %v2893
        %v3179 = vsel %vm1479, %v3158, %v1216
        %v3181 = vsel %vm1479, %v3159, %v2895
        %v3182 = vsel %vm1479, %v3160, %v1218
        %v3184 = vsel %vm1479, %v3161, %v2897
        %v3185 = vsel %vm1479, %v3162, %v1220
        %v3187 = vsel %vm1479, %v3163, %v2899
        %v3188 = vsel %vm1479, %v3164, %v1222
        %v3190 = vsel %vm1479, %v3165, %v2901
        %v3192 = vsel %vm1479, %v3166, %v2903
        %v3194 = vsel %vm1479, %v3167, %v2905
        %v3196 = vsel %vm1479, %v3169, %v2907
        %v3198 = vsel %vm1479, %v3171, %v2909
        %v3200 = vsel %vm1479, %v3173, %v2911
        %v3202 = vsel %vm1479, %v3175, %v2913
        %v3203 = vsel %vm1496, %v3176, %v1239
        %v3205 = vsel %vm1496, %v3178, %v2922
        %v3206 = vsel %vm1496, %v3179, %v1241
        %v3208 = vsel %vm1496, %v3181, %v2924
        %v3209 = vsel %vm1496, %v3182, %v1243
        %v3211 = vsel %vm1496, %v3184, %v2926
        %v3212 = vsel %vm1496, %v3185, %v1245
        %v3214 = vsel %vm1496, %v3187, %v2928
        %v3215 = vsel %vm1496, %v3188, %v1247
        %v3217 = vsel %vm1496, %v3190, %v2930
        %v3219 = vsel %vm1496, %v3192, %v2932
        %v3221 = vsel %vm1496, %v3194, %v2934
        %v3223 = vsel %vm1496, %v3196, %v2936
        %v3225 = vsel %vm1496, %v3198, %v2938
        %v3227 = vsel %vm1496, %v3200, %v2940
        %v3229 = vsel %vm1496, %v3202, %v2942
        %v3230 = vsel %vm1513, %v3203, %v2183
        %v3231 = vsel %vm1513, %v3205, %v2183
        %v3232 = vsel %vm1513, %v3206, %v2187
        %v3233 = vsel %vm1513, %v3208, %v2187
        %v3234 = vsel %vm1513, %v3209, %v2191
        %v3235 = vsel %vm1513, %v3211, %v2191
        %v3236 = vsel %vm1513, %v3212, %v2195
        %v3237 = vsel %vm1513, %v3214, %v2195
        %v3238 = vsel %vm1513, %v3215, %v2199
        %v3239 = vsel %vm1513, %v3217, %v2199
        %v3240 = vsel %vm1513, %v3219, %v2203
        %v3241 = vsel %vm1513, %v3221, %v2203
        %v3243 = vsel %vm1513, %v3223, %v2951
        %v3244 = vsel %vm1513, %v3225, %v2951
        %v3246 = vsel %vm1513, %v3227, %v2953
        %v3247 = vsel %vm1513, %v3229, %v2953
        %v3248 = vsel %vm1530, %v3230, %v2218
        %v3249 = vsel %vm1530, %v3231, %v2220
        %v3250 = vsel %vm1530, %v3232, %v2222
        %v3251 = vsel %vm1530, %v3233, %v2224
        %v3252 = vsel %vm1530, %v3234, %v2226
        %v3253 = vsel %vm1530, %v3235, %v2228
        %v3254 = vsel %vm1530, %v3236, %v2230
        %v3255 = vsel %vm1530, %v3237, %v2232
        %v3256 = vsel %vm1530, %v3238, %v2234
        %v3257 = vsel %vm1530, %v3239, %v2236
        %v3258 = vsel %vm1530, %v3240, %v2238
        %v3259 = vsel %vm1530, %v3241, %v2240
        %v3261 = vsel %vm1530, %v3243, %v2960
        %v3263 = vsel %vm1530, %v3244, %v2962
        %v3265 = vsel %vm1530, %v3246, %v2964
        %v3267 = vsel %vm1530, %v3247, %v2966
        %v3268 = vsel %vm1547, %v3248, %v2257
        %v3269 = vsel %vm1547, %v3249, %v2259
        %v3270 = vsel %vm1547, %v3250, %v2261
        %v3271 = vsel %vm1547, %v3251, %v2263
        %v3272 = vsel %vm1547, %v3252, %v2265
        %v3273 = vsel %vm1547, %v3253, %v2267
        %v3274 = vsel %vm1547, %v3254, %v2269
        %v3275 = vsel %vm1547, %v3255, %v2271
        %v3276 = vsel %vm1547, %v3256, %v2273
        %v3277 = vsel %vm1547, %v3257, %v2275
        %v3278 = vsel %vm1547, %v3258, %v2277
        %v3279 = vsel %vm1547, %v3259, %v2279
        %v3281 = vsel %vm1547, %v3261, %v2979
        %v3283 = vsel %vm1547, %v3263, %v2981
        %v3285 = vsel %vm1547, %v3265, %v2983
        %v3287 = vsel %vm1547, %v3267, %v2985
        %v3288 = vrot.slane %v2946, 1
        %v3289 = vor.u32 %v2943, %v3288
        %v3290 = vrot.slane %v2973, 1
        %v3291 = vsel %vm648, %v3289, %v3290
        %v3292 = vor.u32 %v2970, %v3290
        %3293 = vrot.lane.b32.xlu0 %v2879, 3
        %v3294 = vpop.permute.xlu0 %3293
        %3295 = vrot.lane.b32.xlu0 %v2880, 3
        %v3296 = vpop.permute.xlu0 %3295
        %3297 = vrot.lane.b32.xlu0 %v3291, 3
        %v3298 = vpop.permute.xlu0 %3297
        %3299 = vrot.lane.b32.xlu0 %v3292, 3
        %v3300 = vpop.permute.xlu0 %3299
        %v3301 = vrot.slane %v625, 1
        %v3302 = vrot.slane %v644, 1
        %v3303 = vsel %vm761, %v3301, %v3302
        %3304 = vrot.lane.b32.xlu0 %v2891, 6
        %v3305 = vpop.permute.xlu0 %3304
        %3306 = vrot.lane.b32.xlu0 %v2890, 6
        %v3307 = vpop.permute.xlu0 %3306
        %3308 = vrot.lane.b32.xlu0 %v3303, 6
        %v3309 = vpop.permute.xlu0 %3308
        %3310 = vrot.lane.b32.xlu0 %v3302, 6
        %v3311 = vpop.permute.xlu0 %3310
        %v3312 = vrot.slane %v2943, 1
        %v3313 = vrot.slane %v2946, 2
        %v3314 = vor.u32 %v3312, %v3313
        %v3315 = vrot.slane %v2970, 1
        %v3316 = vrot.slane %v2973, 2
        %v3317 = vor.u32 %v3315, %v3316
        %v3318 = vsel %vm802, %v3314, %v3317
        %3319 = vrot.lane.b32.xlu0 %v2920, 9
        %v3320 = vpop.permute.xlu0 %3319
        %3321 = vrot.lane.b32.xlu0 %v2919, 9
        %v3322 = vpop.permute.xlu0 %3321
        %3323 = vrot.lane.b32.xlu0 %v3318, 9
        %v3324 = vpop.permute.xlu0 %3323
        %3325 = vrot.lane.b32.xlu0 %v3317, 9
        %v3326 = vpop.permute.xlu0 %3325
        %v3327 = vrot.slane %v619, 2
        %v3328 = vrot.slane %v641, 2
        %v3329 = vsel %vm891, %v3327, %v3328
        %v3330 = vrot.slane %v621, 2
        %v3331 = vrot.slane %v642, 2
        %v3332 = vsel %vm891, %v3330, %v3331
        %v3333 = vrot.slane %v623, 2
        %v3334 = vrot.slane %v643, 2
        %v3335 = vsel %vm891, %v3333, %v3334
        %v3336 = vrot.slane %v625, 2
        %v3337 = vrot.slane %v644, 2
        %v3338 = vsel %vm891, %v3336, %v3337
        %3339 = vrot.lane.b32.xlu0 %v908, 12
        %v3340 = vpop.permute.xlu0 %3339
        %3341 = vrot.lane.b32.xlu0 %v911, 12
        %v3342 = vpop.permute.xlu0 %3341
        %3343 = vrot.lane.b32.xlu0 %v914, 12
        %v3344 = vpop.permute.xlu0 %3343
        %3345 = vrot.lane.b32.xlu0 %v1250, 12
        %v3346 = vpop.permute.xlu0 %3345
        %3347 = vrot.lane.b32.xlu0 %v1249, 12
        %v3348 = vpop.permute.xlu0 %3347
        %3349 = vrot.lane.b32.xlu0 %v3329, 12
        %v3350 = vpop.permute.xlu0 %3349
        %3351 = vrot.lane.b32.xlu0 %v3328, 12
        %v3352 = vpop.permute.xlu0 %3351
        %3353 = vrot.lane.b32.xlu0 %v3332, 12
        %v3354 = vpop.permute.xlu0 %3353
        %3355 = vrot.lane.b32.xlu0 %v3331, 12
        %v3356 = vpop.permute.xlu0 %3355
        %3357 = vrot.lane.b32.xlu0 %v3335, 12
        %v3358 = vpop.permute.xlu0 %3357
        %3359 = vrot.lane.b32.xlu0 %v3334, 12
        %v3360 = vpop.permute.xlu0 %3359
        %3361 = vrot.lane.b32.xlu0 %v3338, 12
        %v3362 = vpop.permute.xlu0 %3361
        %3363 = vrot.lane.b32.xlu0 %v3337, 12
        %v3364 = vpop.permute.xlu0 %3363
        %v3365 = vrot.slane %v1611, 2
        %v3366 = vrot.slane %v1614, 3
        %v3367 = vor.u32 %v3365, %v3366
        %v3368 = vrot.slane %v1746, 2
        %v3369 = vrot.slane %v1749, 3
        %v3370 = vor.u32 %v3368, %v3369
        %v3371 = vsel %vm932, %v3367, %v3370
        %v3372 = vrot.slane %v2103, 2
        %v3373 = vrot.slane %v2106, 3
        %v3374 = vor.u32 %v3372, %v3373
        %v3375 = vrot.slane %v2166, 2
        %v3376 = vrot.slane %v2169, 3
        %v3377 = vor.u32 %v3375, %v3376
        %v3378 = vsel %vm932, %v3374, %v3377
        %v3379 = vrot.slane %v2793, 2
        %v3380 = vrot.slane %v2796, 3
        %v3381 = vor.u32 %v3379, %v3380
        %v3382 = vrot.slane %v2820, 2
        %v3383 = vrot.slane %v2823, 3
        %v3384 = vor.u32 %v3382, %v3383
        %v3385 = vsel %vm932, %v3381, %v3384
        %v3386 = vrot.slane %v2943, 2
        %v3387 = vrot.slane %v2946, 3
        %v3388 = vor.u32 %v3386, %v3387
        %v3389 = vrot.slane %v2970, 2
        %v3390 = vrot.slane %v2973, 3
        %v3391 = vor.u32 %v3389, %v3390
        %v3392 = vsel %vm932, %v3388, %v3391
        %3393 = vrot.lane.b32.xlu0 %v973, 15
        %v3394 = vpop.permute.xlu0 %3393
        %3395 = vrot.lane.b32.xlu0 %v980, 15
        %v3396 = vpop.permute.xlu0 %3395
        %3397 = vrot.lane.b32.xlu0 %v987, 15
        %v3398 = vpop.permute.xlu0 %3397
        %3399 = vrot.lane.b32.xlu0 %v1273, 15
        %v3400 = vpop.permute.xlu0 %3399
        %3401 = vrot.lane.b32.xlu0 %v1272, 15
        %v3402 = vpop.permute.xlu0 %3401
        %3403 = vrot.lane.b32.xlu0 %v3371, 15
        %v3404 = vpop.permute.xlu0 %3403
        %3405 = vrot.lane.b32.xlu0 %v3370, 15
        %v3406 = vpop.permute.xlu0 %3405
        %3407 = vrot.lane.b32.xlu0 %v3378, 15
        %v3408 = vpop.permute.xlu0 %3407
        %3409 = vrot.lane.b32.xlu0 %v3377, 15
        %v3410 = vpop.permute.xlu0 %3409
        %3411 = vrot.lane.b32.xlu0 %v3385, 15
        %v3412 = vpop.permute.xlu0 %3411
        %3413 = vrot.lane.b32.xlu0 %v3384, 15
        %v3414 = vpop.permute.xlu0 %3413
        %3415 = vrot.lane.b32.xlu0 %v3392, 15
        %v3416 = vpop.permute.xlu0 %3415
        %3417 = vrot.lane.b32.xlu0 %v3391, 15
        %v3418 = vpop.permute.xlu0 %3417
        %v3419 = vshrl.u32 %v627, 16
        %v3421 = vrot.slane %v3419, 6
        %v3422 = vshll.u32 %v627, 16
        %v3424 = vrot.slane %v3422, 7
        %v3425 = vor.u32 %v3421, %v3424
        %3426 = vrot.lane.b32.xlu0 %v2969, 18
        %v3427 = vpop.permute.xlu0 %3426
        %3428 = vrot.lane.b32.xlu0 %v3425, 18
        %v3429 = vpop.permute.xlu0 %3428
        %v3432 = vrot.slane %v625, 7
        %v3433 = vrot.slane %v644, 7
        %v3434 = vsel %vm1932, %v3432, %v3433
        %v3435 = vrot.slane %v627, 7
        %v3436 = vrot.slane %v645, 7
        %v3437 = vsel %vm1932, %v3435, %v3436
        %3438 = vrot.lane.b32.xlu0 %v3432, 21
        %v3439 = vpop.permute.xlu0 %3438
        %3440 = vrot.lane.b32.xlu0 %v3434, 21
        %v3441 = vpop.permute.xlu0 %3440
        %3442 = vrot.lane.b32.xlu0 %v3435, 21
        %v3443 = vpop.permute.xlu0 %3442
        %3444 = vrot.lane.b32.xlu0 %v3437, 21
        %v3445 = vpop.permute.xlu0 %3444
        %v3446 = vrot.slane %v2943, 7
        %v3447 = vor.u32 %v3446, %v2946
        %v3448 = vrot.slane %v2970, 7
        %v3449 = vor.u32 %v3448, %v2973
        %v3450 = vsel %vm1989, %v3446, %v3449
        %v3451 = vrot.slane %v3419, 7
        %v3452 = vor.u32 %v3451, %v3422
        %v3453 = vshrl.u32 %v645, 16
        %v3455 = vrot.slane %v3453, 7
        %v3456 = vshll.u32 %v645, 16
        %v3458 = vor.u32 %v3455, %v3456
        %v3459 = vsel %vm1989, %v3451, %v3458
        %3460 = vrot.lane.b32.xlu0 %v3447, 24
        %v3461 = vpop.permute.xlu0 %3460
        %3462 = vrot.lane.b32.xlu0 %v3450, 24
        %v3463 = vpop.permute.xlu0 %3462
        %3464 = vrot.lane.b32.xlu0 %v3452, 24
        %v3465 = vpop.permute.xlu0 %3464
        %3466 = vrot.lane.b32.xlu0 %v3459, 24
        %v3467 = vpop.permute.xlu0 %3466
        %3468 = vrot.lane.b32.xlu0 %v625, 27
        %v3469 = vpop.permute.xlu0 %3468
        %3470 = vrot.lane.b32.xlu0 %v644, 27
        %v3471 = vpop.permute.xlu0 %3470
        %3472 = vrot.lane.b32.xlu0 %v627, 27
        %v3473 = vpop.permute.xlu0 %3472
        %3474 = vrot.lane.b32.xlu0 %v645, 27
        %v3475 = vpop.permute.xlu0 %3474
        %v3476 = vrot.slane %v3422, 1
        %v3477 = vor.u32 %v3419, %v3476
        %v3478 = vrot.slane %v3456, 1
        %v3479 = vsel %vm648, %v3477, %v3478
        %v3480 = vor.u32 %v3453, %v3478
        %3481 = vrot.lane.b32.xlu0 %v3291, 30
        %v3482 = vpop.permute.xlu0 %3481
        %3483 = vrot.lane.b32.xlu0 %v3292, 30
        %v3484 = vpop.permute.xlu0 %3483
        %3485 = vrot.lane.b32.xlu0 %v3479, 30
        %v3486 = vpop.permute.xlu0 %3485
        %3487 = vrot.lane.b32.xlu0 %v3480, 30
        %v3488 = vpop.permute.xlu0 %3487
        %v3489 = vrot.slane %v627, 1
        %v3490 = vrot.slane %v645, 1
        %v3491 = vsel %vm761, %v3489, %v3490
        %3492 = vrot.lane.b32.xlu0 %v3303, 33
        %v3493 = vpop.permute.xlu0 %3492
        %3494 = vrot.lane.b32.xlu0 %v3302, 33
        %v3495 = vpop.permute.xlu0 %3494
        %3496 = vrot.lane.b32.xlu0 %v3491, 33
        %v3497 = vpop.permute.xlu0 %3496
        %3498 = vrot.lane.b32.xlu0 %v3490, 33
        %v3499 = vpop.permute.xlu0 %3498
        %v3500 = vrot.slane %v3419, 1
        %v3501 = vrot.slane %v3422, 2
        %v3502 = vor.u32 %v3500, %v3501
        %v3503 = vrot.slane %v3453, 1
        %v3504 = vrot.slane %v3456, 2
        %v3505 = vor.u32 %v3503, %v3504
        %v3506 = vsel %vm802, %v3502, %v3505
        %3507 = vrot.lane.b32.xlu0 %v3318, 36
        %v3508 = vpop.permute.xlu0 %3507
        %3509 = vrot.lane.b32.xlu0 %v3317, 36
        %v3510 = vpop.permute.xlu0 %3509
        %3511 = vrot.lane.b32.xlu0 %v3506, 36
        %v3512 = vpop.permute.xlu0 %3511
        %3513 = vrot.lane.b32.xlu0 %v3505, 36
        %v3514 = vpop.permute.xlu0 %3513
        %v3515 = vrot.slane %v627, 2
        %v3516 = vrot.slane %v645, 2
        %v3517 = vsel %vm891, %v3515, %v3516
        %3518 = vrot.lane.b32.xlu0 %v911, 39
        %v3519 = vpop.permute.xlu0 %3518
        %3520 = vrot.lane.b32.xlu0 %v914, 39
        %v3521 = vpop.permute.xlu0 %3520
        %3522 = vrot.lane.b32.xlu0 %v1249, 39
        %v3523 = vpop.permute.xlu0 %3522
        %3524 = vrot.lane.b32.xlu0 %v3329, 39
        %v3525 = vpop.permute.xlu0 %3524
        %3526 = vrot.lane.b32.xlu0 %v3328, 39
        %v3527 = vpop.permute.xlu0 %3526
        %3528 = vrot.lane.b32.xlu0 %v3332, 39
        %v3529 = vpop.permute.xlu0 %3528
        %3530 = vrot.lane.b32.xlu0 %v3331, 39
        %v3531 = vpop.permute.xlu0 %3530
        %3532 = vrot.lane.b32.xlu0 %v3335, 39
        %v3533 = vpop.permute.xlu0 %3532
        %3534 = vrot.lane.b32.xlu0 %v3334, 39
        %v3535 = vpop.permute.xlu0 %3534
        %3536 = vrot.lane.b32.xlu0 %v3338, 39
        %v3537 = vpop.permute.xlu0 %3536
        %3538 = vrot.lane.b32.xlu0 %v3337, 39
        %v3539 = vpop.permute.xlu0 %3538
        %3540 = vrot.lane.b32.xlu0 %v3517, 39
        %v3541 = vpop.permute.xlu0 %3540
        %3542 = vrot.lane.b32.xlu0 %v3516, 39
        %v3543 = vpop.permute.xlu0 %3542
        %v3544 = vrot.slane %v3419, 2
        %v3545 = vrot.slane %v3422, 3
        %v3546 = vor.u32 %v3544, %v3545
        %v3547 = vrot.slane %v3453, 2
        %v3548 = vrot.slane %v3456, 3
        %v3549 = vor.u32 %v3547, %v3548
        %v3550 = vsel %vm932, %v3546, %v3549
        %3551 = vrot.lane.b32.xlu0 %v980, 42
        %v3552 = vpop.permute.xlu0 %3551
        %3553 = vrot.lane.b32.xlu0 %v987, 42
        %v3554 = vpop.permute.xlu0 %3553
        %3555 = vrot.lane.b32.xlu0 %v1272, 42
        %v3556 = vpop.permute.xlu0 %3555
        %3557 = vrot.lane.b32.xlu0 %v3371, 42
        %v3558 = vpop.permute.xlu0 %3557
        %3559 = vrot.lane.b32.xlu0 %v3370, 42
        %v3560 = vpop.permute.xlu0 %3559
        %3561 = vrot.lane.b32.xlu0 %v3378, 42
        %v3562 = vpop.permute.xlu0 %3561
        %3563 = vrot.lane.b32.xlu0 %v3377, 42
        %v3564 = vpop.permute.xlu0 %3563
        %3565 = vrot.lane.b32.xlu0 %v3385, 42
        %v3566 = vpop.permute.xlu0 %3565
        %3567 = vrot.lane.b32.xlu0 %v3384, 42
        %v3568 = vpop.permute.xlu0 %3567
        %3569 = vrot.lane.b32.xlu0 %v3392, 42
        %v3570 = vpop.permute.xlu0 %3569
        %3571 = vrot.lane.b32.xlu0 %v3391, 42
        %v3572 = vpop.permute.xlu0 %3571
        %3573 = vrot.lane.b32.xlu0 %v3550, 42
        %v3574 = vpop.permute.xlu0 %3573
        %3575 = vrot.lane.b32.xlu0 %v3549, 42
        %v3576 = vpop.permute.xlu0 %3575
        %v3577 = vshrl.u32 %v629, 16
        %v3579 = vrot.slane %v3577, 6
        %v3580 = vshll.u32 %v629, 16
        %v3582 = vrot.slane %v3580, 7
        %v3583 = vor.u32 %v3579, %v3582
        %3584 = vrot.lane.b32.xlu0 %v3425, 45
        %v3585 = vpop.permute.xlu0 %3584
        %3586 = vrot.lane.b32.xlu0 %v3583, 45
        %v3587 = vpop.permute.xlu0 %3586
        %v3589 = vsel %vm1309, %v623, %v3294
        %v3591 = vsel %vm1309, %v643, %v3296
        %v3593 = vsel %vm1309, %v625, %v3298
        %v3595 = vsel %vm1309, %v644, %v3300
        %v3597 = vsel %vm1326, %v3589, %v3305
        %v3599 = vsel %vm1326, %v3591, %v3307
        %v3601 = vsel %vm1326, %v3593, %v3309
        %v3603 = vsel %vm1326, %v3595, %v3311
        %v3605 = vsel %vm1343, %v3597, %v3320
        %v3607 = vsel %vm1343, %v3599, %v3322
        %v3609 = vsel %vm1343, %v3601, %v3324
        %v3611 = vsel %vm1343, %v3603, %v3326
        %v3613 = vsel %vm1360, %v3021, %v3340
        %v3615 = vsel %vm1360, %v3023, %v3342
        %v3617 = vsel %vm1360, %v3025, %v3344
        %v3619 = vsel %vm1360, %v3027, %v3346
        %v3621 = vsel %vm1360, %v3029, %v3348
        %v3623 = vsel %vm1360, %v3031, %v3350
        %v3625 = vsel %vm1360, %v3033, %v3352
        %v3627 = vsel %vm1360, %v3035, %v3354
        %v3629 = vsel %vm1360, %v3037, %v3356
        %v3631 = vsel %vm1360, %v3605, %v3358
        %v3633 = vsel %vm1360, %v3607, %v3360
        %v3635 = vsel %vm1360, %v3609, %v3362
        %v3637 = vsel %vm1360, %v3611, %v3364
        %v3639 = vsel %vm1377, %v3613, %v3394
        %v3641 = vsel %vm1377, %v3615, %v3396
        %v3643 = vsel %vm1377, %v3617, %v3398
        %v3645 = vsel %vm1377, %v3619, %v3400
        %v3647 = vsel %vm1377, %v3621, %v3402
        %v3649 = vsel %vm1377, %v3623, %v3404
        %v3651 = vsel %vm1377, %v3625, %v3406
        %v3653 = vsel %vm1377, %v3627, %v3408
        %v3655 = vsel %vm1377, %v3629, %v3410
        %v3657 = vsel %vm1377, %v3631, %v3412
        %v3659 = vsel %vm1377, %v3633, %v3414
        %v3661 = vsel %vm1377, %v3635, %v3416
        %v3663 = vsel %vm1377, %v3637, %v3418
        %v3664 = vsel %vm1394, %v1389, %v1917
        %v3665 = vsel %vm1394, %v3639, %v1917
        %v3666 = vsel %vm1394, %v1391, %v1921
        %v3667 = vsel %vm1394, %v3641, %v1921
        %v3668 = vsel %vm1394, %v1393, %v1925
        %v3669 = vsel %vm1394, %v3643, %v1925
        %v3670 = vsel %vm1394, %v3645, %v1929
        %v3671 = vsel %vm1394, %v3647, %v1929
        %v3672 = vsel %vm1394, %v3649, %v2829
        %v3673 = vsel %vm1394, %v3651, %v2829
        %v3674 = vsel %vm1394, %v3653, %v2833
        %v3675 = vsel %vm1394, %v3655, %v2833
        %v3677 = vsel %vm1394, %v3657, %v3427
        %v3678 = vsel %vm1394, %v3659, %v3427
        %v3680 = vsel %vm1394, %v3661, %v3429
        %v3681 = vsel %vm1394, %v3663, %v3429
        %v3682 = vsel %vm1411, %v3664, %v1974
        %v3683 = vsel %vm1411, %v3665, %v1976
        %v3684 = vsel %vm1411, %v3666, %v1978
        %v3685 = vsel %vm1411, %v3667, %v1980
        %v3686 = vsel %vm1411, %v3668, %v1982
        %v3687 = vsel %vm1411, %v3669, %v1984
        %v3688 = vsel %vm1411, %v3670, %v1986
        %v3689 = vsel %vm1411, %v3671, %v1988
        %v3690 = vsel %vm1411, %v3672, %v2843
        %v3691 = vsel %vm1411, %v3673, %v2845
        %v3692 = vsel %vm1411, %v3674, %v2847
        %v3693 = vsel %vm1411, %v3675, %v2849
        %v3695 = vsel %vm1411, %v3677, %v3439
        %v3697 = vsel %vm1411, %v3678, %v3441
        %v3699 = vsel %vm1411, %v3680, %v3443
        %v3701 = vsel %vm1411, %v3681, %v3445
        %v3702 = vsel %vm1428, %v3682, %v2047
        %v3703 = vsel %vm1428, %v3683, %v2049
        %v3704 = vsel %vm1428, %v3684, %v2051
        %v3705 = vsel %vm1428, %v3685, %v2053
        %v3706 = vsel %vm1428, %v3686, %v2055
        %v3707 = vsel %vm1428, %v3687, %v2057
        %v3708 = vsel %vm1428, %v3688, %v2059
        %v3709 = vsel %vm1428, %v3689, %v2061
        %v3710 = vsel %vm1428, %v3690, %v2861
        %v3711 = vsel %vm1428, %v3691, %v2863
        %v3712 = vsel %vm1428, %v3692, %v2865
        %v3713 = vsel %vm1428, %v3693, %v2867
        %v3715 = vsel %vm1428, %v3695, %v3461
        %v3717 = vsel %vm1428, %v3697, %v3463
        %v3719 = vsel %vm1428, %v3699, %v3465
        %v3721 = vsel %vm1428, %v3701, %v3467
        %v3722 = vsel %vm1445, %v3702, %v1172
        %v3723 = vsel %vm1445, %v3703, %v2071
        %v3724 = vsel %vm1445, %v3704, %v1174
        %v3725 = vsel %vm1445, %v3705, %v2073
        %v3726 = vsel %vm1445, %v3706, %v1176
        %v3727 = vsel %vm1445, %v3707, %v2075
        %v3728 = vsel %vm1445, %v3708, %v2077
        %v3729 = vsel %vm1445, %v3709, %v2079
        %v3730 = vsel %vm1445, %v3710, %v2869
        %v3731 = vsel %vm1445, %v3711, %v2871
        %v3732 = vsel %vm1445, %v3712, %v2873
        %v3733 = vsel %vm1445, %v3713, %v2875
        %v3735 = vsel %vm1445, %v3715, %v3469
        %v3737 = vsel %vm1445, %v3717, %v3471
        %v3739 = vsel %vm1445, %v3719, %v3473
        %v3741 = vsel %vm1445, %v3721, %v3475
        %v3742 = vsel %vm1462, %v3722, %v1198
        %v3743 = vsel %vm1462, %v3723, %v2094
        %v3744 = vsel %vm1462, %v3724, %v1200
        %v3745 = vsel %vm1462, %v3725, %v2096
        %v3746 = vsel %vm1462, %v3726, %v1202
        %v3747 = vsel %vm1462, %v3727, %v2098
        %v3748 = vsel %vm1462, %v3728, %v2100
        %v3749 = vsel %vm1462, %v3729, %v2102
        %v3750 = vsel %vm1462, %v3730, %v2882
        %v3751 = vsel %vm1462, %v3731, %v2884
        %v3752 = vsel %vm1462, %v3732, %v2886
        %v3753 = vsel %vm1462, %v3733, %v2888
        %v3755 = vsel %vm1462, %v3735, %v3482
        %v3757 = vsel %vm1462, %v3737, %v3484
        %v3759 = vsel %vm1462, %v3739, %v3486
        %v3761 = vsel %vm1462, %v3741, %v3488
        %v3762 = vsel %vm1479, %v3742, %v1218
        %v3763 = vsel %vm1479, %v3743, %v2897
        %v3764 = vsel %vm1479, %v3744, %v1220
        %v3765 = vsel %vm1479, %v3745, %v2899
        %v3766 = vsel %vm1479, %v3746, %v1222
        %v3767 = vsel %vm1479, %v3747, %v2901
        %v3768 = vsel %vm1479, %v3748, %v2903
        %v3769 = vsel %vm1479, %v3749, %v2905
        %v3770 = vsel %vm1479, %v3750, %v2907
        %v3771 = vsel %vm1479, %v3751, %v2909
        %v3772 = vsel %vm1479, %v3752, %v2911
        %v3773 = vsel %vm1479, %v3753, %v2913
        %v3775 = vsel %vm1479, %v3755, %v3493
        %v3777 = vsel %vm1479, %v3757, %v3495
        %v3779 = vsel %vm1479, %v3759, %v3497
        %v3781 = vsel %vm1479, %v3761, %v3499
        %v3782 = vsel %vm1496, %v3762, %v1243
        %v3783 = vsel %vm1496, %v3763, %v2926
        %v3784 = vsel %vm1496, %v3764, %v1245
        %v3785 = vsel %vm1496, %v3765, %v2928
        %v3786 = vsel %vm1496, %v3766, %v1247
        %v3787 = vsel %vm1496, %v3767, %v2930
        %v3788 = vsel %vm1496, %v3768, %v2932
        %v3789 = vsel %vm1496, %v3769, %v2934
        %v3790 = vsel %vm1496, %v3770, %v2936
        %v3791 = vsel %vm1496, %v3771, %v2938
        %v3792 = vsel %vm1496, %v3772, %v2940
        %v3793 = vsel %vm1496, %v3773, %v2942
        %v3795 = vsel %vm1496, %v3775, %v3508
        %v3797 = vsel %vm1496, %v3777, %v3510
        %v3799 = vsel %vm1496, %v3779, %v3512
        %v3801 = vsel %vm1496, %v3781, %v3514
        %v3802 = vsel %vm1513, %v3782, %v1262
        %v3804 = vsel %vm1513, %v3783, %v3519
        %v3805 = vsel %vm1513, %v3784, %v1264
        %v3807 = vsel %vm1513, %v3785, %v3521
        %v3808 = vsel %vm1513, %v3786, %v1266
        %v3810 = vsel %vm1513, %v3787, %v3523
        %v3812 = vsel %vm1513, %v3788, %v3525
        %v3814 = vsel %vm1513, %v3789, %v3527
        %v3816 = vsel %vm1513, %v3790, %v3529
        %v3818 = vsel %vm1513, %v3791, %v3531
        %v3820 = vsel %vm1513, %v3792, %v3533
        %v3822 = vsel %vm1513, %v3793, %v3535
        %v3824 = vsel %vm1513, %v3795, %v3537
        %v3826 = vsel %vm1513, %v3797, %v3539
        %v3828 = vsel %vm1513, %v3799, %v3541
        %v3830 = vsel %vm1513, %v3801, %v3543
        %v3831 = vsel %vm1530, %v3802, %v1285
        %v3833 = vsel %vm1530, %v3804, %v3552
        %v3834 = vsel %vm1530, %v3805, %v1287
        %v3836 = vsel %vm1530, %v3807, %v3554
        %v3837 = vsel %vm1530, %v3808, %v1289
        %v3839 = vsel %vm1530, %v3810, %v3556
        %v3841 = vsel %vm1530, %v3812, %v3558
        %v3843 = vsel %vm1530, %v3814, %v3560
        %v3845 = vsel %vm1530, %v3816, %v3562
        %v3847 = vsel %vm1530, %v3818, %v3564
        %v3849 = vsel %vm1530, %v3820, %v3566
        %v3851 = vsel %vm1530, %v3822, %v3568
        %v3853 = vsel %vm1530, %v3824, %v3570
        %v3855 = vsel %vm1530, %v3826, %v3572
        %v3857 = vsel %vm1530, %v3828, %v3574
        %v3859 = vsel %vm1530, %v3830, %v3576
        %v3860 = vsel %vm1547, %v3831, %v2265
        %v3861 = vsel %vm1547, %v3833, %v2265
        %v3862 = vsel %vm1547, %v3834, %v2269
        %v3863 = vsel %vm1547, %v3836, %v2269
        %v3864 = vsel %vm1547, %v3837, %v2273
        %v3865 = vsel %vm1547, %v3839, %v2273
        %v3866 = vsel %vm1547, %v3841, %v2277
        %v3867 = vsel %vm1547, %v3843, %v2277
        %v3868 = vsel %vm1547, %v3845, %v2979
        %v3869 = vsel %vm1547, %v3847, %v2979
        %v3870 = vsel %vm1547, %v3849, %v2983
        %v3871 = vsel %vm1547, %v3851, %v2983
        %v3873 = vsel %vm1547, %v3853, %v3585
        %v3874 = vsel %vm1547, %v3855, %v3585
        %v3876 = vsel %vm1547, %v3857, %v3587
        %v3877 = vsel %vm1547, %v3859, %v3587
        %v3878 = vrot.slane %v3580, 1
        %v3879 = vor.u32 %v3577, %v3878
        %v3880 = vshll.u32 %v646, 16
        %v3882 = vrot.slane %v3880, 1
        %v3883 = vsel %vm648, %v3879, %v3882
        %v3884 = vshrl.u32 %v646, 16
        %3886 = vrot.lane.b32.xlu0 %v869, 3
        %v3887 = vpop.permute.xlu0 %3886
        %3888 = vrot.lane.b32.xlu0 %v1226, 3
        %v3889 = vpop.permute.xlu0 %3888
        %3890 = vrot.lane.b32.xlu0 %v1746, 3
        %v3891 = vpop.permute.xlu0 %3890
        %3892 = vrot.lane.b32.xlu0 %v2166, 3
        %v3893 = vpop.permute.xlu0 %3892
        %3894 = vrot.lane.b32.xlu0 %v2820, 3
        %v3895 = vpop.permute.xlu0 %3894
        %3896 = vrot.lane.b32.xlu0 %v2970, 3
        %v3897 = vpop.permute.xlu0 %3896
        %3898 = vrot.lane.b32.xlu0 %v3479, 3
        %v3899 = vpop.permute.xlu0 %3898
        %3900 = vrot.lane.b32.xlu0 %v3453, 3
        %v3901 = vpop.permute.xlu0 %3900
        %3902 = vrot.lane.b32.xlu0 %v3883, 3
        %v3903 = vpop.permute.xlu0 %3902
        %3904 = vrot.lane.b32.xlu0 %v3884, 3
        %v3905 = vpop.permute.xlu0 %3904
        %v3908 = vrot.slane %v629, 1
        %v3909 = vrot.slane %v646, 1
        %v3910 = vsel %vm761, %v3908, %v3909
        %3911 = vrot.lane.b32.xlu0 %v3491, 6
        %v3912 = vpop.permute.xlu0 %3911
        %3913 = vrot.lane.b32.xlu0 %v3490, 6
        %v3914 = vpop.permute.xlu0 %3913
        %3915 = vrot.lane.b32.xlu0 %v3910, 6
        %v3916 = vpop.permute.xlu0 %3915
        %3917 = vrot.lane.b32.xlu0 %v3909, 6
        %v3918 = vpop.permute.xlu0 %3917
        %v3919 = vrot.slane %v3577, 1
        %v3920 = vrot.slane %v3580, 2
        %v3921 = vor.u32 %v3919, %v3920
        %v3922 = vrot.slane %v3884, 1
        %v3923 = vrot.slane %v3880, 2
        %v3924 = vor.u32 %v3922, %v3923
        %v3925 = vsel %vm802, %v3921, %v3924
        %3926 = vrot.lane.b32.xlu0 %v871, 9
        %v3927 = vpop.permute.xlu0 %3926
        %3928 = vrot.lane.b32.xlu0 %v1228, 9
        %v3929 = vpop.permute.xlu0 %3928
        %3930 = vrot.lane.b32.xlu0 %v2760, 9
        %v3931 = vpop.permute.xlu0 %3930
        %3932 = vrot.lane.b32.xlu0 %v2767, 9
        %v3933 = vpop.permute.xlu0 %3932
        %3934 = vrot.lane.b32.xlu0 %v2917, 9
        %v3935 = vpop.permute.xlu0 %3934
        %3936 = vrot.lane.b32.xlu0 %v3315, 9
        %v3937 = vpop.permute.xlu0 %3936
        %3938 = vrot.lane.b32.xlu0 %v3506, 9
        %v3939 = vpop.permute.xlu0 %3938
        %3940 = vrot.lane.b32.xlu0 %v3503, 9
        %v3941 = vpop.permute.xlu0 %3940
        %3942 = vrot.lane.b32.xlu0 %v3925, 9
        %v3943 = vpop.permute.xlu0 %3942
        %3944 = vrot.lane.b32.xlu0 %v3922, 9
        %v3945 = vpop.permute.xlu0 %3944
        %v3946 = vrot.slane %v629, 2
        %v3947 = vrot.slane %v646, 2
        %v3948 = vsel %vm891, %v3946, %v3947
        %3949 = vrot.lane.b32.xlu0 %v3517, 12
        %v3950 = vpop.permute.xlu0 %3949
        %3951 = vrot.lane.b32.xlu0 %v3516, 12
        %v3952 = vpop.permute.xlu0 %3951
        %3953 = vrot.lane.b32.xlu0 %v3948, 12
        %v3954 = vpop.permute.xlu0 %3953
        %3955 = vrot.lane.b32.xlu0 %v3947, 12
        %v3956 = vpop.permute.xlu0 %3955
        %v3957 = vrot.slane %v3577, 2
        %v3958 = vrot.slane %v3580, 3
        %v3959 = vor.u32 %v3957, %v3958
        %v3960 = vrot.slane %v3884, 2
        %v3961 = vrot.slane %v3880, 3
        %v3962 = vor.u32 %v3960, %v3961
        %v3963 = vsel %vm932, %v3959, %v3962
        %3964 = vrot.lane.b32.xlu0 %v985, 15
        %v3965 = vpop.permute.xlu0 %3964
        %3966 = vrot.lane.b32.xlu0 %v1270, 15
        %v3967 = vpop.permute.xlu0 %3966
        %3968 = vrot.lane.b32.xlu0 %v3368, 15
        %v3969 = vpop.permute.xlu0 %3968
        %3970 = vrot.lane.b32.xlu0 %v3375, 15
        %v3971 = vpop.permute.xlu0 %3970
        %3972 = vrot.lane.b32.xlu0 %v3382, 15
        %v3973 = vpop.permute.xlu0 %3972
        %3974 = vrot.lane.b32.xlu0 %v3389, 15
        %v3975 = vpop.permute.xlu0 %3974
        %3976 = vrot.lane.b32.xlu0 %v3550, 15
        %v3977 = vpop.permute.xlu0 %3976
        %3978 = vrot.lane.b32.xlu0 %v3547, 15
        %v3979 = vpop.permute.xlu0 %3978
        %3980 = vrot.lane.b32.xlu0 %v3963, 15
        %v3981 = vpop.permute.xlu0 %3980
        %3982 = vrot.lane.b32.xlu0 %v3960, 15
        %v3983 = vpop.permute.xlu0 %3982
        %v3984 = vrot.slane %v619, 3
        %v3985 = vrot.slane %v641, 3
        %v3986 = vsel %vm1005, %v3984, %v3985
        %v3987 = vrot.slane %v621, 3
        %v3988 = vrot.slane %v642, 3
        %v3989 = vsel %vm1005, %v3987, %v3988
        %v3990 = vrot.slane %v623, 3
        %v3991 = vrot.slane %v643, 3
        %v3992 = vsel %vm1005, %v3990, %v3991
        %v3993 = vrot.slane %v625, 3
        %v3994 = vrot.slane %v644, 3
        %v3995 = vsel %vm1005, %v3993, %v3994
        %v3996 = vrot.slane %v627, 3
        %v3997 = vrot.slane %v645, 3
        %v3998 = vsel %vm1005, %v3996, %v3997
        %v3999 = vrot.slane %v629, 3
        %v4000 = vrot.slane %v646, 3
        %v4001 = vsel %vm1005, %v3999, %v4000
        %4002 = vrot.lane.b32.xlu0 %v1028, 18
        %v4003 = vpop.permute.xlu0 %4002
        %4004 = vrot.lane.b32.xlu0 %v1292, 18
        %v4005 = vpop.permute.xlu0 %4004
        %4006 = vrot.lane.b32.xlu0 %v1291, 18
        %v4007 = vpop.permute.xlu0 %4006
        %4008 = vrot.lane.b32.xlu0 %v3986, 18
        %v4009 = vpop.permute.xlu0 %4008
        %4010 = vrot.lane.b32.xlu0 %v3985, 18
        %v4011 = vpop.permute.xlu0 %4010
        %4012 = vrot.lane.b32.xlu0 %v3989, 18
        %v4013 = vpop.permute.xlu0 %4012
        %4014 = vrot.lane.b32.xlu0 %v3988, 18
        %v4015 = vpop.permute.xlu0 %4014
        %4016 = vrot.lane.b32.xlu0 %v3992, 18
        %v4017 = vpop.permute.xlu0 %4016
        %4018 = vrot.lane.b32.xlu0 %v3991, 18
        %v4019 = vpop.permute.xlu0 %4018
        %4020 = vrot.lane.b32.xlu0 %v3995, 18
        %v4021 = vpop.permute.xlu0 %4020
        %4022 = vrot.lane.b32.xlu0 %v3994, 18
        %v4023 = vpop.permute.xlu0 %4022
        %4024 = vrot.lane.b32.xlu0 %v3998, 18
        %v4025 = vpop.permute.xlu0 %4024
        %4026 = vrot.lane.b32.xlu0 %v3997, 18
        %v4027 = vpop.permute.xlu0 %4026
        %4028 = vrot.lane.b32.xlu0 %v4001, 18
        %v4029 = vpop.permute.xlu0 %4028
        %4030 = vrot.lane.b32.xlu0 %v4000, 18
        %v4031 = vpop.permute.xlu0 %4030
        %v4032 = vrot.slane %v1177, 3
        %v4033 = vrot.slane %v1179, 4
        %v4034 = vor.u32 %v4032, %v4033
        %v4035 = vrot.slane %v1226, 3
        %v4036 = vrot.slane %v1183, 4
        %v4037 = vor.u32 %v4035, %v4036
        %v4038 = vsel %vm1046, %v4034, %v4037
        %v4039 = vrot.slane %v1611, 3
        %v4040 = vrot.slane %v1614, 4
        %v4041 = vor.u32 %v4039, %v4040
        %v4042 = vrot.slane %v1746, 3
        %v4043 = vrot.slane %v1749, 4
        %v4044 = vor.u32 %v4042, %v4043
        %v4045 = vsel %vm1046, %v4041, %v4044
        %v4046 = vrot.slane %v2103, 3
        %v4047 = vrot.slane %v2106, 4
        %v4048 = vor.u32 %v4046, %v4047
        %v4049 = vrot.slane %v2166, 3
        %v4050 = vrot.slane %v2169, 4
        %v4051 = vor.u32 %v4049, %v4050
        %v4052 = vsel %vm1046, %v4048, %v4051
        %v4053 = vrot.slane %v2793, 3
        %v4054 = vrot.slane %v2796, 4
        %v4055 = vor.u32 %v4053, %v4054
        %v4056 = vrot.slane %v2820, 3
        %v4057 = vrot.slane %v2823, 4
        %v4058 = vor.u32 %v4056, %v4057
        %v4059 = vsel %vm1046, %v4055, %v4058
        %v4060 = vrot.slane %v2943, 3
        %v4061 = vrot.slane %v2946, 4
        %v4062 = vor.u32 %v4060, %v4061
        %v4063 = vrot.slane %v2970, 3
        %v4064 = vrot.slane %v2973, 4
        %v4065 = vor.u32 %v4063, %v4064
        %v4066 = vsel %vm1046, %v4062, %v4065
        %v4067 = vrot.slane %v3419, 3
        %v4068 = vrot.slane %v3422, 4
        %v4069 = vor.u32 %v4067, %v4068
        %v4070 = vrot.slane %v3453, 3
        %v4071 = vrot.slane %v3456, 4
        %v4072 = vor.u32 %v4070, %v4071
        %v4073 = vsel %vm1046, %v4069, %v4072
        %v4074 = vrot.slane %v3577, 3
        %v4075 = vrot.slane %v3580, 4
        %v4076 = vor.u32 %v4074, %v4075
        %v4077 = vrot.slane %v3884, 3
        %v4078 = vrot.slane %v3880, 4
        %v4079 = vor.u32 %v4077, %v4078
        %v4080 = vsel %vm1046, %v4076, %v4079
        %4081 = vrot.lane.b32.xlu0 %v1099, 21
        %v4082 = vpop.permute.xlu0 %4081
        %4083 = vrot.lane.b32.xlu0 %v4038, 21
        %v4084 = vpop.permute.xlu0 %4083
        %4085 = vrot.lane.b32.xlu0 %v4035, 21
        %v4086 = vpop.permute.xlu0 %4085
        %4087 = vrot.lane.b32.xlu0 %v4045, 21
        %v4088 = vpop.permute.xlu0 %4087
        %4089 = vrot.lane.b32.xlu0 %v4042, 21
        %v4090 = vpop.permute.xlu0 %4089
        %4091 = vrot.lane.b32.xlu0 %v4052, 21
        %v4092 = vpop.permute.xlu0 %4091
        %4093 = vrot.lane.b32.xlu0 %v4049, 21
        %v4094 = vpop.permute.xlu0 %4093
        %4095 = vrot.lane.b32.xlu0 %v4059, 21
        %v4096 = vpop.permute.xlu0 %4095
        %4097 = vrot.lane.b32.xlu0 %v4056, 21
        %v4098 = vpop.permute.xlu0 %4097
        %4099 = vrot.lane.b32.xlu0 %v4066, 21
        %v4100 = vpop.permute.xlu0 %4099
        %4101 = vrot.lane.b32.xlu0 %v4063, 21
        %v4102 = vpop.permute.xlu0 %4101
        %4103 = vrot.lane.b32.xlu0 %v4073, 21
        %v4104 = vpop.permute.xlu0 %4103
        %4105 = vrot.lane.b32.xlu0 %v4070, 21
        %v4106 = vpop.permute.xlu0 %4105
        %4107 = vrot.lane.b32.xlu0 %v4080, 21
        %v4108 = vpop.permute.xlu0 %4107
        %4109 = vrot.lane.b32.xlu0 %v4077, 21
        %v4110 = vpop.permute.xlu0 %4109
        %v4111 = vrot.slane %v3577, 7
        %v4112 = vor.u32 %v4111, %v3580
        %v4113 = vshrl.u32 %v631, 16
        %v4115 = vrot.slane %v4113, 7
        %v4116 = vshll.u32 %v631, 16
        %v4118 = vor.u32 %v4115, %v4116
        %4119 = vrot.lane.b32.xlu0 %v2020, 24
        %v4120 = vpop.permute.xlu0 %4119
        %4121 = vrot.lane.b32.xlu0 %v2025, 24
        %v4122 = vpop.permute.xlu0 %4121
        %4123 = vrot.lane.b32.xlu0 %v2850, 24
        %v4124 = vpop.permute.xlu0 %4123
        %4125 = vrot.lane.b32.xlu0 %v2855, 24
        %v4126 = vpop.permute.xlu0 %4125
        %4127 = vrot.lane.b32.xlu0 %v3446, 24
        %v4128 = vpop.permute.xlu0 %4127
        %4129 = vrot.lane.b32.xlu0 %v3451, 24
        %v4130 = vpop.permute.xlu0 %4129
        %4131 = vrot.lane.b32.xlu0 %v4112, 24
        %v4132 = vpop.permute.xlu0 %4131
        %4133 = vrot.lane.b32.xlu0 %v4111, 24
        %v4134 = vpop.permute.xlu0 %4133
        %4135 = vrot.lane.b32.xlu0 %v4118, 24
        %v4136 = vpop.permute.xlu0 %4135
        %4137 = vrot.lane.b32.xlu0 %v4115, 24
        %v4138 = vpop.permute.xlu0 %4137
        %4141 = vrot.lane.b32.xlu0 %v629, 27
        %v4142 = vpop.permute.xlu0 %4141
        %4143 = vrot.lane.b32.xlu0 %v646, 27
        %v4144 = vpop.permute.xlu0 %4143
        %4145 = vrot.lane.b32.xlu0 %v631, 27
        %v4146 = vpop.permute.xlu0 %4145
        %4147 = vrot.lane.b32.xlu0 %v647, 27
        %v4148 = vpop.permute.xlu0 %4147
        %v4149 = vrot.slane %v4116, 1
        %v4150 = vor.u32 %v4113, %v4149
        %v4151 = vshll.u32 %v647, 16
        %v4153 = vrot.slane %v4151, 1
        %v4154 = vsel %vm648, %v4150, %v4153
        %v4155 = vshrl.u32 %v647, 16
        %4157 = vrot.lane.b32.xlu0 %v1226, 30
        %v4158 = vpop.permute.xlu0 %4157
        %4159 = vrot.lane.b32.xlu0 %v1746, 30
        %v4160 = vpop.permute.xlu0 %4159
        %4161 = vrot.lane.b32.xlu0 %v2166, 30
        %v4162 = vpop.permute.xlu0 %4161
        %4163 = vrot.lane.b32.xlu0 %v2820, 30
        %v4164 = vpop.permute.xlu0 %4163
        %4165 = vrot.lane.b32.xlu0 %v2970, 30
        %v4166 = vpop.permute.xlu0 %4165
        %4167 = vrot.lane.b32.xlu0 %v3453, 30
        %v4168 = vpop.permute.xlu0 %4167
        %4169 = vrot.lane.b32.xlu0 %v3883, 30
        %v4170 = vpop.permute.xlu0 %4169
        %4171 = vrot.lane.b32.xlu0 %v3884, 30
        %v4172 = vpop.permute.xlu0 %4171
        %4173 = vrot.lane.b32.xlu0 %v4154, 30
        %v4174 = vpop.permute.xlu0 %4173
        %4175 = vrot.lane.b32.xlu0 %v4155, 30
        %v4176 = vpop.permute.xlu0 %4175
        %v4177 = vrot.slane %v631, 1
        %v4178 = vrot.slane %v647, 1
        %v4179 = vsel %vm761, %v4177, %v4178
        %4180 = vrot.lane.b32.xlu0 %v3910, 33
        %v4181 = vpop.permute.xlu0 %4180
        %4182 = vrot.lane.b32.xlu0 %v3909, 33
        %v4183 = vpop.permute.xlu0 %4182
        %4184 = vrot.lane.b32.xlu0 %v4179, 33
        %v4185 = vpop.permute.xlu0 %4184
        %4186 = vrot.lane.b32.xlu0 %v4178, 33
        %v4187 = vpop.permute.xlu0 %4186
        %v4188 = vrot.slane %v4113, 1
        %v4189 = vrot.slane %v4116, 2
        %v4190 = vor.u32 %v4188, %v4189
        %v4191 = vrot.slane %v4155, 1
        %v4192 = vrot.slane %v4151, 2
        %v4193 = vor.u32 %v4191, %v4192
        %v4194 = vsel %vm802, %v4190, %v4193
        %4195 = vrot.lane.b32.xlu0 %v1228, 36
        %v4196 = vpop.permute.xlu0 %4195
        %4197 = vrot.lane.b32.xlu0 %v2760, 36
        %v4198 = vpop.permute.xlu0 %4197
        %4199 = vrot.lane.b32.xlu0 %v2767, 36
        %v4200 = vpop.permute.xlu0 %4199
        %4201 = vrot.lane.b32.xlu0 %v2917, 36
        %v4202 = vpop.permute.xlu0 %4201
        %4203 = vrot.lane.b32.xlu0 %v3315, 36
        %v4204 = vpop.permute.xlu0 %4203
        %4205 = vrot.lane.b32.xlu0 %v3503, 36
        %v4206 = vpop.permute.xlu0 %4205
        %4207 = vrot.lane.b32.xlu0 %v3925, 36
        %v4208 = vpop.permute.xlu0 %4207
        %4209 = vrot.lane.b32.xlu0 %v3922, 36
        %v4210 = vpop.permute.xlu0 %4209
        %4211 = vrot.lane.b32.xlu0 %v4194, 36
        %v4212 = vpop.permute.xlu0 %4211
        %4213 = vrot.lane.b32.xlu0 %v4191, 36
        %v4214 = vpop.permute.xlu0 %4213
        %v4215 = vrot.slane %v631, 2
        %v4216 = vrot.slane %v647, 2
        %v4217 = vsel %vm891, %v4215, %v4216
        %4218 = vrot.lane.b32.xlu0 %v3948, 39
        %v4219 = vpop.permute.xlu0 %4218
        %4220 = vrot.lane.b32.xlu0 %v3947, 39
        %v4221 = vpop.permute.xlu0 %4220
        %4222 = vrot.lane.b32.xlu0 %v4217, 39
        %v4223 = vpop.permute.xlu0 %4222
        %4224 = vrot.lane.b32.xlu0 %v4216, 39
        %v4225 = vpop.permute.xlu0 %4224
        %v4226 = vrot.slane %v4113, 2
        %v4227 = vrot.slane %v4116, 3
        %v4228 = vor.u32 %v4226, %v4227
        %v4229 = vrot.slane %v4155, 2
        %v4230 = vrot.slane %v4151, 3
        %v4231 = vor.u32 %v4229, %v4230
        %v4232 = vsel %vm932, %v4228, %v4231
        %4233 = vrot.lane.b32.xlu0 %v1270, 42
        %v4234 = vpop.permute.xlu0 %4233
        %4235 = vrot.lane.b32.xlu0 %v3368, 42
        %v4236 = vpop.permute.xlu0 %4235
        %4237 = vrot.lane.b32.xlu0 %v3375, 42
        %v4238 = vpop.permute.xlu0 %4237
        %4239 = vrot.lane.b32.xlu0 %v3382, 42
        %v4240 = vpop.permute.xlu0 %4239
        %4241 = vrot.lane.b32.xlu0 %v3389, 42
        %v4242 = vpop.permute.xlu0 %4241
        %4243 = vrot.lane.b32.xlu0 %v3547, 42
        %v4244 = vpop.permute.xlu0 %4243
        %4245 = vrot.lane.b32.xlu0 %v3963, 42
        %v4246 = vpop.permute.xlu0 %4245
        %4247 = vrot.lane.b32.xlu0 %v3960, 42
        %v4248 = vpop.permute.xlu0 %4247
        %4249 = vrot.lane.b32.xlu0 %v4232, 42
        %v4250 = vpop.permute.xlu0 %4249
        %4251 = vrot.lane.b32.xlu0 %v4229, 42
        %v4252 = vpop.permute.xlu0 %4251
        %v4253 = vrot.slane %v631, 3
        %v4254 = vrot.slane %v647, 3
        %v4255 = vsel %vm1005, %v4253, %v4254
        %4256 = vrot.lane.b32.xlu0 %v1291, 45
        %v4257 = vpop.permute.xlu0 %4256
        %4258 = vrot.lane.b32.xlu0 %v3986, 45
        %v4259 = vpop.permute.xlu0 %4258
        %4260 = vrot.lane.b32.xlu0 %v3985, 45
        %v4261 = vpop.permute.xlu0 %4260
        %4262 = vrot.lane.b32.xlu0 %v3989, 45
        %v4263 = vpop.permute.xlu0 %4262
        %4264 = vrot.lane.b32.xlu0 %v3988, 45
        %v4265 = vpop.permute.xlu0 %4264
        %4266 = vrot.lane.b32.xlu0 %v3992, 45
        %v4267 = vpop.permute.xlu0 %4266
        %4268 = vrot.lane.b32.xlu0 %v3991, 45
        %v4269 = vpop.permute.xlu0 %4268
        %4270 = vrot.lane.b32.xlu0 %v3995, 45
        %v4271 = vpop.permute.xlu0 %4270
        %4272 = vrot.lane.b32.xlu0 %v3994, 45
        %v4273 = vpop.permute.xlu0 %4272
        %4274 = vrot.lane.b32.xlu0 %v3998, 45
        %v4275 = vpop.permute.xlu0 %4274
        %4276 = vrot.lane.b32.xlu0 %v3997, 45
        %v4277 = vpop.permute.xlu0 %4276
        %4278 = vrot.lane.b32.xlu0 %v4001, 45
        %v4279 = vpop.permute.xlu0 %4278
        %4280 = vrot.lane.b32.xlu0 %v4000, 45
        %v4281 = vpop.permute.xlu0 %4280
        %4282 = vrot.lane.b32.xlu0 %v4255, 45
        %v4283 = vpop.permute.xlu0 %4282
        %4284 = vrot.lane.b32.xlu0 %v4254, 45
        %v4285 = vpop.permute.xlu0 %4284
        %v4287 = vsel %vm1309, %v639, %v3887
        %v4289 = vsel %vm1309, %v640, %v3889
        %v4291 = vsel %vm1309, %v641, %v3891
        %v4293 = vsel %vm1309, %v642, %v3893
        %v4295 = vsel %vm1309, %v643, %v3895
        %v4297 = vsel %vm1309, %v644, %v3897
        %v4299 = vsel %vm1309, %v627, %v3899
        %v4301 = vsel %vm1309, %v645, %v3901
        %v4303 = vsel %vm1309, %v629, %v3903
        %v4305 = vsel %vm1309, %v646, %v3905
        %v4306 = vsel %vm1326, %v4287, %v2744
        %v4307 = vsel %vm1326, %v4289, %v2748
        %v4308 = vsel %vm1326, %v4291, %v2752
        %v4309 = vsel %vm1326, %v4293, %v2756
        %v4310 = vsel %vm1326, %v4295, %v3307
        %v4311 = vsel %vm1326, %v4297, %v3311
        %v4313 = vsel %vm1326, %v4299, %v3912
        %v4315 = vsel %vm1326, %v4301, %v3914
        %v4317 = vsel %vm1326, %v4303, %v3916
        %v4319 = vsel %vm1326, %v4305, %v3918
        %v4321 = vsel %vm1343, %v4306, %v3927
        %v4323 = vsel %vm1343, %v4307, %v3929
        %v4325 = vsel %vm1343, %v4308, %v3931
        %v4327 = vsel %vm1343, %v4309, %v3933
        %v4329 = vsel %vm1343, %v4310, %v3935
        %v4331 = vsel %vm1343, %v4311, %v3937
        %v4333 = vsel %vm1343, %v4313, %v3939
        %v4335 = vsel %vm1343, %v4315, %v3941
        %v4337 = vsel %vm1343, %v4317, %v3943
        %v4339 = vsel %vm1343, %v4319, %v3945
        %v4340 = vsel %vm1360, %v4321, %v3344
        %v4341 = vsel %vm1360, %v4323, %v3348
        %v4342 = vsel %vm1360, %v4325, %v3352
        %v4343 = vsel %vm1360, %v4327, %v3356
        %v4344 = vsel %vm1360, %v4329, %v3360
        %v4345 = vsel %vm1360, %v4331, %v3364
        %v4347 = vsel %vm1360, %v4333, %v3950
        %v4349 = vsel %vm1360, %v4335, %v3952
        %v4351 = vsel %vm1360, %v4337, %v3954
        %v4353 = vsel %vm1360, %v4339, %v3956
        %v4355 = vsel %vm1377, %v4340, %v3965
        %v4357 = vsel %vm1377, %v4341, %v3967
        %v4359 = vsel %vm1377, %v4342, %v3969
        %v4361 = vsel %vm1377, %v4343, %v3971
        %v4363 = vsel %vm1377, %v4344, %v3973
        %v4365 = vsel %vm1377, %v4345, %v3975
        %v4367 = vsel %vm1377, %v4347, %v3977
        %v4369 = vsel %vm1377, %v4349, %v3979
        %v4371 = vsel %vm1377, %v4351, %v3981
        %v4373 = vsel %vm1377, %v4353, %v3983
        %v4375 = vsel %vm1394, %v4355, %v4003
        %v4377 = vsel %vm1394, %v3645, %v4005
        %v4379 = vsel %vm1394, %v4357, %v4007
        %v4381 = vsel %vm1394, %v3649, %v4009
        %v4383 = vsel %vm1394, %v4359, %v4011
        %v4385 = vsel %vm1394, %v3653, %v4013
        %v4387 = vsel %vm1394, %v4361, %v4015
        %v4389 = vsel %vm1394, %v3657, %v4017
        %v4391 = vsel %vm1394, %v4363, %v4019
        %v4393 = vsel %vm1394, %v3661, %v4021
        %v4395 = vsel %vm1394, %v4365, %v4023
        %v4397 = vsel %vm1394, %v4367, %v4025
        %v4399 = vsel %vm1394, %v4369, %v4027
        %v4401 = vsel %vm1394, %v4371, %v4029
        %v4403 = vsel %vm1394, %v4373, %v4031
        %v4405 = vsel %vm1411, %v4375, %v4082
        %v4407 = vsel %vm1411, %v4377, %v4084
        %v4409 = vsel %vm1411, %v4379, %v4086
        %v4411 = vsel %vm1411, %v4381, %v4088
        %v4413 = vsel %vm1411, %v4383, %v4090
        %v4415 = vsel %vm1411, %v4385, %v4092
        %v4417 = vsel %vm1411, %v4387, %v4094
        %v4419 = vsel %vm1411, %v4389, %v4096
        %v4421 = vsel %vm1411, %v4391, %v4098
        %v4423 = vsel %vm1411, %v4393, %v4100
        %v4425 = vsel %vm1411, %v4395, %v4102
        %v4427 = vsel %vm1411, %v4397, %v4104
        %v4429 = vsel %vm1411, %v4399, %v4106
        %v4431 = vsel %vm1411, %v4401, %v4108
        %v4433 = vsel %vm1411, %v4403, %v4110
        %v4434 = vsel %vm1428, %v1427, %v2055
        %v4436 = vsel %vm1428, %v4405, %v4120
        %v4437 = vsel %vm1428, %v4407, %v2059
        %v4439 = vsel %vm1428, %v4409, %v4122
        %v4440 = vsel %vm1428, %v4411, %v2861
        %v4442 = vsel %vm1428, %v4413, %v4124
        %v4443 = vsel %vm1428, %v4415, %v2865
        %v4445 = vsel %vm1428, %v4417, %v4126
        %v4446 = vsel %vm1428, %v4419, %v3461
        %v4448 = vsel %vm1428, %v4421, %v4128
        %v4449 = vsel %vm1428, %v4423, %v3465
        %v4451 = vsel %vm1428, %v4425, %v4130
        %v4453 = vsel %vm1428, %v4427, %v4132
        %v4455 = vsel %vm1428, %v4429, %v4134
        %v4457 = vsel %vm1428, %v4431, %v4136
        %v4459 = vsel %vm1428, %v4433, %v4138
        %v4460 = vsel %vm1445, %v4434, %v1176
        %v4461 = vsel %vm1445, %v4436, %v2075
        %v4462 = vsel %vm1445, %v4437, %v2077
        %v4463 = vsel %vm1445, %v4439, %v2079
        %v4464 = vsel %vm1445, %v4440, %v2869
        %v4465 = vsel %vm1445, %v4442, %v2871
        %v4466 = vsel %vm1445, %v4443, %v2873
        %v4467 = vsel %vm1445, %v4445, %v2875
        %v4468 = vsel %vm1445, %v4446, %v3469
        %v4469 = vsel %vm1445, %v4448, %v3471
        %v4470 = vsel %vm1445, %v4449, %v3473
        %v4471 = vsel %vm1445, %v4451, %v3475
        %v4473 = vsel %vm1445, %v4453, %v4142
        %v4475 = vsel %vm1445, %v4455, %v4144
        %v4477 = vsel %vm1445, %v4457, %v4146
        %v4479 = vsel %vm1445, %v4459, %v4148
        %v4480 = vsel %vm1462, %v4460, %v1202
        %v4482 = vsel %vm1462, %v4461, %v4158
        %v4483 = vsel %vm1462, %v4462, %v2100
        %v4485 = vsel %vm1462, %v4463, %v4160
        %v4486 = vsel %vm1462, %v4464, %v2882
        %v4488 = vsel %vm1462, %v4465, %v4162
        %v4489 = vsel %vm1462, %v4466, %v2886
        %v4491 = vsel %vm1462, %v4467, %v4164
        %v4492 = vsel %vm1462, %v4468, %v3482
        %v4494 = vsel %vm1462, %v4469, %v4166
        %v4495 = vsel %vm1462, %v4470, %v3486
        %v4497 = vsel %vm1462, %v4471, %v4168
        %v4499 = vsel %vm1462, %v4473, %v4170
        %v4501 = vsel %vm1462, %v4475, %v4172
        %v4503 = vsel %vm1462, %v4477, %v4174
        %v4505 = vsel %vm1462, %v4479, %v4176
        %v4506 = vsel %vm1479, %v4480, %v1222
        %v4507 = vsel %vm1479, %v4482, %v2901
        %v4508 = vsel %vm1479, %v4483, %v2903
        %v4509 = vsel %vm1479, %v4485, %v2905
        %v4510 = vsel %vm1479, %v4486, %v2907
        %v4511 = vsel %vm1479, %v4488, %v2909
        %v4512 = vsel %vm1479, %v4489, %v2911
        %v4513 = vsel %vm1479, %v4491, %v2913
        %v4514 = vsel %vm1479, %v4492, %v3493
        %v4515 = vsel %vm1479, %v4494, %v3495
        %v4516 = vsel %vm1479, %v4495, %v3497
        %v4517 = vsel %vm1479, %v4497, %v3499
        %v4519 = vsel %vm1479, %v4499, %v4181
        %v4521 = vsel %vm1479, %v4501, %v4183
        %v4523 = vsel %vm1479, %v4503, %v4185
        %v4525 = vsel %vm1479, %v4505, %v4187
        %v4526 = vsel %vm1496, %v4506, %v1247
        %v4528 = vsel %vm1496, %v4507, %v4196
        %v4529 = vsel %vm1496, %v4508, %v2932
        %v4531 = vsel %vm1496, %v4509, %v4198
        %v4532 = vsel %vm1496, %v4510, %v2936
        %v4534 = vsel %vm1496, %v4511, %v4200
        %v4535 = vsel %vm1496, %v4512, %v2940
        %v4537 = vsel %vm1496, %v4513, %v4202
        %v4538 = vsel %vm1496, %v4514, %v3508
        %v4540 = vsel %vm1496, %v4515, %v4204
        %v4541 = vsel %vm1496, %v4516, %v3512
        %v4543 = vsel %vm1496, %v4517, %v4206
        %v4545 = vsel %vm1496, %v4519, %v4208
        %v4547 = vsel %vm1496, %v4521, %v4210
        %v4549 = vsel %vm1496, %v4523, %v4212
        %v4551 = vsel %vm1496, %v4525, %v4214
        %v4552 = vsel %vm1513, %v4526, %v1266
        %v4553 = vsel %vm1513, %v4528, %v3523
        %v4554 = vsel %vm1513, %v4529, %v3525
        %v4555 = vsel %vm1513, %v4531, %v3527
        %v4556 = vsel %vm1513, %v4532, %v3529
        %v4557 = vsel %vm1513, %v4534, %v3531
        %v4558 = vsel %vm1513, %v4535, %v3533
        %v4559 = vsel %vm1513, %v4537, %v3535
        %v4560 = vsel %vm1513, %v4538, %v3537
        %v4561 = vsel %vm1513, %v4540, %v3539
        %v4562 = vsel %vm1513, %v4541, %v3541
        %v4563 = vsel %vm1513, %v4543, %v3543
        %v4565 = vsel %vm1513, %v4545, %v4219
        %v4567 = vsel %vm1513, %v4547, %v4221
        %v4569 = vsel %vm1513, %v4549, %v4223
        %v4571 = vsel %vm1513, %v4551, %v4225
        %v4572 = vsel %vm1530, %v4552, %v1289
        %v4574 = vsel %vm1530, %v4553, %v4234
        %v4575 = vsel %vm1530, %v4554, %v3558
        %v4577 = vsel %vm1530, %v4555, %v4236
        %v4578 = vsel %vm1530, %v4556, %v3562
        %v4580 = vsel %vm1530, %v4557, %v4238
        %v4581 = vsel %vm1530, %v4558, %v3566
        %v4583 = vsel %vm1530, %v4559, %v4240
        %v4584 = vsel %vm1530, %v4560, %v3570
        %v4586 = vsel %vm1530, %v4561, %v4242
        %v4587 = vsel %vm1530, %v4562, %v3574
        %v4589 = vsel %vm1530, %v4563, %v4244
        %v4591 = vsel %vm1530, %v4565, %v4246
        %v4593 = vsel %vm1530, %v4567, %v4248
        %v4595 = vsel %vm1530, %v4569, %v4250
        %v4597 = vsel %vm1530, %v4571, %v4252
        %v4598 = vsel %vm1547, %v4572, %v1308
        %v4600 = vsel %vm1547, %v4574, %v4257
        %v4602 = vsel %vm1547, %v4575, %v4259
        %v4604 = vsel %vm1547, %v4577, %v4261
        %v4606 = vsel %vm1547, %v4578, %v4263
        %v4608 = vsel %vm1547, %v4580, %v4265
        %v4610 = vsel %vm1547, %v4581, %v4267
        %v4612 = vsel %vm1547, %v4583, %v4269
        %v4614 = vsel %vm1547, %v4584, %v4271
        %v4616 = vsel %vm1547, %v4586, %v4273
        %v4618 = vsel %vm1547, %v4587, %v4275
        %v4620 = vsel %vm1547, %v4589, %v4277
        %v4622 = vsel %vm1547, %v4591, %v4279
        %v4624 = vsel %vm1547, %v4593, %v4281
        %v4626 = vsel %vm1547, %v4595, %v4283
        %v4628 = vsel %vm1547, %v4597, %v4285
        %v4629 = vshrl.u32 %v2685, 16
        %v4631 = vrot.slane %v4629, 3
        %v4632 = vshll.u32 %v2685, 16
        %v4634 = vrot.slane %v4632, 4
        %v4635 = vor.u32 %v4631, %v4634
        %v4636 = vshrl.u32 %v2687, 16
        %v4638 = vrot.slane %v4636, 3
        %v4639 = vshll.u32 %v2687, 16
        %v4641 = vrot.slane %v4639, 4
        %v4642 = vor.u32 %v4638, %v4641
        %v4643 = vsel %vm1046, %v4635, %v4642
        %v4644 = vshrl.u32 %v2689, 16
        %v4646 = vrot.slane %v4644, 3
        %v4647 = vshll.u32 %v2689, 16
        %v4649 = vrot.slane %v4647, 4
        %v4650 = vor.u32 %v4646, %v4649
        %v4651 = vshrl.u32 %v2691, 16
        %v4653 = vrot.slane %v4651, 3
        %v4654 = vshll.u32 %v2691, 16
        %v4656 = vrot.slane %v4654, 4
        %v4657 = vor.u32 %v4653, %v4656
        %v4658 = vsel %vm1046, %v4650, %v4657
        %v4659 = vshrl.u32 %v2693, 16
        %v4661 = vrot.slane %v4659, 3
        %v4662 = vshll.u32 %v2693, 16
        %v4664 = vrot.slane %v4662, 4
        %v4665 = vor.u32 %v4661, %v4664
        %v4666 = vshrl.u32 %v2695, 16
        %v4668 = vrot.slane %v4666, 3
        %v4669 = vshll.u32 %v2695, 16
        %v4671 = vrot.slane %v4669, 4
        %v4672 = vor.u32 %v4668, %v4671
        %v4673 = vsel %vm1046, %v4665, %v4672
        %v4674 = vshrl.u32 %v2697, 16
        %v4676 = vrot.slane %v4674, 3
        %v4677 = vshll.u32 %v2697, 16
        %v4679 = vrot.slane %v4677, 4
        %v4680 = vor.u32 %v4676, %v4679
        %v4681 = vshrl.u32 %v2699, 16
        %v4683 = vrot.slane %v4681, 3
        %v4684 = vshll.u32 %v2699, 16
        %v4686 = vrot.slane %v4684, 4
        %v4687 = vor.u32 %v4683, %v4686
        %v4688 = vsel %vm1046, %v4680, %v4687
        %v4689 = vshrl.u32 %v2701, 16
        %v4691 = vrot.slane %v4689, 3
        %v4692 = vshll.u32 %v2701, 16
        %v4694 = vrot.slane %v4692, 4
        %v4695 = vor.u32 %v4691, %v4694
        %v4696 = vshrl.u32 %v2703, 16
        %v4698 = vrot.slane %v4696, 3
        %v4699 = vshll.u32 %v2703, 16
        %v4701 = vrot.slane %v4699, 4
        %v4702 = vor.u32 %v4698, %v4701
        %v4703 = vsel %vm1046, %v4695, %v4702
        %v4704 = vshrl.u32 %v2705, 16
        %v4706 = vrot.slane %v4704, 3
        %v4707 = vshll.u32 %v2705, 16
        %v4709 = vrot.slane %v4707, 4
        %v4710 = vor.u32 %v4706, %v4709
        %v4711 = vshrl.u32 %v2707, 16
        %v4713 = vrot.slane %v4711, 3
        %v4714 = vshll.u32 %v2707, 16
        %v4716 = vrot.slane %v4714, 4
        %v4717 = vor.u32 %v4713, %v4716
        %v4718 = vsel %vm1046, %v4710, %v4717
        %v4719 = vshrl.u32 %v2709, 16
        %v4721 = vrot.slane %v4719, 3
        %v4722 = vshll.u32 %v2709, 16
        %v4724 = vrot.slane %v4722, 4
        %v4725 = vor.u32 %v4721, %v4724
        %v4726 = vshrl.u32 %v2711, 16
        %v4728 = vrot.slane %v4726, 3
        %v4729 = vshll.u32 %v2711, 16
        %v4731 = vrot.slane %v4729, 4
        %v4732 = vor.u32 %v4728, %v4731
        %v4733 = vsel %vm1046, %v4725, %v4732
        %v4734 = vshrl.u32 %v2713, 16
        %v4736 = vrot.slane %v4734, 3
        %v4737 = vshll.u32 %v2713, 16
        %v4739 = vrot.slane %v4737, 4
        %v4740 = vor.u32 %v4736, %v4739
        %v4741 = vshrl.u32 %v2715, 16
        %v4743 = vrot.slane %v4741, 3
        %v4744 = vshll.u32 %v2715, 16
        %v4746 = vrot.slane %v4744, 4
        %v4747 = vor.u32 %v4743, %v4746
        %v4748 = vsel %vm1046, %v4740, %v4747
        %4749 = vrot.lane.b32.xlu0 %v4643, 48
        %v4750 = vpop.permute.xlu0 %4749
        %4751 = vrot.lane.b32.xlu0 %v4658, 48
        %v4752 = vpop.permute.xlu0 %4751
        %4753 = vrot.lane.b32.xlu0 %v4673, 48
        %v4754 = vpop.permute.xlu0 %4753
        %4755 = vrot.lane.b32.xlu0 %v4688, 48
        %v4756 = vpop.permute.xlu0 %4755
        %4757 = vrot.lane.b32.xlu0 %v4703, 48
        %v4758 = vpop.permute.xlu0 %4757
        %4759 = vrot.lane.b32.xlu0 %v4718, 48
        %v4760 = vpop.permute.xlu0 %4759
        %4761 = vrot.lane.b32.xlu0 %v4733, 48
        %v4762 = vpop.permute.xlu0 %4761
        %4763 = vrot.lane.b32.xlu0 %v4748, 48
        %v4764 = vpop.permute.xlu0 %4763
        %v4765 = vshrl.u32 %v3268, 16
        %v4767 = vrot.slane %v4765, 2
        %v4768 = vshll.u32 %v3268, 16
        %v4770 = vrot.slane %v4768, 3
        %v4771 = vor.u32 %v4767, %v4770
        %v4772 = vshrl.u32 %v3269, 16
        %v4774 = vrot.slane %v4772, 2
        %v4775 = vshll.u32 %v3269, 16
        %v4777 = vrot.slane %v4775, 3
        %v4778 = vor.u32 %v4774, %v4777
        %v4779 = vsel %vm932, %v4771, %v4778
        %v4780 = vshrl.u32 %v3270, 16
        %v4782 = vrot.slane %v4780, 2
        %v4783 = vshll.u32 %v3270, 16
        %v4785 = vrot.slane %v4783, 3
        %v4786 = vor.u32 %v4782, %v4785
        %v4787 = vshrl.u32 %v3271, 16
        %v4789 = vrot.slane %v4787, 2
        %v4790 = vshll.u32 %v3271, 16
        %v4792 = vrot.slane %v4790, 3
        %v4793 = vor.u32 %v4789, %v4792
        %v4794 = vsel %vm932, %v4786, %v4793
        %v4795 = vshrl.u32 %v3272, 16
        %v4797 = vrot.slane %v4795, 2
        %v4798 = vshll.u32 %v3272, 16
        %v4800 = vrot.slane %v4798, 3
        %v4801 = vor.u32 %v4797, %v4800
        %v4802 = vshrl.u32 %v3273, 16
        %v4804 = vrot.slane %v4802, 2
        %v4805 = vshll.u32 %v3273, 16
        %v4807 = vrot.slane %v4805, 3
        %v4808 = vor.u32 %v4804, %v4807
        %v4809 = vsel %vm932, %v4801, %v4808
        %v4810 = vshrl.u32 %v3274, 16
        %v4812 = vrot.slane %v4810, 2
        %v4813 = vshll.u32 %v3274, 16
        %v4815 = vrot.slane %v4813, 3
        %v4816 = vor.u32 %v4812, %v4815
        %v4817 = vshrl.u32 %v3275, 16
        %v4819 = vrot.slane %v4817, 2
        %v4820 = vshll.u32 %v3275, 16
        %v4822 = vrot.slane %v4820, 3
        %v4823 = vor.u32 %v4819, %v4822
        %v4824 = vsel %vm932, %v4816, %v4823
        %v4825 = vshrl.u32 %v3276, 16
        %v4827 = vrot.slane %v4825, 2
        %v4828 = vshll.u32 %v3276, 16
        %v4830 = vrot.slane %v4828, 3
        %v4831 = vor.u32 %v4827, %v4830
        %v4832 = vshrl.u32 %v3277, 16
        %v4834 = vrot.slane %v4832, 2
        %v4835 = vshll.u32 %v3277, 16
        %v4837 = vrot.slane %v4835, 3
        %v4838 = vor.u32 %v4834, %v4837
        %v4839 = vsel %vm932, %v4831, %v4838
        %v4840 = vshrl.u32 %v3278, 16
        %v4842 = vrot.slane %v4840, 2
        %v4843 = vshll.u32 %v3278, 16
        %v4845 = vrot.slane %v4843, 3
        %v4846 = vor.u32 %v4842, %v4845
        %v4847 = vshrl.u32 %v3279, 16
        %v4849 = vrot.slane %v4847, 2
        %v4850 = vshll.u32 %v3279, 16
        %v4852 = vrot.slane %v4850, 3
        %v4853 = vor.u32 %v4849, %v4852
        %v4854 = vsel %vm932, %v4846, %v4853
        %v4855 = vshrl.u32 %v3281, 16
        %v4857 = vrot.slane %v4855, 2
        %v4858 = vshll.u32 %v3281, 16
        %v4860 = vrot.slane %v4858, 3
        %v4861 = vor.u32 %v4857, %v4860
        %v4862 = vshrl.u32 %v3283, 16
        %v4864 = vrot.slane %v4862, 2
        %v4865 = vshll.u32 %v3283, 16
        %v4867 = vrot.slane %v4865, 3
        %v4868 = vor.u32 %v4864, %v4867
        %v4869 = vsel %vm932, %v4861, %v4868
        %v4870 = vshrl.u32 %v3285, 16
        %v4872 = vrot.slane %v4870, 2
        %v4873 = vshll.u32 %v3285, 16
        %v4875 = vrot.slane %v4873, 3
        %v4876 = vor.u32 %v4872, %v4875
        %v4877 = vshrl.u32 %v3287, 16
        %v4879 = vrot.slane %v4877, 2
        %v4880 = vshll.u32 %v3287, 16
        %v4882 = vrot.slane %v4880, 3
        %v4883 = vor.u32 %v4879, %v4882
        %v4884 = vsel %vm932, %v4876, %v4883
        %4885 = vrot.lane.b32.xlu0 %v4779, 96
        %v4886 = vpop.permute.xlu0 %4885
        %4887 = vrot.lane.b32.xlu0 %v4794, 96
        %v4888 = vpop.permute.xlu0 %4887
        %4889 = vrot.lane.b32.xlu0 %v4809, 96
        %v4890 = vpop.permute.xlu0 %4889
        %4891 = vrot.lane.b32.xlu0 %v4824, 96
        %v4892 = vpop.permute.xlu0 %4891
        %4893 = vrot.lane.b32.xlu0 %v4839, 96
        %v4894 = vpop.permute.xlu0 %4893
        %4895 = vrot.lane.b32.xlu0 %v4854, 96
        %v4896 = vpop.permute.xlu0 %4895
        %4897 = vrot.lane.b32.xlu0 %v4869, 96
        %v4898 = vpop.permute.xlu0 %4897
        %4899 = vrot.lane.b32.xlu0 %v4884, 96
        %v4900 = vpop.permute.xlu0 %4899
        %v4901 = vshrl.u32 %v3860, 16
        %v4903 = vrot.slane %v4901, 1
        %v4904 = vshll.u32 %v3860, 16
        %v4906 = vrot.slane %v4904, 2
        %v4907 = vor.u32 %v4903, %v4906
        %v4908 = vshrl.u32 %v3861, 16
        %v4910 = vrot.slane %v4908, 1
        %v4911 = vshll.u32 %v3861, 16
        %v4913 = vrot.slane %v4911, 2
        %v4914 = vor.u32 %v4910, %v4913
        %v4915 = vsel %vm802, %v4907, %v4914
        %v4916 = vshrl.u32 %v3862, 16
        %v4918 = vrot.slane %v4916, 1
        %v4919 = vshll.u32 %v3862, 16
        %v4921 = vrot.slane %v4919, 2
        %v4922 = vor.u32 %v4918, %v4921
        %v4923 = vshrl.u32 %v3863, 16
        %v4925 = vrot.slane %v4923, 1
        %v4926 = vshll.u32 %v3863, 16
        %v4928 = vrot.slane %v4926, 2
        %v4929 = vor.u32 %v4925, %v4928
        %v4930 = vsel %vm802, %v4922, %v4929
        %v4931 = vshrl.u32 %v3864, 16
        %v4933 = vrot.slane %v4931, 1
        %v4934 = vshll.u32 %v3864, 16
        %v4936 = vrot.slane %v4934, 2
        %v4937 = vor.u32 %v4933, %v4936
        %v4938 = vshrl.u32 %v3865, 16
        %v4940 = vrot.slane %v4938, 1
        %v4941 = vshll.u32 %v3865, 16
        %v4943 = vrot.slane %v4941, 2
        %v4944 = vor.u32 %v4940, %v4943
        %v4945 = vsel %vm802, %v4937, %v4944
        %v4946 = vshrl.u32 %v3866, 16
        %v4948 = vrot.slane %v4946, 1
        %v4949 = vshll.u32 %v3866, 16
        %v4951 = vrot.slane %v4949, 2
        %v4952 = vor.u32 %v4948, %v4951
        %v4953 = vshrl.u32 %v3867, 16
        %v4955 = vrot.slane %v4953, 1
        %v4956 = vshll.u32 %v3867, 16
        %v4958 = vrot.slane %v4956, 2
        %v4959 = vor.u32 %v4955, %v4958
        %v4960 = vsel %vm802, %v4952, %v4959
        %v4961 = vshrl.u32 %v3868, 16
        %v4963 = vrot.slane %v4961, 1
        %v4964 = vshll.u32 %v3868, 16
        %v4966 = vrot.slane %v4964, 2
        %v4967 = vor.u32 %v4963, %v4966
        %v4968 = vshrl.u32 %v3869, 16
        %v4970 = vrot.slane %v4968, 1
        %v4971 = vshll.u32 %v3869, 16
        %v4973 = vrot.slane %v4971, 2
        %v4974 = vor.u32 %v4970, %v4973
        %v4975 = vsel %vm802, %v4967, %v4974
        %v4976 = vshrl.u32 %v3870, 16
        %v4978 = vrot.slane %v4976, 1
        %v4979 = vshll.u32 %v3870, 16
        %v4981 = vrot.slane %v4979, 2
        %v4982 = vor.u32 %v4978, %v4981
        %v4983 = vshrl.u32 %v3871, 16
        %v4985 = vrot.slane %v4983, 1
        %v4986 = vshll.u32 %v3871, 16
        %v4988 = vrot.slane %v4986, 2
        %v4989 = vor.u32 %v4985, %v4988
        %v4990 = vsel %vm802, %v4982, %v4989
        %v4991 = vshrl.u32 %v3873, 16
        %v4993 = vrot.slane %v4991, 1
        %v4994 = vshll.u32 %v3873, 16
        %v4996 = vrot.slane %v4994, 2
        %v4997 = vor.u32 %v4993, %v4996
        %v4998 = vshrl.u32 %v3874, 16
        %v5000 = vrot.slane %v4998, 1
        %v5001 = vshll.u32 %v3874, 16
        %v5003 = vrot.slane %v5001, 2
        %v5004 = vor.u32 %v5000, %v5003
        %v5005 = vsel %vm802, %v4997, %v5004
        %v5006 = vshrl.u32 %v3876, 16
        %v5008 = vrot.slane %v5006, 1
        %v5009 = vshll.u32 %v3876, 16
        %v5011 = vrot.slane %v5009, 2
        %v5012 = vor.u32 %v5008, %v5011
        %v5013 = vshrl.u32 %v3877, 16
        %v5015 = vrot.slane %v5013, 1
        %v5016 = vshll.u32 %v3877, 16
        %v5018 = vrot.slane %v5016, 2
        %v5019 = vor.u32 %v5015, %v5018
        %v5020 = vsel %vm802, %v5012, %v5019
        %5021 = vrot.lane.b32.xlu0 %v4915, 16
        %v5022 = vpop.permute.xlu0 %5021
        %5023 = vrot.lane.b32.xlu0 %v4930, 16
        %v5024 = vpop.permute.xlu0 %5023
        %5025 = vrot.lane.b32.xlu0 %v4945, 16
        %v5026 = vpop.permute.xlu0 %5025
        %5027 = vrot.lane.b32.xlu0 %v4960, 16
        %v5028 = vpop.permute.xlu0 %5027
        %5029 = vrot.lane.b32.xlu0 %v4975, 16
        %v5030 = vpop.permute.xlu0 %5029
        %5031 = vrot.lane.b32.xlu0 %v4990, 16
        %v5032 = vpop.permute.xlu0 %5031
        %5033 = vrot.lane.b32.xlu0 %v5005, 16
        %v5034 = vpop.permute.xlu0 %5033
        %5035 = vrot.lane.b32.xlu0 %v5020, 16
        %v5036 = vpop.permute.xlu0 %5035
        %v5037 = vshrl.u32 %v4598, 16
        %v5039 = vshll.u32 %v4598, 16
        %v5041 = vrot.slane %v5039, 1
        %v5042 = vor.u32 %v5037, %v5041
        %v5043 = vshll.u32 %v4600, 16
        %v5045 = vrot.slane %v5043, 1
        %v5046 = vsel %vm648, %v5042, %v5045
        %v5047 = vshrl.u32 %v4602, 16
        %v5049 = vshll.u32 %v4602, 16
        %v5051 = vrot.slane %v5049, 1
        %v5052 = vor.u32 %v5047, %v5051
        %v5053 = vshll.u32 %v4604, 16
        %v5055 = vrot.slane %v5053, 1
        %v5056 = vsel %vm648, %v5052, %v5055
        %v5057 = vshrl.u32 %v4606, 16
        %v5059 = vshll.u32 %v4606, 16
        %v5061 = vrot.slane %v5059, 1
        %v5062 = vor.u32 %v5057, %v5061
        %v5063 = vshll.u32 %v4608, 16
        %v5065 = vrot.slane %v5063, 1
        %v5066 = vsel %vm648, %v5062, %v5065
        %v5067 = vshrl.u32 %v4610, 16
        %v5069 = vshll.u32 %v4610, 16
        %v5071 = vrot.slane %v5069, 1
        %v5072 = vor.u32 %v5067, %v5071
        %v5073 = vshll.u32 %v4612, 16
        %v5075 = vrot.slane %v5073, 1
        %v5076 = vsel %vm648, %v5072, %v5075
        %v5077 = vshrl.u32 %v4614, 16
        %v5079 = vshll.u32 %v4614, 16
        %v5081 = vrot.slane %v5079, 1
        %v5082 = vor.u32 %v5077, %v5081
        %v5083 = vshll.u32 %v4616, 16
        %v5085 = vrot.slane %v5083, 1
        %v5086 = vsel %vm648, %v5082, %v5085
        %v5087 = vshrl.u32 %v4618, 16
        %v5089 = vshll.u32 %v4618, 16
        %v5091 = vrot.slane %v5089, 1
        %v5092 = vor.u32 %v5087, %v5091
        %v5093 = vshll.u32 %v4620, 16
        %v5095 = vrot.slane %v5093, 1
        %v5096 = vsel %vm648, %v5092, %v5095
        %v5097 = vshrl.u32 %v4622, 16
        %v5099 = vshll.u32 %v4622, 16
        %v5101 = vrot.slane %v5099, 1
        %v5102 = vor.u32 %v5097, %v5101
        %v5103 = vshll.u32 %v4624, 16
        %v5105 = vrot.slane %v5103, 1
        %v5106 = vsel %vm648, %v5102, %v5105
        %v5107 = vshrl.u32 %v4626, 16
        %v5109 = vshll.u32 %v4626, 16
        %v5111 = vrot.slane %v5109, 1
        %v5112 = vor.u32 %v5107, %v5111
        %v5113 = vshll.u32 %v4628, 16
        %v5115 = vrot.slane %v5113, 1
        %v5116 = vsel %vm648, %v5112, %v5115
        %5117 = vrot.lane.b32.xlu0 %v5046, 64
        %v5118 = vpop.permute.xlu0 %5117
        %5119 = vrot.lane.b32.xlu0 %v5056, 64
        %v5120 = vpop.permute.xlu0 %5119
        %5121 = vrot.lane.b32.xlu0 %v5066, 64
        %v5122 = vpop.permute.xlu0 %5121
        %5123 = vrot.lane.b32.xlu0 %v5076, 64
        %v5124 = vpop.permute.xlu0 %5123
        %5125 = vrot.lane.b32.xlu0 %v5086, 64
        %v5126 = vpop.permute.xlu0 %5125
        %5127 = vrot.lane.b32.xlu0 %v5096, 64
        %v5128 = vpop.permute.xlu0 %5127
        %5129 = vrot.lane.b32.xlu0 %v5106, 64
        %v5130 = vpop.permute.xlu0 %5129
        %5131 = vrot.lane.b32.xlu0 %v5116, 64
        %v5132 = vpop.permute.xlu0 %5131
        %v5133 = vrot.slane %v617, 4
        %v5134 = vrot.slane %v640, 4
        %v5135 = vsel %vm1119, %v5133, %v5134
        %v5136 = vrot.slane %v619, 4
        %v5137 = vrot.slane %v641, 4
        %v5138 = vsel %vm1119, %v5136, %v5137
        %v5139 = vrot.slane %v621, 4
        %v5140 = vrot.slane %v642, 4
        %v5141 = vsel %vm1119, %v5139, %v5140
        %v5142 = vrot.slane %v623, 4
        %v5143 = vrot.slane %v643, 4
        %v5144 = vsel %vm1119, %v5142, %v5143
        %v5145 = vrot.slane %v625, 4
        %v5146 = vrot.slane %v644, 4
        %v5147 = vsel %vm1119, %v5145, %v5146
        %v5148 = vrot.slane %v627, 4
        %v5149 = vrot.slane %v645, 4
        %v5150 = vsel %vm1119, %v5148, %v5149
        %v5151 = vrot.slane %v629, 4
        %v5152 = vrot.slane %v646, 4
        %v5153 = vsel %vm1119, %v5151, %v5152
        %v5154 = vrot.slane %v631, 4
        %v5155 = vrot.slane %v647, 4
        %v5156 = vsel %vm1119, %v5154, %v5155
        %5157 = vrot.lane.b32.xlu0 %v5135, 112
        %v5158 = vpop.permute.xlu0 %5157
        %5159 = vrot.lane.b32.xlu0 %v5138, 112
        %v5160 = vpop.permute.xlu0 %5159
        %5161 = vrot.lane.b32.xlu0 %v5141, 112
        %v5162 = vpop.permute.xlu0 %5161
        %5163 = vrot.lane.b32.xlu0 %v5144, 112
        %v5164 = vpop.permute.xlu0 %5163
        %5165 = vrot.lane.b32.xlu0 %v5147, 112
        %v5166 = vpop.permute.xlu0 %5165
        %5167 = vrot.lane.b32.xlu0 %v5150, 112
        %v5168 = vpop.permute.xlu0 %5167
        %5169 = vrot.lane.b32.xlu0 %v5153, 112
        %v5170 = vpop.permute.xlu0 %5169
        %5171 = vrot.lane.b32.xlu0 %v5156, 112
        %v5172 = vpop.permute.xlu0 %5171
        %vm5173 = vcmask 392192
        %v5175 = vsel %vm5173, %v1549, %v4750
        %v5177 = vsel %vm5173, %v1551, %v4752
        %v5179 = vsel %vm5173, %v1553, %v4754
        %v5181 = vsel %vm5173, %v1555, %v4756
        %v5183 = vsel %vm5173, %v1557, %v4758
        %v5185 = vsel %vm5173, %v1559, %v4760
        %v5187 = vsel %vm5173, %v1561, %v4762
        %v5189 = vsel %vm5173, %v1563, %v4764
        %vm5190 = vcmask 785408
        %v5192 = vsel %vm5190, %v5175, %v4886
        %v5195 = vsel %vm5190, %v5177, %v4888
        %v5198 = vsel %vm5190, %v5179, %v4890
        %v5201 = vsel %vm5190, %v5181, %v4892
        %v5204 = vsel %vm5190, %v5183, %v4894
        %v5207 = vsel %vm5190, %v5185, %v4896
        %v5210 = vsel %vm5190, %v5187, %v4898
        %v5213 = vsel %vm5190, %v5189, %v4900
        %vm5215 = vcmask 130048
        %v5217 = vsel %vm5215, %v4886, %v5022
        %v5219 = vsel %vm5215, %v4888, %v5024
        %v5221 = vsel %vm5215, %v4890, %v5026
        %v5223 = vsel %vm5215, %v4892, %v5028
        %v5225 = vsel %vm5215, %v4894, %v5030
        %v5227 = vsel %vm5215, %v4896, %v5032
        %v5229 = vsel %vm5215, %v4898, %v5034
        %v5231 = vsel %vm5215, %v4900, %v5036
        %vm5232 = vcmask 523264
        %v5234 = vsel %vm5232, %v5217, %v5118
        %v5236 = vsel %vm5232, %v5219, %v5120
        %v5238 = vsel %vm5232, %v5221, %v5122
        %v5240 = vsel %vm5232, %v5223, %v5124
        %v5242 = vsel %vm5232, %v5225, %v5126
        %v5244 = vsel %vm5232, %v5227, %v5128
        %v5246 = vsel %vm5232, %v5229, %v5130
        %v5248 = vsel %vm5232, %v5231, %v5132
        %vm5249 = vcmask 916480
        %v5251 = vsel %vm5249, %v5234, %v5158
        %v5253 = vsel %vm5249, %v5236, %v5160
        %v5255 = vsel %vm5249, %v5238, %v5162
        %v5257 = vsel %vm5249, %v5240, %v5164
        %v5259 = vsel %vm5249, %v5242, %v5166
        %v5261 = vsel %vm5249, %v5244, %v5168
        %v5263 = vsel %vm5249, %v5246, %v5170
        %v5265 = vsel %vm5249, %v5248, %v5172
        %v5266 = vld [vmem:[%s3] sm:$0xf]
        %v5267 = vld [vmem:[%s3 + $0x4] sm:$0xf]
        %v5268 = vld [vmem:[%s3 + $0x8] sm:$0xf]
        %v5269 = vld [vmem:[%s3 + $0xc] sm:$0xf]
        %v5270 = vld [vmem:[%s3 + $0x10] sm:$0xf]
        %v5271 = vld [vmem:[%s3 + $0x14] sm:$0xf]
        %v5272 = vld [vmem:[%s3 + $0x18] sm:$0xf]
        %v5273 = vld [vmem:[%s3 + $0x1c] sm:$0xf]
        %v5274 = vld [vmem:[%s3 + $0x20] sm:$0xf]
        %v5275 = vld [vmem:[%s3 + $0x24] sm:$0xf]
        %v5276 = vld [vmem:[%s3 + $0x28] sm:$0xf]
        %v5277 = vld [vmem:[%s3 + $0x2c] sm:$0xf]
        %v5278 = vld [vmem:[%s3 + $0x30] sm:$0xf]
        %v5279 = vld [vmem:[%s3 + $0x34] sm:$0xf]
        %v5280 = vld [vmem:[%s3 + $0x38] sm:$0xf]
        %v5281 = vld [vmem:[%s3 + $0x3c] sm:$0xf]
        %v5282 = vld [vmem:[%s3 + $0x40] sm:$0xf]
        %v5283 = vld [vmem:[%s3 + $0x44] sm:$0xf]
        %v5284 = vld [vmem:[%s3 + $0x48] sm:$0xf]
        %v5285 = vld [vmem:[%s3 + $0x4c] sm:$0xf]
        %v5286 = vld [vmem:[%s3 + $0x50] sm:$0xf]
        %v5287 = vld [vmem:[%s3 + $0x54] sm:$0xf]
        %v5288 = vld [vmem:[%s3 + $0x58] sm:$0xf]
        %v5289 = vld [vmem:[%s3 + $0x5c] sm:$0xf]
        %v5290 = vld [vmem:[%s3 + $0x60] sm:$0xf]
        %v5291 = vld [vmem:[%s3 + $0x64] sm:$0xf]
        %v5292 = vld [vmem:[%s3 + $0x68] sm:$0xf]
        %v5293 = vld [vmem:[%s3 + $0x6c] sm:$0xf]
        %v5294 = vld [vmem:[%s3 + $0x70] sm:$0xf]
        %v5295 = vld [vmem:[%s3 + $0x74] sm:$0xf]
        %v5296 = vld [vmem:[%s3 + $0x78] sm:$0x3]
        %v5297 = vld [vmem:[%s4] sm:$0x1]
        %v5299 = vlaneseq
        %v5300 = vshrl.u32 %v5299, 7
        %v5301 = vsub.s32 0, %v5300
        %v5302 = vrot.slane %v5297, %v5301
        %v5335 = vunpack.c.l.b16 %v5266
        %v5336 = vunpack.c.l.b16 %v5267
        %v5337 = vunpack.c.l.b16 %v5268
        %v5338 = vunpack.c.l.b16 %v5269
        %v5339 = vunpack.c.l.b16 %v5270
        %v5340 = vunpack.c.l.b16 %v5271
        %v5341 = vunpack.c.l.b16 %v5272
        %v5342 = vunpack.c.l.b16 %v5273
        %v5343 = vunpack.c.l.b16 %v5274
        %v5344 = vunpack.c.l.b16 %v5275
        %v5345 = vunpack.c.l.b16 %v5276
        %v5346 = vunpack.c.l.b16 %v5277
        %v5347 = vunpack.c.l.b16 %v5278
        %v5348 = vunpack.c.l.b16 %v5279
        %v5349 = vunpack.c.l.b16 %v5280
        %v5350 = vunpack.c.l.b16 %v5281
        %v5351 = vunpack.c.l.b16 %v5282
        %v5352 = vunpack.c.l.b16 %v5283
        %v5353 = vunpack.c.l.b16 %v5284
        %v5354 = vunpack.c.l.b16 %v5285
        %v5355 = vunpack.c.l.b16 %v5286
        %v5356 = vunpack.c.l.b16 %v5287
        %v5357 = vunpack.c.l.b16 %v5288
        %v5358 = vunpack.c.l.b16 %v5289
        %v5359 = vunpack.c.l.b16 %v5290
        %v5360 = vunpack.c.l.b16 %v5291
        %v5361 = vunpack.c.l.b16 %v5292
        %v5362 = vunpack.c.l.b16 %v5293
        %v5363 = vunpack.c.l.b16 %v5294
        %v5364 = vunpack.c.l.b16 %v5295
        %v5365 = vunpack.c.l.b16 %v5296
        %v5366 = vpack.c.b16 %v5336, %v5335
        %v5367 = vpack.c.b16 %v5338, %v5337
        %v5368 = vpack.c.b16 %v5340, %v5339
        %v5369 = vpack.c.b16 %v5342, %v5341
        %v5370 = vpack.c.b16 %v5344, %v5343
        %v5371 = vpack.c.b16 %v5346, %v5345
        %v5372 = vpack.c.b16 %v5348, %v5347
        %v5373 = vpack.c.b16 %v5350, %v5349
        %v5374 = vpack.c.b16 %v5352, %v5351
        %v5375 = vpack.c.b16 %v5354, %v5353
        %v5376 = vpack.c.b16 %v5356, %v5355
        %v5377 = vpack.c.b16 %v5358, %v5357
        %v5378 = vpack.c.b16 %v5360, %v5359
        %v5379 = vpack.c.b16 %v5362, %v5361
        %v5380 = vpack.c.b16 %v5364, %v5363
        %v5381 = vpack.c.b16 %v5365, %v5365
        %vm5397 = vcmask 941056
        %v5398 = vsel %vm5397, %v5251, 0
        %v5400 = vsel %vm5397, %v5253, 0
        %v5402 = vsel %vm5397, %v5255, 0
        %v5404 = vsel %vm5397, %v5257, 0
        %v5406 = vsel %vm5397, %v5259, 0
        %v5408 = vsel %vm5397, %v5261, 0
        %v5410 = vsel %vm5397, %v5263, 0
        %v5412 = vsel %vm5397, %v5265, 0
        %vm5414 = vcmask 1040384
        %v5415 = vsel %vm5414, 4294967295, 65535
        %v5416 = vsel %vm598, %v5415, 0
        %v5418 = vand.u32 %v5381, %v5416
        %5420 = vmatprep.subr.bf16.mxu0 0
        %5421 = vmatpush1.bf16.msra.mxu0 %v5366
        %5422 = vmatprep.subr.bf16.mxu0 0
        %5423 = vmatpush1.bf16.msra.mxu0 %v5367
        %5424 = vmatprep.subr.bf16.mxu0 0
        %5425 = vmatpush1.bf16.msra.mxu0 %v5368
        %5426 = vmatprep.subr.bf16.mxu0 0
        %5427 = vmatpush1.bf16.msra.mxu0 %v5369
        %5428 = vmatprep.subr.bf16.mxu0 0
        %5429 = vmatpush1.bf16.msra.mxu0 %v5370
        %5430 = vmatprep.subr.bf16.mxu0 0
        %5431 = vmatpush1.bf16.msra.mxu0 %v5371
        %5432 = vmatprep.subr.bf16.mxu0 0
        %5433 = vmatpush1.bf16.msra.mxu0 %v5372
        %5434 = vmatprep.subr.bf16.mxu0 0
        %5435 = vmatpush1.bf16.msra.mxu0 %v5373
        %5436 = vmatprep.subr.bf16.mxu0 0
        %5437 = vmatpush1.bf16.msra.mxu0 %v5374
        %5438 = vmatprep.subr.bf16.mxu0 0
        %5439 = vmatpush1.bf16.msra.mxu0 %v5375
        %5440 = vmatprep.subr.bf16.mxu0 0
        %5441 = vmatpush1.bf16.msra.mxu0 %v5376
        %5442 = vmatprep.subr.bf16.mxu0 0
        %5443 = vmatpush1.bf16.msra.mxu0 %v5377
        %5444 = vmatprep.subr.bf16.mxu0 0
        %5445 = vmatpush1.bf16.msra.mxu0 %v5378
        %5446 = vmatprep.subr.bf16.mxu0 0
        %5447 = vmatpush1.bf16.msra.mxu0 %v5379
        %5448 = vmatprep.subr.bf16.mxu0 0
        %5449 = vmatpush1.bf16.msra.mxu0 %v5380
        %5450 = vmatprep.subr.bf16.mxu0 0
        %5451 = vmatpush1.bf16.msra.mxu0 %v5418
        %5452 = vmatprep.mubr.bf16.mxu0 %v5398
        %5453 = vmatmul.mubr.bf16.gmra.mrb[0].mxu0 %v5192
        %v5454 = vpop.f32.mrb[0].mxu0
        %v5455 = vadd.f32 %v5302, %v5454
        %v5456 = vpop.f32.mrb[0].mxu0
        %v5457 = vpop.f32.mrb[0].mxu0
        %v5458 = vadd.f32 %v5302, %v5457
        %v5459 = vpop.f32.mrb[0].mxu0
        %5460 = vmatprep.mubr.bf16.mxu0 %v5400
        %5461 = vmatmul.mubr.bf16.gmra.mrb[0].mxu0 %v5195
        %v5462 = vpop.f32.mrb[0].mxu0
        %v5463 = vadd.f32 %v5302, %v5462
        %v5464 = vpop.f32.mrb[0].mxu0
        %v5465 = vpop.f32.mrb[0].mxu0
        %v5466 = vadd.f32 %v5302, %v5465
        %v5467 = vpop.f32.mrb[0].mxu0
        %5468 = vmatprep.mubr.bf16.mxu0 %v5402
        %5469 = vmatmul.mubr.bf16.gmra.mrb[0].mxu0 %v5198
        %v5470 = vpop.f32.mrb[0].mxu0
        %v5471 = vadd.f32 %v5302, %v5470
        %v5472 = vpop.f32.mrb[0].mxu0
        %v5473 = vpop.f32.mrb[0].mxu0
        %v5474 = vadd.f32 %v5302, %v5473
        %v5475 = vpop.f32.mrb[0].mxu0
        %5476 = vmatprep.mubr.bf16.mxu0 %v5404
        %5477 = vmatmul.mubr.bf16.gmra.mrb[0].mxu0 %v5201
        %v5478 = vpop.f32.mrb[0].mxu0
        %v5479 = vadd.f32 %v5302, %v5478
        %v5480 = vpop.f32.mrb[0].mxu0
        %v5481 = vpop.f32.mrb[0].mxu0
        %v5482 = vadd.f32 %v5302, %v5481
        %v5483 = vpop.f32.mrb[0].mxu0
        %5484 = vmatprep.mubr.bf16.mxu0 %v5406
        %5485 = vmatmul.mubr.bf16.gmra.mrb[0].mxu0 %v5204
        %v5486 = vpop.f32.mrb[0].mxu0
        %v5487 = vadd.f32 %v5302, %v5486
        %v5488 = vpop.f32.mrb[0].mxu0
        %v5489 = vpop.f32.mrb[0].mxu0
        %v5490 = vadd.f32 %v5302, %v5489
        %v5491 = vpop.f32.mrb[0].mxu0
        %5492 = vmatprep.mubr.bf16.mxu0 %v5408
        %5493 = vmatmul.mubr.bf16.gmra.mrb[0].mxu0 %v5207
        %v5494 = vpop.f32.mrb[0].mxu0
        %v5495 = vadd.f32 %v5302, %v5494
        %v5496 = vpop.f32.mrb[0].mxu0
        %v5497 = vpop.f32.mrb[0].mxu0
        %v5498 = vadd.f32 %v5302, %v5497
        %v5499 = vpop.f32.mrb[0].mxu0
        %5500 = vmatprep.mubr.bf16.mxu0 %v5410
        %5501 = vmatmul.mubr.bf16.gmra.mrb[0].mxu0 %v5210
        %v5502 = vpop.f32.mrb[0].mxu0
        %v5503 = vadd.f32 %v5302, %v5502
        %v5504 = vpop.f32.mrb[0].mxu0
        %v5505 = vpop.f32.mrb[0].mxu0
        %v5506 = vadd.f32 %v5302, %v5505
        %v5507 = vpop.f32.mrb[0].mxu0
        %5508 = vmatprep.mubr.bf16.mxu0 %v5412
        %5509 = vmatmul.mubr.bf16.gmra.mrb[0].mxu0 %v5213
        %v5510 = vpop.f32.mrb[0].mxu0
        %v5511 = vadd.f32 %v5302, %v5510
        %v5512 = vpop.f32.mrb[0].mxu0
        %v5513 = vpop.f32.mrb[0].mxu0
        %v5514 = vadd.f32 %v5302, %v5513
        %v5515 = vpop.f32.mrb[0].mxu0
        %5516 = vdwg.mxu0
        %s5517 = sld [smem:[#allocation2]]
        %vm5518 = vcmp.gt.f32.partialorder %v5455, 0.0
        %vm5519 = vcmp.gt.f32.partialorder %v5458, 0.0
        %vm5520 = vcmp.gt.f32.partialorder %v5463, 0.0
        %vm5521 = vcmp.gt.f32.partialorder %v5466, 0.0
        %vm5522 = vcmp.gt.f32.partialorder %v5471, 0.0
        %vm5523 = vcmp.gt.f32.partialorder %v5474, 0.0
        %vm5524 = vcmp.gt.f32.partialorder %v5479, 0.0
        %vm5525 = vcmp.gt.f32.partialorder %v5482, 0.0
        %vm5526 = vcmp.gt.f32.partialorder %v5487, 0.0
        %vm5527 = vcmp.gt.f32.partialorder %v5490, 0.0
        %vm5528 = vcmp.gt.f32.partialorder %v5495, 0.0
        %vm5529 = vcmp.gt.f32.partialorder %v5498, 0.0
        %vm5530 = vcmp.gt.f32.partialorder %v5503, 0.0
        %vm5531 = vcmp.gt.f32.partialorder %v5506, 0.0
        %vm5532 = vcmp.gt.f32.partialorder %v5511, 0.0
        %vm5533 = vcmp.gt.f32.partialorder %v5514, 0.0
        %v5534 = vstv %s5517
        %v5535 = vmul.f32 %v5534, %v5455
        %v5536 = vmul.f32 %v5534, %v5458
        %v5537 = vmul.f32 %v5534, %v5463
        %v5538 = vmul.f32 %v5534, %v5466
        %v5539 = vmul.f32 %v5534, %v5471
        %v5540 = vmul.f32 %v5534, %v5474
        %v5541 = vmul.f32 %v5534, %v5479
        %v5542 = vmul.f32 %v5534, %v5482
        %v5543 = vmul.f32 %v5534, %v5487
        %v5544 = vmul.f32 %v5534, %v5490
        %v5545 = vmul.f32 %v5534, %v5495
        %v5546 = vmul.f32 %v5534, %v5498
        %v5547 = vmul.f32 %v5534, %v5503
        %v5548 = vmul.f32 %v5534, %v5506
        %v5549 = vmul.f32 %v5534, %v5511
        %v5550 = vmul.f32 %v5534, %v5514
        %v5551 = vsel %vm5518, %v5455, %v5535
        %v5552 = vsel %vm5519, %v5458, %v5536
        %v5553 = vsel %vm5520, %v5463, %v5537
        %v5554 = vsel %vm5521, %v5466, %v5538
        %v5555 = vsel %vm5522, %v5471, %v5539
        %v5556 = vsel %vm5523, %v5474, %v5540
        %v5557 = vsel %vm5524, %v5479, %v5541
        %v5558 = vsel %vm5525, %v5482, %v5542
        %v5559 = vsel %vm5526, %v5487, %v5543
        %v5560 = vsel %vm5527, %v5490, %v5544
        %v5561 = vsel %vm5528, %v5495, %v5545
        %v5562 = vsel %vm5529, %v5498, %v5546
        %v5563 = vsel %vm5530, %v5503, %v5547
        %v5564 = vsel %vm5531, %v5506, %v5548
        %v5565 = vsel %vm5532, %v5511, %v5549
        %v5566 = vsel %vm5533, %v5514, %v5550
        %v5567 = vpack.c.bf16 %v5552, %v5551
        %v5568 = vpack.c.bf16 %v5554, %v5553
        %v5569 = vpack.c.bf16 %v5556, %v5555
        %v5570 = vpack.c.bf16 %v5558, %v5557
        %v5571 = vpack.c.bf16 %v5560, %v5559
        %v5572 = vpack.c.bf16 %v5562, %v5561
        %v5573 = vpack.c.bf16 %v5564, %v5563
        %v5574 = vpack.c.bf16 %v5566, %v5565
        %v5583 = vunpack.c.l.b16 %v5567
        %v5584 = vunpack.c.h.b16 %v5567
        %v5585 = vunpack.c.l.b16 %v5568
        %v5586 = vunpack.c.h.b16 %v5568
        %v5587 = vunpack.c.l.b16 %v5569
        %v5588 = vunpack.c.h.b16 %v5569
        %v5589 = vunpack.c.l.b16 %v5570
        %v5590 = vunpack.c.h.b16 %v5570
        %v5591 = vunpack.c.l.b16 %v5571
        %v5592 = vunpack.c.h.b16 %v5571
        %v5593 = vunpack.c.l.b16 %v5572
        %v5594 = vunpack.c.h.b16 %v5572
        %v5595 = vunpack.c.l.b16 %v5573
        %v5596 = vunpack.c.h.b16 %v5573
        %v5597 = vunpack.c.l.b16 %v5574
        %v5598 = vunpack.c.h.b16 %v5574
        %v5599 = vpack.c.b16 %v5583, %v5583
        %v5600 = vpack.c.b16 %v5584, %v5584
        %v5601 = vpack.c.b16 %v5585, %v5585
        %v5602 = vpack.c.b16 %v5586, %v5586
        %v5603 = vpack.c.b16 %v5587, %v5587
        %v5604 = vpack.c.b16 %v5588, %v5588
        %v5605 = vpack.c.b16 %v5589, %v5589
        %v5606 = vpack.c.b16 %v5590, %v5590
        %v5607 = vpack.c.b16 %v5591, %v5591
        %v5608 = vpack.c.b16 %v5592, %v5592
        %v5609 = vpack.c.b16 %v5593, %v5593
        %v5610 = vpack.c.b16 %v5594, %v5594
        %v5611 = vpack.c.b16 %v5595, %v5595
        %v5612 = vpack.c.b16 %v5596, %v5596
        %v5613 = vpack.c.b16 %v5597, %v5597
        %v5614 = vpack.c.b16 %v5598, %v5598
        %vm5631 = vcmask 519168
        %5632 = vst.msk [vmem:[%s368] sm:$0xf] %vm5631, %v5599
        %5633 = vst.msk [vmem:[%s368 + $0x4] sm:$0xf] %vm5631, %v5600
        %5634 = vst.msk [vmem:[%s368 + $0x8] sm:$0xf] %vm5631, %v5601
        %5635 = vst.msk [vmem:[%s368 + $0xc] sm:$0xf] %vm5631, %v5602
        %5636 = vst.msk [vmem:[%s368 + $0x10] sm:$0xf] %vm5631, %v5603
        %5637 = vst.msk [vmem:[%s368 + $0x14] sm:$0xf] %vm5631, %v5604
        %5638 = vst.msk [vmem:[%s368 + $0x18] sm:$0xf] %vm5631, %v5605
        %5639 = vst.msk [vmem:[%s368 + $0x1c] sm:$0xf] %vm5631, %v5606
        %5640 = vst.msk [vmem:[%s368 + $0x20] sm:$0xf] %vm5631, %v5607
        %5641 = vst.msk [vmem:[%s368 + $0x24] sm:$0xf] %vm5631, %v5608
        %5642 = vst.msk [vmem:[%s368 + $0x28] sm:$0xf] %vm5631, %v5609
        %5643 = vst.msk [vmem:[%s368 + $0x2c] sm:$0xf] %vm5631, %v5610
        %5644 = vst.msk [vmem:[%s368 + $0x30] sm:$0xf] %vm5631, %v5611
        %5645 = vst.msk [vmem:[%s368 + $0x34] sm:$0xf] %vm5631, %v5612
        %5646 = vst.msk [vmem:[%s368 + $0x38] sm:$0xf] %vm5631, %v5613
        %5647 = vst.msk [vmem:[%s368 + $0x3c] sm:$0xf] %vm5631, %v5614
        %s5648 = sand.u32 %s206, 1
        %s5649 = scalar_lea.sflag [#allocation4], %s5648
        %s5650 = sand.u32 %s206, 1
        %s5651 = smul.addr %s5650, 64
        %s5652 = scalar_lea.vmem [#allocation3], %s5651
        // Predicated region
        $region45: #{tpu_custom_call.1} parent=43 // pred_check
          %p5653 = pneg %p216
        $region46: #{tpu_custom_call.1} parent=43 // pred_check_branch
          %5655 = sbr.rel (%p5653) target = $region48
        $region47: #{tpu_custom_call.1} parent=43 // pred_region
          %s5656 = smul.u32 8, %s26
          %s5658 = ssub.s32 1024, 1024
          %5659 = vsyncadd %s5649, %s5658
          %s5660 = smul.addr %s5656, 2
          %s5661 = smul.addr %s25, 32
          %s5662 = sadd.s32 %s5660, %s5661
          %s5663 = smul.addr %s5662, 64
          %s5664 = scalar_lea.hbm %s6, %s5663
          %s5665 = sshll.u32 %s5652, 4
          %s5666 = int_to_ptr.vmem [resolvable:$true] %s5665
          %5671 = dma.vmem_to_hbm [thread:$0]  %s5666, 1024, %s5664, %s5649, 64, 64, 4
        $region48: #{tpu_custom_call.1} parent=43 // pred_fallthru
          _
      $region44: #{tpu_custom_call.1} parent=5 // pred_fallthru
        _
      %p5672 = scmp.le.s32.totalorder 2, %s16
      // Predicated region
      $region49: #{tpu_custom_call.1} parent=5 // pred_check
        %p5673 = pneg %p5672
      $region50: #{tpu_custom_call.1} parent=5 // pred_check_branch
        %5675 = sbr.rel (%p5673) target = $region52
      $region51: #{tpu_custom_call.1} parent=5 // pred_region
        %s5676 = ssub.s32 %s16, 2
        // Predicated region
        $region53: #{tpu_custom_call.1} parent=51 // pred_check
          %p5677 = pneg %p222
        $region54: #{tpu_custom_call.1} parent=51 // pred_check_branch
          %5679 = sbr.rel (%p5677) target = $region56
        $region55: #{tpu_custom_call.1} parent=51 // pred_region
          %s5680 = sand.u32 %s207, 1
          %s5681 = scalar_lea.sflag [#allocation4], %s5680
          %s5682 = sand.u32 %s207, 1
          %s5683 = smul.addr %s5682, 64
          %s5684 = scalar_lea.vmem [#allocation3], %s5683
          %5685 = dma.done %s5681, 1024
        $region56: #{tpu_custom_call.1} parent=51 // pred_fallthru
          _
      $region52: #{tpu_custom_call.1} parent=5 // pred_fallthru
        _
    $region6: #{tpu_custom_call.1} parent=1 // loop_footer
      %s20 = sadd.s32 1, %s16
    $region7: #{tpu_custom_call.1} parent=1 // loop_footer_branch
      %15 = sbr.rel target = $region3
    $region8: #{tpu_custom_call.1} parent=1 // loop_exit
      _
    %5686 = vsyncpa [#allocation4], 1
    %s5687 = scalar_lea.sflag [#allocation4], 1
    %5688 = vsyncpa %s5687, 1

</llo_original>
